<compile_context>
chip_gen: v7x
topology: tpu7x:2x2x1
jax: 0.10.0
libtpu: 0.0.40
codegen_flags: <defaults>
</compile_context>

<pallas_src>
import functools
import math

import jax
import jax.numpy as jnp
from jax.experimental import pallas as pl
from jax.experimental.pallas import tpu as pltpu


EPS = 1e-5
LANE = 128


# ----------------------------------------------------------------------------
# Fused kernel: RevIN norm -> res_layers x (MLP + residual) -> RevIN denorm,
# for one (TB, C, Lp) block of the batch.
# ----------------------------------------------------------------------------
def trend_kernel(x_ref, gamma_ref, beta_ref,
                 w1_ref, b1_ref, w2_ref, b2_ref,
                 w3_ref, b3_ref, w4_ref, b4_ref,
                 o_ref, *, res_layers, affine, exact_gelu, matmul_dtype, l_true):
    tb, C, Lp = x_ref.shape
    M = tb * C

    x3 = x_ref[...].astype(jnp.float32)                       # (TB, C, Lp)

    # ---- RevIN 'norm': per-(batch, channel) statistics over the time axis ----
    if l_true == Lp:
        mean = jnp.mean(x3, axis=-1, keepdims=True)            # (TB, C, 1)
        var = jnp.mean(jnp.square(x3 - mean), axis=-1, keepdims=True)
    else:
        # Time axis was zero-padded up to a lane multiple; mask the padded tail.
        lane_idx = jax.lax.broadcasted_iota(jnp.int32, (tb, C, Lp), 2)
        valid = lane_idx < l_true
        inv_n = 1.0 / float(l_true)
        mean = jnp.sum(x3, axis=-1, keepdims=True) * inv_n      # pads are zero
        var = jnp.sum(jnp.where(valid, jnp.square(x3 - mean), 0.0),
                      axis=-1, keepdims=True) * inv_n
    stdev = jnp.sqrt(var + EPS)                                 # kept for denorm
    inv_std = jax.lax.rsqrt(var + EPS)                          # EUP rsqrt, no VPU divide
    h3 = (x3 - mean) * inv_std
    if affine:
        gamma = gamma_ref[...].astype(jnp.float32)              # (C, 1) per channel
        beta = beta_ref[...].astype(jnp.float32)
        h3 = h3 * gamma + beta

    # Flatten batch into the matmul M dimension: (TB, C, Lp) -> (TB*C, Lp).
    # Free relayout: C % 8 == 0 (guaranteed by the wrapper whenever TB > 1) and
    # Lp % 128 == 0, so the MXU now sees TB*C rows per pass instead of C.
    h = h3.reshape(M, Lp)

    gelu = functools.partial(jax.nn.gelu, approximate=not exact_gelu)

    # TODO(synk): if res_layers / C / L grow, move this layer loop onto an
    # "arbitrary" trailing grid axis (weights indexed by l, h kept in a VMEM
    # scratch accumulator via pl.when init/finalize) instead of static unroll,
    # so weight residency stays ~2 layers on v7x's 64 MiB VMEM.
    for l in range(res_layers):
        z = jnp.dot(h.astype(matmul_dtype), w1_ref[l].astype(matmul_dtype),
                    preferred_element_type=jnp.float32) + b1_ref[l]     # (M, C)
        z = gelu(z)
        z = jnp.dot(z.astype(matmul_dtype), w2_ref[l].astype(matmul_dtype),
                    preferred_element_type=jnp.float32) + b2_ref[l]     # (M, 4C)
        z = gelu(z)
        z = jnp.dot(z.astype(matmul_dtype), w3_ref[l].astype(matmul_dtype),
                    preferred_element_type=jnp.float32) + b3_ref[l]     # (M, C)
        z = gelu(z)
        z = jnp.dot(z.astype(matmul_dtype), w4_ref[l].astype(matmul_dtype),
                    preferred_element_type=jnp.float32) + b4_ref[l]     # (M, Lp)
        # Dropout(0.1) is identity in eval mode.
        h = h + z

    # ---- RevIN 'denorm' ----
    h3 = h.reshape(tb, C, Lp)
    if affine:
        h3 = (h3 - beta) * (1.0 / (gamma + EPS * EPS))          # tiny (C,1) divide
    out = h3 * stdev + mean
    o_ref[...] = out.astype(o_ref.dtype)


# ----------------------------------------------------------------------------
# TB choice: flatten as much batch as possible into the M dimension while
# (a) keeping the grid >= min_grid_steps (v7x: 2 TensorCores want >= 2 steps),
# (b) keeping the block a free relayout (needs C % 8 == 0 when TB > 1),
# (c) keeping the x block small enough to double-buffer comfortably.
# ----------------------------------------------------------------------------
def _largest_valid_tb(B, C, Lp, itemsize, *, min_grid_steps=2,
                      max_block_bytes=4 << 20):
    if C % 8 != 0:
        return 1          # (TB*C, Lp) reshape would not be layout-free
    best = 1
    for tb in range(1, B + 1):
        if B % tb:
            continue
        if tb * C * Lp * itemsize > max_block_bytes:
            continue
        if (B // tb) < min_grid_steps and tb != 1:
            continue
        best = tb
    return best


# ----------------------------------------------------------------------------
# Wrapper: one pallas_call for the whole TrendBlock forward.
# ----------------------------------------------------------------------------
def trend_block_forward(x, params, *, affine=True, exact_gelu=False,
                        matmul_dtype=jnp.bfloat16, min_grid_steps=2):
    """x: (B, C, L) -> (B, C, L)."""
    gamma, beta, w1, b1, w2, b2, w3, b3, w4, b4 = params
    B, C, L = x.shape
    R = w1.shape[0]

    # Lane-dense time axis: pad L to a multiple of 128.  Padded w1 rows / w4
    # cols / b4 entries are zero so the math is unchanged; stats are masked
    # in-kernel and the pad is sliced off below.
    Lp = ((L + LANE - 1) // LANE) * LANE
    if Lp != L:
        pad = Lp - L
        x = jnp.pad(x, ((0, 0), (0, 0), (0, pad)))
        w1 = jnp.pad(w1, ((0, 0), (0, pad), (0, 0)))
        w4 = jnp.pad(w4, ((0, 0), (0, 0), (0, pad)))
        b4 = jnp.pad(b4, ((0, 0), (0, 0), (0, pad)))

    TB = _largest_valid_tb(B, C, Lp, x.dtype.itemsize,
                           min_grid_steps=min_grid_steps)
    grid = (B // TB,)

    params_all = (gamma, beta, w1, b1, w2, b2, w3, b3, w4, b4)

    def const_spec(a):
        # Constant index_map -> the block is never re-fetched across the grid.
        # When C/L/R scale, add pipeline_mode=pl.Buffered(1) here to single-
        # buffer the resident weights (halves their VMEM footprint); at this
        # size it is irrelevant, so the default buffering is kept.
        nd = a.ndim
        return pl.BlockSpec(a.shape, lambda b, _nd=nd: (0,) * _nd)

    kernel = functools.partial(trend_kernel, res_layers=R, affine=affine,
                               exact_gelu=exact_gelu, matmul_dtype=matmul_dtype,
                               l_true=L)

    # Roofline-style cost hint for XLA's scheduler.
    flops = 2 * B * C * R * (2 * C * Lp + 8 * C * C)
    transcendentals = B * (R * 6 * C * C + 2 * C)
    bytes_accessed = (2 * B * C * Lp * x.dtype.itemsize
                      + sum(int(p.size) * p.dtype.itemsize for p in params_all))

    # Explicit VMEM budget: double-buffered in/out x blocks + resident weights
    # + f32 intermediates, with headroom, capped at v7x's 64 MiB physical VMEM.
    x_block = TB * C * Lp * x.dtype.itemsize
    weight_bytes = sum(int(p.size) * p.dtype.itemsize for p in params_all)
    interm_bytes = TB * C * (2 * Lp + 6 * C) * 4
    vmem_limit = int(min(max(1.5 * (4 * x_block + weight_bytes + interm_bytes),
                             16 * 1024 * 1024), 64 * 1024 * 1024))

    out = pl.pallas_call(
        kernel,
        out_shape=jax.ShapeDtypeStruct((B, C, Lp), x.dtype),
        grid=grid,
        in_specs=[pl.BlockSpec((TB, C, Lp), lambda b: (b, 0, 0))]
                 + [const_spec(p) for p in params_all],
        out_specs=pl.BlockSpec((TB, C, Lp), lambda b: (b, 0, 0)),
        compiler_params=pltpu.CompilerParams(
            dimension_semantics=("parallel",),
            vmem_limit_bytes=vmem_limit),
        cost_estimate=pl.CostEstimate(flops=flops,
                                      transcendentals=transcendentals,
                                      bytes_accessed=bytes_accessed),
    )(x, *params_all)

    return out[..., :L] if Lp != L else out


# ----------------------------------------------------------------------------
# Pure-JAX f32 reference (for correctness checks).
# ----------------------------------------------------------------------------
def trend_block_ref(x, params, *, affine=True, exact_gelu=False):
    gamma, beta, w1, b1, w2, b2, w3, b3, w4, b4 = [
        jnp.asarray(p, jnp.float32) for p in params]
    gelu = functools.partial(jax.nn.gelu, approximate=not exact_gelu)
    x = jnp.asarray(x, jnp.float32)
    mean = jnp.mean(x, axis=-1, keepdims=True)
    var = jnp.mean(jnp.square(x - mean), axis=-1, keepdims=True)
    stdev = jnp.sqrt(var + EPS)
    h = (x - mean) / stdev
    if affine:
        h = h * gamma + beta
    for l in range(w1.shape[0]):
        z = gelu(h @ w1[l] + b1[l])
        z = gelu(z @ w2[l] + b2[l])
        z = gelu(z @ w3[l] + b3[l])
        z = z @ w4[l] + b4[l]
        h = h + z
    if affine:
        h = (h - beta) / (gamma + EPS * EPS)
    return h * stdev + mean


# ----------------------------------------------------------------------------
# Deterministic parameter construction (torch.nn.Linear-style init).
# ----------------------------------------------------------------------------
def make_params(key, channels, seq_len, res_layers, *, affine=True,
                weight_dtype=jnp.float32):
    C, L, R = channels, seq_len, res_layers
    ks = jax.random.split(key, 4 * R + 1)

    def lin(k, fan_in, fan_out):
        bound = 1.0 / math.sqrt(fan_in)
        kw, kb = jax.random.split(k)
        w = jax.random.uniform(kw, (fan_in, fan_out), jnp.float32, -bound, bound)
        b = jax.random.uniform(kb, (1, fan_out), jnp.float32, -bound, bound)
        return w, b

    w1s, b1s, w2s, b2s, w3s, b3s, w4s, b4s = ([] for _ in range(8))
    for r in range(R):
        w, b = lin(ks[4 * r + 0], L, C);       w1s.append(w); b1s.append(b)
        w, b = lin(ks[4 * r + 1], C, 4 * C);   w2s.append(w); b2s.append(b)
        w, b = lin(ks[4 * r + 2], 4 * C, C);   w3s.append(w); b3s.append(b)
        w, b = lin(ks[4 * r + 3], C, L);       w4s.append(w); b4s.append(b)

    stack = lambda xs: jnp.stack(xs, axis=0)
    w1, w2, w3, w4 = (stack(w).astype(weight_dtype) for w in (w1s, w2s, w3s, w4s))
    b1, b2, b3, b4 = (stack(b) for b in (b1s, b2s, b3s, b4s))   # biases stay f32

    if affine:
        kg, kb = jax.random.split(ks[-1])
        gamma = 1.0 + 0.1 * jax.random.normal(kg, (C, 1), jnp.float32)
        beta = 0.1 * jax.random.normal(kb, (C, 1), jnp.float32)
    else:
        gamma = jnp.ones((C, 1), jnp.float32)
        beta = jnp.zeros((C, 1), jnp.float32)
    return gamma, beta, w1, b1, w2, b2, w3, b3, w4, b4


if __name__ == "__main__":
    # Shapes consistent with TrendBlock(channels, res_layers, seq_len, affine).
    # B=8, C=32 -> TB=4 blocks of 128 matmul rows and a 2-step parallel grid.
    B, channels, seq_len, res_layers = 8, 32, 128, 2
    affine = True

    key = jax.random.PRNGKey(0)
    kx, kp = jax.random.split(key)
    x = jax.random.normal(kx, (B, channels, seq_len), jnp.float32)
    params = make_params(kp, channels, seq_len, res_layers, affine=affine,
                         weight_dtype=jnp.float32)

    # --- 1) Tight check: f32 matmuls vs the pure-JAX f32 reference. ---
    fwd_f32 = jax.jit(functools.partial(trend_block_forward, affine=affine,
                                        exact_gelu=False,
                                        matmul_dtype=jnp.float32))
    y = jax.block_until_ready(fwd_f32(x, params))
    assert y.shape == (B, channels, seq_len), y.shape
    assert bool(jnp.all(jnp.isfinite(y)))
    y_ref = trend_block_ref(x, params, affine=affine, exact_gelu=False)
    err = float(jnp.max(jnp.abs(y - y_ref)))
    assert err < 1e-3, f"f32 max abs err {err}"

    # --- 2) Padded-L path (L=100 -> 128 lanes) with TB=2 flattened blocks. ---
    B2, C2, L2, R2 = 4, 16, 100, 1
    kx2, kp2 = jax.random.split(jax.random.PRNGKey(1))
    x2 = jax.random.normal(kx2, (B2, C2, L2), jnp.float32)
    params2 = make_params(kp2, C2, L2, R2, affine=affine,
                          weight_dtype=jnp.float32)
    y2 = jax.block_until_ready(
        jax.jit(functools.partial(trend_block_forward, affine=affine,
                                  exact_gelu=False,
                                  matmul_dtype=jnp.float32))(x2, params2))
    assert y2.shape == (B2, C2, L2), y2.shape
    err2 = float(jnp.max(jnp.abs(
        y2 - trend_block_ref(x2, params2, affine=affine, exact_gelu=False))))
    assert err2 < 1e-3, f"padded-L max abs err {err2}"

    # --- 3) Perf-representative bf16-matmul path (looser tolerance). ---
    g_, be_, w1_, b1_, w2_, b2_, w3_, b3_, w4_, b4_ = params
    params_bf16 = (g_, be_,
                   w1_.astype(jnp.bfloat16), b1_, w2_.astype(jnp.bfloat16), b2_,
                   w3_.astype(jnp.bfloat16), b3_, w4_.astype(jnp.bfloat16), b4_)
    fwd_bf16 = jax.jit(functools.partial(trend_block_forward, affine=affine,
                                         exact_gelu=False,
                                         matmul_dtype=jnp.bfloat16))
    y_bf16 = jax.block_until_ready(fwd_bf16(x, params_bf16))
    err_bf16 = float(jnp.max(jnp.abs(
        y_bf16 - trend_block_ref(x, params_bf16, affine=affine,
                                 exact_gelu=False))))
    assert err_bf16 < 1e-1, f"bf16 max abs err {err_bf16}"

    print("KERNEL_OK")
</pallas_src>

<mosaic_0001>
module attributes {stable_mosaic.version = 11 : i64} {
  func.func @trend_kernel(%arg0: i32, %arg1: memref<4x32x128xf32, #tpu.memory_space<vmem>>, %arg2: memref<32x1xf32, #tpu.memory_space<vmem>>, %arg3: memref<32x1xf32, #tpu.memory_space<vmem>>, %arg4: memref<2x128x32xf32, #tpu.memory_space<vmem>>, %arg5: memref<2x1x32xf32, #tpu.memory_space<vmem>>, %arg6: memref<2x32x128xf32, #tpu.memory_space<vmem>>, %arg7: memref<2x1x128xf32, #tpu.memory_space<vmem>>, %arg8: memref<2x128x32xf32, #tpu.memory_space<vmem>>, %arg9: memref<2x1x32xf32, #tpu.memory_space<vmem>>, %arg10: memref<2x32x128xf32, #tpu.memory_space<vmem>>, %arg11: memref<2x1x128xf32, #tpu.memory_space<vmem>>, %arg12: memref<4x32x128xf32, #tpu.memory_space<vmem>>) attributes {dimension_semantics = [#tpu.dimension_semantics<parallel>], iteration_bounds = array<i64: 2>, scalar_prefetch = 0 : i64, scratch_operands = 0 : i64, tpu.core_type = #tpu.core_type<tc>, window_params = [{transform_indices = @transform_0, window_bounds = array<i64: 4, 32, 128>}, {pipeline_mode = #tpu.pipeline_mode<synchronous>, transform_indices = @transform_1, window_bounds = array<i64: 32, 1>}, {pipeline_mode = #tpu.pipeline_mode<synchronous>, transform_indices = @transform_2, window_bounds = array<i64: 32, 1>}, {pipeline_mode = #tpu.pipeline_mode<synchronous>, transform_indices = @transform_3, window_bounds = array<i64: 2, 128, 32>}, {pipeline_mode = #tpu.pipeline_mode<synchronous>, transform_indices = @transform_4, window_bounds = array<i64: 2, 1, 32>}, {pipeline_mode = #tpu.pipeline_mode<synchronous>, transform_indices = @transform_5, window_bounds = array<i64: 2, 32, 128>}, {pipeline_mode = #tpu.pipeline_mode<synchronous>, transform_indices = @transform_6, window_bounds = array<i64: 2, 1, 128>}, {pipeline_mode = #tpu.pipeline_mode<synchronous>, transform_indices = @transform_7, window_bounds = array<i64: 2, 128, 32>}, {pipeline_mode = #tpu.pipeline_mode<synchronous>, transform_indices = @transform_8, window_bounds = array<i64: 2, 1, 32>}, {pipeline_mode = #tpu.pipeline_mode<synchronous>, transform_indices = @transform_9, window_bounds = array<i64: 2, 32, 128>}, {pipeline_mode = #tpu.pipeline_mode<synchronous>, transform_indices = @transform_10, window_bounds = array<i64: 2, 1, 128>}, {transform_indices = @transform_11, window_bounds = array<i64: 4, 32, 128>}]} {
    %c0 = arith.constant 0 : index
    %c0_0 = arith.constant 0 : index
    %c0_1 = arith.constant 0 : index
    %0 = vector.load %arg1[%c0, %c0_0, %c0_1] : memref<4x32x128xf32, #tpu.memory_space<vmem>>, vector<4x32x128xf32>
    %cst = arith.constant dense<0.000000e+00> : vector<4x32xf32>
    %1 = vector.multi_reduction <add>, %0, %cst [2] : vector<4x32x128xf32> to vector<4x32xf32>
    %2 = vector.shape_cast %1 : vector<4x32xf32> to vector<4x32x1xf32>
    %cst_2 = arith.constant 1.280000e+02 : f32
    %3 = vector.broadcast %cst_2 : f32 to vector<4x32x1xf32>
    %4 = arith.divf %2, %3 : vector<4x32x1xf32>
    %5 = vector.broadcast %4 : vector<4x32x1xf32> to vector<4x32x128xf32>
    %6 = arith.subf %0, %5 : vector<4x32x128xf32>
    %7 = arith.mulf %6, %6 : vector<4x32x128xf32>
    %cst_3 = arith.constant dense<0.000000e+00> : vector<4x32xf32>
    %8 = vector.multi_reduction <add>, %7, %cst_3 [2] : vector<4x32x128xf32> to vector<4x32xf32>
    %9 = vector.shape_cast %8 : vector<4x32xf32> to vector<4x32x1xf32>
    %cst_4 = arith.constant 1.280000e+02 : f32
    %10 = vector.broadcast %cst_4 : f32 to vector<4x32x1xf32>
    %11 = arith.divf %9, %10 : vector<4x32x1xf32>
    %cst_5 = arith.constant 9.99999974E-6 : f32
    %12 = vector.broadcast %cst_5 : f32 to vector<4x32x1xf32>
    %13 = arith.addf %11, %12 : vector<4x32x1xf32>
    %14 = math.sqrt %13 : vector<4x32x1xf32>
    %cst_6 = arith.constant 9.99999974E-6 : f32
    %15 = vector.broadcast %cst_6 : f32 to vector<4x32x1xf32>
    %16 = arith.addf %11, %15 : vector<4x32x1xf32>
    %17 = math.rsqrt %16 : vector<4x32x1xf32>
    %18 = vector.broadcast %4 : vector<4x32x1xf32> to vector<4x32x128xf32>
    %19 = arith.subf %0, %18 : vector<4x32x128xf32>
    %20 = vector.broadcast %17 : vector<4x32x1xf32> to vector<4x32x128xf32>
    %21 = arith.mulf %19, %20 : vector<4x32x128xf32>
    %c0_7 = arith.constant 0 : index
    %c0_8 = arith.constant 0 : index
    %22 = vector.load %arg2[%c0_7, %c0_8] : memref<32x1xf32, #tpu.memory_space<vmem>>, vector<32x1xf32>
    %c0_9 = arith.constant 0 : index
    %c0_10 = arith.constant 0 : index
    %23 = vector.load %arg3[%c0_9, %c0_10] : memref<32x1xf32, #tpu.memory_space<vmem>>, vector<32x1xf32>
    %24 = vector.shape_cast %22 : vector<32x1xf32> to vector<1x32x1xf32>
    %25 = vector.broadcast %24 : vector<1x32x1xf32> to vector<4x32x128xf32>
    %26 = arith.mulf %21, %25 : vector<4x32x128xf32>
    %27 = vector.shape_cast %23 : vector<32x1xf32> to vector<1x32x1xf32>
    %28 = vector.broadcast %27 : vector<1x32x1xf32> to vector<4x32x128xf32>
    %29 = arith.addf %26, %28 : vector<4x32x128xf32>
    %30 = vector.shape_cast %29 : vector<4x32x128xf32> to vector<128x128xf32>
    %c0_11 = arith.constant 0 : index
    %c0_12 = arith.constant 0 : index
    %c0_13 = arith.constant 0 : index
    %31 = vector.load %arg4[%c0_11, %c0_12, %c0_13] : memref<2x128x32xf32, #tpu.memory_space<vmem>>, vector<1x128x32xf32>
    %32 = vector.shape_cast %31 : vector<1x128x32xf32> to vector<128x32xf32>
    %cst_14 = arith.constant dense<0.000000e+00> : vector<128x32xf32>
    %33 = tpu.matmul %30, %32, %cst_14 {dimension_numbers = #tpu.dot_dimension_numbers<[1], [0], [0], [1], [0, 0, 1, 1], [], []>} : vector<128x128xf32>, vector<128x32xf32>, vector<128x32xf32> -> vector<128x32xf32>
    %c0_15 = arith.constant 0 : index
    %c0_16 = arith.constant 0 : index
    %c0_17 = arith.constant 0 : index
    %34 = vector.load %arg5[%c0_15, %c0_16, %c0_17] : memref<2x1x32xf32, #tpu.memory_space<vmem>>, vector<1x1x32xf32>
    %35 = vector.shape_cast %34 : vector<1x1x32xf32> to vector<1x32xf32>
    %36 = vector.broadcast %35 : vector<1x32xf32> to vector<128x32xf32>
    %37 = arith.addf %33, %36 : vector<128x32xf32>
    %38 = arith.mulf %37, %37 : vector<128x32xf32>
    %39 = arith.mulf %37, %38 : vector<128x32xf32>
    %cst_18 = arith.constant 4.471500e-02 : f32
    %40 = vector.broadcast %cst_18 : f32 to vector<128x32xf32>
    %41 = arith.mulf %40, %39 : vector<128x32xf32>
    %42 = arith.addf %37, %41 : vector<128x32xf32>
    %cst_19 = arith.constant 0.797884583 : f32
    %43 = vector.broadcast %cst_19 : f32 to vector<128x32xf32>
    %44 = arith.mulf %43, %42 : vector<128x32xf32>
    %45 = math.tanh %44 : vector<128x32xf32>
    %cst_20 = arith.constant 1.000000e+00 : f32
    %46 = vector.broadcast %cst_20 : f32 to vector<128x32xf32>
    %47 = arith.addf %46, %45 : vector<128x32xf32>
    %cst_21 = arith.constant 5.000000e-01 : f32
    %48 = vector.broadcast %cst_21 : f32 to vector<128x32xf32>
    %49 = arith.mulf %48, %47 : vector<128x32xf32>
    %50 = arith.mulf %37, %49 : vector<128x32xf32>
    %c0_22 = arith.constant 0 : index
    %c0_23 = arith.constant 0 : index
    %c0_24 = arith.constant 0 : index
    %51 = vector.load %arg6[%c0_22, %c0_23, %c0_24] : memref<2x32x128xf32, #tpu.memory_space<vmem>>, vector<1x32x128xf32>
    %52 = vector.shape_cast %51 : vector<1x32x128xf32> to vector<32x128xf32>
    %cst_25 = arith.constant dense<0.000000e+00> : vector<128x128xf32>
    %53 = tpu.matmul %50, %52, %cst_25 {dimension_numbers = #tpu.dot_dimension_numbers<[1], [0], [0], [1], [0, 0, 1, 1], [], []>} : vector<128x32xf32>, vector<32x128xf32>, vector<128x128xf32> -> vector<128x128xf32>
    %c0_26 = arith.constant 0 : index
    %c0_27 = arith.constant 0 : index
    %c0_28 = arith.constant 0 : index
    %54 = vector.load %arg7[%c0_26, %c0_27, %c0_28] : memref<2x1x128xf32, #tpu.memory_space<vmem>>, vector<1x1x128xf32>
    %55 = vector.shape_cast %54 : vector<1x1x128xf32> to vector<1x128xf32>
    %56 = vector.broadcast %55 : vector<1x128xf32> to vector<128x128xf32>
    %57 = arith.addf %53, %56 : vector<128x128xf32>
    %58 = arith.mulf %57, %57 : vector<128x128xf32>
    %59 = arith.mulf %57, %58 : vector<128x128xf32>
    %cst_29 = arith.constant 4.471500e-02 : f32
    %60 = vector.broadcast %cst_29 : f32 to vector<128x128xf32>
    %61 = arith.mulf %60, %59 : vector<128x128xf32>
    %62 = arith.addf %57, %61 : vector<128x128xf32>
    %cst_30 = arith.constant 0.797884583 : f32
    %63 = vector.broadcast %cst_30 : f32 to vector<128x128xf32>
    %64 = arith.mulf %63, %62 : vector<128x128xf32>
    %65 = math.tanh %64 : vector<128x128xf32>
    %cst_31 = arith.constant 1.000000e+00 : f32
    %66 = vector.broadcast %cst_31 : f32 to vector<128x128xf32>
    %67 = arith.addf %66, %65 : vector<128x128xf32>
    %cst_32 = arith.constant 5.000000e-01 : f32
    %68 = vector.broadcast %cst_32 : f32 to vector<128x128xf32>
    %69 = arith.mulf %68, %67 : vector<128x128xf32>
    %70 = arith.mulf %57, %69 : vector<128x128xf32>
    %c0_33 = arith.constant 0 : index
    %c0_34 = arith.constant 0 : index
    %c0_35 = arith.constant 0 : index
    %71 = vector.load %arg8[%c0_33, %c0_34, %c0_35] : memref<2x128x32xf32, #tpu.memory_space<vmem>>, vector<1x128x32xf32>
    %72 = vector.shape_cast %71 : vector<1x128x32xf32> to vector<128x32xf32>
    %cst_36 = arith.constant dense<0.000000e+00> : vector<128x32xf32>
    %73 = tpu.matmul %70, %72, %cst_36 {dimension_numbers = #tpu.dot_dimension_numbers<[1], [0], [0], [1], [0, 0, 1, 1], [], []>} : vector<128x128xf32>, vector<128x32xf32>, vector<128x32xf32> -> vector<128x32xf32>
    %c0_37 = arith.constant 0 : index
    %c0_38 = arith.constant 0 : index
    %c0_39 = arith.constant 0 : index
    %74 = vector.load %arg9[%c0_37, %c0_38, %c0_39] : memref<2x1x32xf32, #tpu.memory_space<vmem>>, vector<1x1x32xf32>
    %75 = vector.shape_cast %74 : vector<1x1x32xf32> to vector<1x32xf32>
    %76 = vector.broadcast %75 : vector<1x32xf32> to vector<128x32xf32>
    %77 = arith.addf %73, %76 : vector<128x32xf32>
    %78 = arith.mulf %77, %77 : vector<128x32xf32>
    %79 = arith.mulf %77, %78 : vector<128x32xf32>
    %cst_40 = arith.constant 4.471500e-02 : f32
    %80 = vector.broadcast %cst_40 : f32 to vector<128x32xf32>
    %81 = arith.mulf %80, %79 : vector<128x32xf32>
    %82 = arith.addf %77, %81 : vector<128x32xf32>
    %cst_41 = arith.constant 0.797884583 : f32
    %83 = vector.broadcast %cst_41 : f32 to vector<128x32xf32>
    %84 = arith.mulf %83, %82 : vector<128x32xf32>
    %85 = math.tanh %84 : vector<128x32xf32>
    %cst_42 = arith.constant 1.000000e+00 : f32
    %86 = vector.broadcast %cst_42 : f32 to vector<128x32xf32>
    %87 = arith.addf %86, %85 : vector<128x32xf32>
    %cst_43 = arith.constant 5.000000e-01 : f32
    %88 = vector.broadcast %cst_43 : f32 to vector<128x32xf32>
    %89 = arith.mulf %88, %87 : vector<128x32xf32>
    %90 = arith.mulf %77, %89 : vector<128x32xf32>
    %c0_44 = arith.constant 0 : index
    %c0_45 = arith.constant 0 : index
    %c0_46 = arith.constant 0 : index
    %91 = vector.load %arg10[%c0_44, %c0_45, %c0_46] : memref<2x32x128xf32, #tpu.memory_space<vmem>>, vector<1x32x128xf32>
    %92 = vector.shape_cast %91 : vector<1x32x128xf32> to vector<32x128xf32>
    %cst_47 = arith.constant dense<0.000000e+00> : vector<128x128xf32>
    %93 = tpu.matmul %90, %92, %cst_47 {dimension_numbers = #tpu.dot_dimension_numbers<[1], [0], [0], [1], [0, 0, 1, 1], [], []>} : vector<128x32xf32>, vector<32x128xf32>, vector<128x128xf32> -> vector<128x128xf32>
    %c0_48 = arith.constant 0 : index
    %c0_49 = arith.constant 0 : index
    %c0_50 = arith.constant 0 : index
    %94 = vector.load %arg11[%c0_48, %c0_49, %c0_50] : memref<2x1x128xf32, #tpu.memory_space<vmem>>, vector<1x1x128xf32>
    %95 = vector.shape_cast %94 : vector<1x1x128xf32> to vector<1x128xf32>
    %96 = vector.broadcast %95 : vector<1x128xf32> to vector<128x128xf32>
    %97 = arith.addf %93, %96 : vector<128x128xf32>
    %98 = arith.addf %30, %97 : vector<128x128xf32>
    %c1 = arith.constant 1 : index
    %c0_51 = arith.constant 0 : index
    %c0_52 = arith.constant 0 : index
    %99 = vector.load %arg4[%c1, %c0_51, %c0_52] : memref<2x128x32xf32, #tpu.memory_space<vmem>>, vector<1x128x32xf32>
    %100 = vector.shape_cast %99 : vector<1x128x32xf32> to vector<128x32xf32>
    %cst_53 = arith.constant dense<0.000000e+00> : vector<128x32xf32>
    %101 = tpu.matmul %98, %100, %cst_53 {dimension_numbers = #tpu.dot_dimension_numbers<[1], [0], [0], [1], [0, 0, 1, 1], [], []>} : vector<128x128xf32>, vector<128x32xf32>, vector<128x32xf32> -> vector<128x32xf32>
    %c1_54 = arith.constant 1 : index
    %c0_55 = arith.constant 0 : index
    %c0_56 = arith.constant 0 : index
    %102 = vector.load %arg5[%c1_54, %c0_55, %c0_56] : memref<2x1x32xf32, #tpu.memory_space<vmem>>, vector<1x1x32xf32>
    %103 = vector.shape_cast %102 : vector<1x1x32xf32> to vector<1x32xf32>
    %104 = vector.broadcast %103 : vector<1x32xf32> to vector<128x32xf32>
    %105 = arith.addf %101, %104 : vector<128x32xf32>
    %106 = arith.mulf %105, %105 : vector<128x32xf32>
    %107 = arith.mulf %105, %106 : vector<128x32xf32>
    %cst_57 = arith.constant 4.471500e-02 : f32
    %108 = vector.broadcast %cst_57 : f32 to vector<128x32xf32>
    %109 = arith.mulf %108, %107 : vector<128x32xf32>
    %110 = arith.addf %105, %109 : vector<128x32xf32>
    %cst_58 = arith.constant 0.797884583 : f32
    %111 = vector.broadcast %cst_58 : f32 to vector<128x32xf32>
    %112 = arith.mulf %111, %110 : vector<128x32xf32>
    %113 = math.tanh %112 : vector<128x32xf32>
    %cst_59 = arith.constant 1.000000e+00 : f32
    %114 = vector.broadcast %cst_59 : f32 to vector<128x32xf32>
    %115 = arith.addf %114, %113 : vector<128x32xf32>
    %cst_60 = arith.constant 5.000000e-01 : f32
    %116 = vector.broadcast %cst_60 : f32 to vector<128x32xf32>
    %117 = arith.mulf %116, %115 : vector<128x32xf32>
    %118 = arith.mulf %105, %117 : vector<128x32xf32>
    %c1_61 = arith.constant 1 : index
    %c0_62 = arith.constant 0 : index
    %c0_63 = arith.constant 0 : index
    %119 = vector.load %arg6[%c1_61, %c0_62, %c0_63] : memref<2x32x128xf32, #tpu.memory_space<vmem>>, vector<1x32x128xf32>
    %120 = vector.shape_cast %119 : vector<1x32x128xf32> to vector<32x128xf32>
    %cst_64 = arith.constant dense<0.000000e+00> : vector<128x128xf32>
    %121 = tpu.matmul %118, %120, %cst_64 {dimension_numbers = #tpu.dot_dimension_numbers<[1], [0], [0], [1], [0, 0, 1, 1], [], []>} : vector<128x32xf32>, vector<32x128xf32>, vector<128x128xf32> -> vector<128x128xf32>
    %c1_65 = arith.constant 1 : index
    %c0_66 = arith.constant 0 : index
    %c0_67 = arith.constant 0 : index
    %122 = vector.load %arg7[%c1_65, %c0_66, %c0_67] : memref<2x1x128xf32, #tpu.memory_space<vmem>>, vector<1x1x128xf32>
    %123 = vector.shape_cast %122 : vector<1x1x128xf32> to vector<1x128xf32>
    %124 = vector.broadcast %123 : vector<1x128xf32> to vector<128x128xf32>
    %125 = arith.addf %121, %124 : vector<128x128xf32>
    %126 = arith.mulf %125, %125 : vector<128x128xf32>
    %127 = arith.mulf %125, %126 : vector<128x128xf32>
    %cst_68 = arith.constant 4.471500e-02 : f32
    %128 = vector.broadcast %cst_68 : f32 to vector<128x128xf32>
    %129 = arith.mulf %128, %127 : vector<128x128xf32>
    %130 = arith.addf %125, %129 : vector<128x128xf32>
    %cst_69 = arith.constant 0.797884583 : f32
    %131 = vector.broadcast %cst_69 : f32 to vector<128x128xf32>
    %132 = arith.mulf %131, %130 : vector<128x128xf32>
    %133 = math.tanh %132 : vector<128x128xf32>
    %cst_70 = arith.constant 1.000000e+00 : f32
    %134 = vector.broadcast %cst_70 : f32 to vector<128x128xf32>
    %135 = arith.addf %134, %133 : vector<128x128xf32>
    %cst_71 = arith.constant 5.000000e-01 : f32
    %136 = vector.broadcast %cst_71 : f32 to vector<128x128xf32>
    %137 = arith.mulf %136, %135 : vector<128x128xf32>
    %138 = arith.mulf %125, %137 : vector<128x128xf32>
    %c1_72 = arith.constant 1 : index
    %c0_73 = arith.constant 0 : index
    %c0_74 = arith.constant 0 : index
    %139 = vector.load %arg8[%c1_72, %c0_73, %c0_74] : memref<2x128x32xf32, #tpu.memory_space<vmem>>, vector<1x128x32xf32>
    %140 = vector.shape_cast %139 : vector<1x128x32xf32> to vector<128x32xf32>
    %cst_75 = arith.constant dense<0.000000e+00> : vector<128x32xf32>
    %141 = tpu.matmul %138, %140, %cst_75 {dimension_numbers = #tpu.dot_dimension_numbers<[1], [0], [0], [1], [0, 0, 1, 1], [], []>} : vector<128x128xf32>, vector<128x32xf32>, vector<128x32xf32> -> vector<128x32xf32>
    %c1_76 = arith.constant 1 : index
    %c0_77 = arith.constant 0 : index
    %c0_78 = arith.constant 0 : index
    %142 = vector.load %arg9[%c1_76, %c0_77, %c0_78] : memref<2x1x32xf32, #tpu.memory_space<vmem>>, vector<1x1x32xf32>
    %143 = vector.shape_cast %142 : vector<1x1x32xf32> to vector<1x32xf32>
    %144 = vector.broadcast %143 : vector<1x32xf32> to vector<128x32xf32>
    %145 = arith.addf %141, %144 : vector<128x32xf32>
    %146 = arith.mulf %145, %145 : vector<128x32xf32>
    %147 = arith.mulf %145, %146 : vector<128x32xf32>
    %cst_79 = arith.constant 4.471500e-02 : f32
    %148 = vector.broadcast %cst_79 : f32 to vector<128x32xf32>
    %149 = arith.mulf %148, %147 : vector<128x32xf32>
    %150 = arith.addf %145, %149 : vector<128x32xf32>
    %cst_80 = arith.constant 0.797884583 : f32
    %151 = vector.broadcast %cst_80 : f32 to vector<128x32xf32>
    %152 = arith.mulf %151, %150 : vector<128x32xf32>
    %153 = math.tanh %152 : vector<128x32xf32>
    %cst_81 = arith.constant 1.000000e+00 : f32
    %154 = vector.broadcast %cst_81 : f32 to vector<128x32xf32>
    %155 = arith.addf %154, %153 : vector<128x32xf32>
    %cst_82 = arith.constant 5.000000e-01 : f32
    %156 = vector.broadcast %cst_82 : f32 to vector<128x32xf32>
    %157 = arith.mulf %156, %155 : vector<128x32xf32>
    %158 = arith.mulf %145, %157 : vector<128x32xf32>
    %c1_83 = arith.constant 1 : index
    %c0_84 = arith.constant 0 : index
    %c0_85 = arith.constant 0 : index
    %159 = vector.load %arg10[%c1_83, %c0_84, %c0_85] : memref<2x32x128xf32, #tpu.memory_space<vmem>>, vector<1x32x128xf32>
    %160 = vector.shape_cast %159 : vector<1x32x128xf32> to vector<32x128xf32>
    %cst_86 = arith.constant dense<0.000000e+00> : vector<128x128xf32>
    %161 = tpu.matmul %158, %160, %cst_86 {dimension_numbers = #tpu.dot_dimension_numbers<[1], [0], [0], [1], [0, 0, 1, 1], [], []>} : vector<128x32xf32>, vector<32x128xf32>, vector<128x128xf32> -> vector<128x128xf32>
    %c1_87 = arith.constant 1 : index
    %c0_88 = arith.constant 0 : index
    %c0_89 = arith.constant 0 : index
    %162 = vector.load %arg11[%c1_87, %c0_88, %c0_89] : memref<2x1x128xf32, #tpu.memory_space<vmem>>, vector<1x1x128xf32>
    %163 = vector.shape_cast %162 : vector<1x1x128xf32> to vector<1x128xf32>
    %164 = vector.broadcast %163 : vector<1x128xf32> to vector<128x128xf32>
    %165 = arith.addf %161, %164 : vector<128x128xf32>
    %166 = arith.addf %98, %165 : vector<128x128xf32>
    %167 = vector.shape_cast %166 : vector<128x128xf32> to vector<4x32x128xf32>
    %168 = vector.shape_cast %23 : vector<32x1xf32> to vector<1x32x1xf32>
    %169 = vector.broadcast %168 : vector<1x32x1xf32> to vector<4x32x128xf32>
    %170 = arith.subf %167, %169 : vector<4x32x128xf32>
    %cst_90 = arith.constant 1.000000e-10 : f32
    %171 = vector.broadcast %cst_90 : f32 to vector<32x1xf32>
    %172 = arith.addf %22, %171 : vector<32x1xf32>
    %cst_91 = arith.constant 1.000000e+00 : f32
    %173 = vector.broadcast %cst_91 : f32 to vector<32x1xf32>
    %174 = arith.divf %173, %172 : vector<32x1xf32>
    %175 = vector.shape_cast %174 : vector<32x1xf32> to vector<1x32x1xf32>
    %176 = vector.broadcast %175 : vector<1x32x1xf32> to vector<4x32x128xf32>
    %177 = arith.mulf %170, %176 : vector<4x32x128xf32>
    %178 = vector.broadcast %14 : vector<4x32x1xf32> to vector<4x32x128xf32>
    %179 = arith.mulf %177, %178 : vector<4x32x128xf32>
    %180 = vector.broadcast %4 : vector<4x32x1xf32> to vector<4x32x128xf32>
    %181 = arith.addf %179, %180 : vector<4x32x128xf32>
    %c0_92 = arith.constant 0 : index
    %c0_93 = arith.constant 0 : index
    %c0_94 = arith.constant 0 : index
    %182 = vector.load %arg12[%c0_92, %c0_93, %c0_94] : memref<4x32x128xf32, #tpu.memory_space<vmem>>, vector<4x32x128xf32>
    tpu.vector_store %arg12[%c0_92, %c0_93, %c0_94], %181 {strides = array<i32>} : memref<4x32x128xf32, #tpu.memory_space<vmem>>, vector<4x32x128xf32>,
    return
  }
  func.func @transform_0(%arg0: i32) -> (i32, i32, i32) {
    %c0_i32 = arith.constant 0 : i32
    %c0_i32_0 = arith.constant 0 : i32
    %c0_i32_1 = arith.constant 0 : i32
    return %arg0, %c0_i32, %c0_i32_0 : i32, i32, i32
  }
  func.func @transform_1(%arg0: i32) -> (i32, i32) {
    %c0_i32 = arith.constant 0 : i32
    %c0_i32_0 = arith.constant 0 : i32
    %c0_i32_1 = arith.constant 0 : i32
    return %c0_i32, %c0_i32_0 : i32, i32
  }
  func.func @transform_2(%arg0: i32) -> (i32, i32) {
    %c0_i32 = arith.constant 0 : i32
    %c0_i32_0 = arith.constant 0 : i32
    %c0_i32_1 = arith.constant 0 : i32
    return %c0_i32, %c0_i32_0 : i32, i32
  }
  func.func @transform_3(%arg0: i32) -> (i32, i32, i32) {
    %c0_i32 = arith.constant 0 : i32
    %c0_i32_0 = arith.constant 0 : i32
    %c0_i32_1 = arith.constant 0 : i32
    %c0_i32_2 = arith.constant 0 : i32
    return %c0_i32, %c0_i32_0, %c0_i32_1 : i32, i32, i32
  }
  func.func @transform_4(%arg0: i32) -> (i32, i32, i32) {
    %c0_i32 = arith.constant 0 : i32
    %c0_i32_0 = arith.constant 0 : i32
    %c0_i32_1 = arith.constant 0 : i32
    %c0_i32_2 = arith.constant 0 : i32
    return %c0_i32, %c0_i32_0, %c0_i32_1 : i32, i32, i32
  }
  func.func @transform_5(%arg0: i32) -> (i32, i32, i32) {
    %c0_i32 = arith.constant 0 : i32
    %c0_i32_0 = arith.constant 0 : i32
    %c0_i32_1 = arith.constant 0 : i32
    %c0_i32_2 = arith.constant 0 : i32
    return %c0_i32, %c0_i32_0, %c0_i32_1 : i32, i32, i32
  }
  func.func @transform_6(%arg0: i32) -> (i32, i32, i32) {
    %c0_i32 = arith.constant 0 : i32
    %c0_i32_0 = arith.constant 0 : i32
    %c0_i32_1 = arith.constant 0 : i32
    %c0_i32_2 = arith.constant 0 : i32
    return %c0_i32, %c0_i32_0, %c0_i32_1 : i32, i32, i32
  }
  func.func @transform_7(%arg0: i32) -> (i32, i32, i32) {
    %c0_i32 = arith.constant 0 : i32
    %c0_i32_0 = arith.constant 0 : i32
    %c0_i32_1 = arith.constant 0 : i32
    %c0_i32_2 = arith.constant 0 : i32
    return %c0_i32, %c0_i32_0, %c0_i32_1 : i32, i32, i32
  }
  func.func @transform_8(%arg0: i32) -> (i32, i32, i32) {
    %c0_i32 = arith.constant 0 : i32
    %c0_i32_0 = arith.constant 0 : i32
    %c0_i32_1 = arith.constant 0 : i32
    %c0_i32_2 = arith.constant 0 : i32
    return %c0_i32, %c0_i32_0, %c0_i32_1 : i32, i32, i32
  }
  func.func @transform_9(%arg0: i32) -> (i32, i32, i32) {
    %c0_i32 = arith.constant 0 : i32
    %c0_i32_0 = arith.constant 0 : i32
    %c0_i32_1 = arith.constant 0 : i32
    %c0_i32_2 = arith.constant 0 : i32
    return %c0_i32, %c0_i32_0, %c0_i32_1 : i32, i32, i32
  }
  func.func @transform_10(%arg0: i32) -> (i32, i32, i32) {
    %c0_i32 = arith.constant 0 : i32
    %c0_i32_0 = arith.constant 0 : i32
    %c0_i32_1 = arith.constant 0 : i32
    %c0_i32_2 = arith.constant 0 : i32
    return %c0_i32, %c0_i32_0, %c0_i32_1 : i32, i32, i32
  }
  func.func @transform_11(%arg0: i32) -> (i32, i32, i32) {
    %c0_i32 = arith.constant 0 : i32
    %c0_i32_0 = arith.constant 0 : i32
    %c0_i32_1 = arith.constant 0 : i32
    return %arg0, %c0_i32, %c0_i32_0 : i32, i32, i32
  }
}

</mosaic_0001>

<llo_original>
// kernel: trend_block_forward.1
$region0: #{trend_block_forward.1}
  #allocation0 [shape = 'u32[]', space=smem, size = 0x4, offset = 0x4, fixed_abs, tag = 'smem constant byte address 0x4 - core index']
  #allocation1 [shape = 'u32[144,128]{1,0:T(1,128)}', space=vmem, size = 0x12000, scoped, tag = 'internal scratch']
  %s0 = inlined_call_operand.vmem [shape: f32[8,32,128], index: 0, kind: input, shape index: {}]
  %s1 = inlined_call_operand.vmem [shape: f32[32,1], index: 1, kind: input, shape index: {}]
  %s2 = inlined_call_operand.vmem [shape: f32[32,1], index: 2, kind: input, shape index: {}]
  %s3 = inlined_call_operand.vmem [shape: f32[2,128,32], index: 3, kind: input, shape index: {}]
  %s4 = inlined_call_operand.vmem [shape: f32[2,1,32], index: 4, kind: input, shape index: {}]
  %s5 = inlined_call_operand.vmem [shape: f32[2,32,128], index: 5, kind: input, shape index: {}]
  %s6 = inlined_call_operand.vmem [shape: f32[2,1,128], index: 6, kind: input, shape index: {}]
  %s7 = inlined_call_operand.vmem [shape: f32[2,128,32], index: 7, kind: input, shape index: {}]
  %s8 = inlined_call_operand.vmem [shape: f32[2,1,32], index: 8, kind: input, shape index: {}]
  %s9 = inlined_call_operand.vmem [shape: f32[2,32,128], index: 9, kind: input, shape index: {}]
  %s10 = inlined_call_operand.vmem [shape: f32[2,1,128], index: 10, kind: input, shape index: {}]
  %s11 = inlined_call_operand.hbm [shape: f32[8,32,128], index: 11, kind: output, shape index: {}]
  %s12 = sld [smem:[#allocation0]]
  $region77: #{trend_block_forward.1} parent=0
    _
  %s14 = ssub.s32 1, %s12
  %s15 = scalar_select 0, %s14, %s12
  $region1: #{trend_block_forward.1} parent=0
    #allocation2 [shape = 'u8[131072]{0}', space=vmem, size = 0x20000, scoped, tag = 'output window, operand 0']
    #allocation3 [shape = 's32[2]{0}', space=sflag, size = 0x8, scoped, tag = 'scoped memory for trend_block_forward.1']
    %16 = vsyncpa [#allocation3], 0
    %s17 = scalar_lea.sflag [#allocation3], 1
    %18 = vsyncpa %s17, 0
    loop: start=0, step=1, limit=4
    $region2: #{trend_block_forward.1} parent=1 // loop_pre_header
      _
    $region3: #{trend_block_forward.1} parent=1 // loop_header
      %s20 = sphi 0, %s24
      %p21 = scmp.ge.s32.totalorder %s20, 4
      %s30 = sphi 0, %s32
      %s33 = sphi 0, %s30
      %s34 = sphi 0, %s33
      %s50 = sphi 0, %s34
      %s54 = sphi 0, %s54
      %s56 = sphi 0, %s54
      %s57 = sphi 0, %s56
      %s71 = sphi 0, %s57
      %s75 = sphi 0, %s75
      %s77 = sphi 0, %s75
      %s78 = sphi 0, %s77
      %s92 = sphi 0, %s78
      %s96 = sphi 0, %s96
      %s98 = sphi 0, %s96
      %s99 = sphi 0, %s98
      %s113 = sphi 0, %s99
      %s117 = sphi 0, %s117
      %s119 = sphi 0, %s117
      %s120 = sphi 0, %s119
      %s134 = sphi 0, %s120
      %s138 = sphi 0, %s138
      %s140 = sphi 0, %s138
      %s141 = sphi 0, %s140
      %s155 = sphi 0, %s141
      %s159 = sphi 0, %s159
      %s161 = sphi 0, %s159
      %s162 = sphi 0, %s161
      %s176 = sphi 0, %s162
      %s180 = sphi 0, %s180
      %s182 = sphi 0, %s180
      %s183 = sphi 0, %s182
      %s197 = sphi 0, %s183
      %s201 = sphi 0, %s201
      %s203 = sphi 0, %s201
      %s204 = sphi 0, %s203
      %s218 = sphi 0, %s204
      %s222 = sphi 0, %s222
      %s224 = sphi 0, %s222
      %s225 = sphi 0, %s224
      %s239 = sphi 0, %s225
      %s243 = sphi 0, %s243
      %s245 = sphi 0, %s243
      %s246 = sphi 0, %s245
      %s260 = sphi 0, %s246
      %s266 = sphi 0, %s268
      %s269 = sphi 0, %s266
      %s270 = sphi 0, %s269
      %s286 = sphi 0, %s270
    $region4: #{trend_block_forward.1} parent=1 // loop_header_branch
      %23 = sbr.rel (%p21) target = $region8
    $region5: #{trend_block_forward.1} parent=1 // loop_body
      %s25 = ssub.s32 %s20, 1
      %s26 = ssub.s32 %s20, 2
      %s27 = sadd.s32 %s20, 1
      %s28 = ssub.s32 %s20, %s27
      %p29 = scmp.eq.s32.totalorder %s28, 0
      %s31 = sadd.s32 %s30, 1
      %s32 = scalar_select %p29, %s30, %s31
      %p35 = pneg %p29
      %p36 = scmp.eq.s32.totalorder %s20, 1
      %p37 = por %p35, %p36
      %p38 = scmp.ne.s32.totalorder %s30, %s33
      %p39 = scmp.eq.s32.totalorder %s20, 0
      %p40 = por %p38, %p39
      %p41 = scmp.ne.s32.totalorder %s30, %s33
      %p42 = scmp.eq.s32.totalorder %s25, 1
      %p43 = por %p41, %p42
      %p44 = scmp.ne.s32.totalorder %s33, %s34
      %p45 = scmp.eq.s32.totalorder %s25, 0
      %p46 = por %p44, %p45
      %p47 = scmp.ne.s32.totalorder %s33, %s34
      %p48 = scmp.eq.s32.totalorder %s26, 1
      %p49 = por %p47, %p48
      %p51 = scmp.ne.s32.totalorder %s34, %s50
      %p52 = scmp.eq.s32.totalorder %s26, 0
      %p53 = por %p51, %p52
      %s55 = sadd.s32 %s54, 1
      %p58 = scmp.eq.s32.totalorder %s20, 1
      %p59 = scmp.ne.s32.totalorder %s54, %s56
      %p60 = scmp.eq.s32.totalorder %s20, 0
      %p61 = por %p59, %p60
      %p62 = scmp.ne.s32.totalorder %s54, %s56
      %p63 = scmp.eq.s32.totalorder %s25, 1
      %p64 = por %p62, %p63
      %p65 = scmp.ne.s32.totalorder %s56, %s57
      %p66 = scmp.eq.s32.totalorder %s25, 0
      %p67 = por %p65, %p66
      %p68 = scmp.ne.s32.totalorder %s56, %s57
      %p69 = scmp.eq.s32.totalorder %s26, 1
      %p70 = por %p68, %p69
      %p72 = scmp.ne.s32.totalorder %s57, %s71
      %p73 = scmp.eq.s32.totalorder %s26, 0
      %p74 = por %p72, %p73
      %s76 = sadd.s32 %s75, 1
      %p79 = scmp.eq.s32.totalorder %s20, 1
      %p80 = scmp.ne.s32.totalorder %s75, %s77
      %p81 = scmp.eq.s32.totalorder %s20, 0
      %p82 = por %p80, %p81
      %p83 = scmp.ne.s32.totalorder %s75, %s77
      %p84 = scmp.eq.s32.totalorder %s25, 1
      %p85 = por %p83, %p84
      %p86 = scmp.ne.s32.totalorder %s77, %s78
      %p87 = scmp.eq.s32.totalorder %s25, 0
      %p88 = por %p86, %p87
      %p89 = scmp.ne.s32.totalorder %s77, %s78
      %p90 = scmp.eq.s32.totalorder %s26, 1
      %p91 = por %p89, %p90
      %p93 = scmp.ne.s32.totalorder %s78, %s92
      %p94 = scmp.eq.s32.totalorder %s26, 0
      %p95 = por %p93, %p94
      %s97 = sadd.s32 %s96, 1
      %p100 = scmp.eq.s32.totalorder %s20, 1
      %p101 = scmp.ne.s32.totalorder %s96, %s98
      %p102 = scmp.eq.s32.totalorder %s20, 0
      %p103 = por %p101, %p102
      %p104 = scmp.ne.s32.totalorder %s96, %s98
      %p105 = scmp.eq.s32.totalorder %s25, 1
      %p106 = por %p104, %p105
      %p107 = scmp.ne.s32.totalorder %s98, %s99
      %p108 = scmp.eq.s32.totalorder %s25, 0
      %p109 = por %p107, %p108
      %p110 = scmp.ne.s32.totalorder %s98, %s99
      %p111 = scmp.eq.s32.totalorder %s26, 1
      %p112 = por %p110, %p111
      %p114 = scmp.ne.s32.totalorder %s99, %s113
      %p115 = scmp.eq.s32.totalorder %s26, 0
      %p116 = por %p114, %p115
      %s118 = sadd.s32 %s117, 1
      %p121 = scmp.eq.s32.totalorder %s20, 1
      %p122 = scmp.ne.s32.totalorder %s117, %s119
      %p123 = scmp.eq.s32.totalorder %s20, 0
      %p124 = por %p122, %p123
      %p125 = scmp.ne.s32.totalorder %s117, %s119
      %p126 = scmp.eq.s32.totalorder %s25, 1
      %p127 = por %p125, %p126
      %p128 = scmp.ne.s32.totalorder %s119, %s120
      %p129 = scmp.eq.s32.totalorder %s25, 0
      %p130 = por %p128, %p129
      %p131 = scmp.ne.s32.totalorder %s119, %s120
      %p132 = scmp.eq.s32.totalorder %s26, 1
      %p133 = por %p131, %p132
      %p135 = scmp.ne.s32.totalorder %s120, %s134
      %p136 = scmp.eq.s32.totalorder %s26, 0
      %p137 = por %p135, %p136
      %s139 = sadd.s32 %s138, 1
      %p142 = scmp.eq.s32.totalorder %s20, 1
      %p143 = scmp.ne.s32.totalorder %s138, %s140
      %p144 = scmp.eq.s32.totalorder %s20, 0
      %p145 = por %p143, %p144
      %p146 = scmp.ne.s32.totalorder %s138, %s140
      %p147 = scmp.eq.s32.totalorder %s25, 1
      %p148 = por %p146, %p147
      %p149 = scmp.ne.s32.totalorder %s140, %s141
      %p150 = scmp.eq.s32.totalorder %s25, 0
      %p151 = por %p149, %p150
      %p152 = scmp.ne.s32.totalorder %s140, %s141
      %p153 = scmp.eq.s32.totalorder %s26, 1
      %p154 = por %p152, %p153
      %p156 = scmp.ne.s32.totalorder %s141, %s155
      %p157 = scmp.eq.s32.totalorder %s26, 0
      %p158 = por %p156, %p157
      %s160 = sadd.s32 %s159, 1
      %p163 = scmp.eq.s32.totalorder %s20, 1
      %p164 = scmp.ne.s32.totalorder %s159, %s161
      %p165 = scmp.eq.s32.totalorder %s20, 0
      %p166 = por %p164, %p165
      %p167 = scmp.ne.s32.totalorder %s159, %s161
      %p168 = scmp.eq.s32.totalorder %s25, 1
      %p169 = por %p167, %p168
      %p170 = scmp.ne.s32.totalorder %s161, %s162
      %p171 = scmp.eq.s32.totalorder %s25, 0
      %p172 = por %p170, %p171
      %p173 = scmp.ne.s32.totalorder %s161, %s162
      %p174 = scmp.eq.s32.totalorder %s26, 1
      %p175 = por %p173, %p174
      %p177 = scmp.ne.s32.totalorder %s162, %s176
      %p178 = scmp.eq.s32.totalorder %s26, 0
      %p179 = por %p177, %p178
      %s181 = sadd.s32 %s180, 1
      %p184 = scmp.eq.s32.totalorder %s20, 1
      %p185 = scmp.ne.s32.totalorder %s180, %s182
      %p186 = scmp.eq.s32.totalorder %s20, 0
      %p187 = por %p185, %p186
      %p188 = scmp.ne.s32.totalorder %s180, %s182
      %p189 = scmp.eq.s32.totalorder %s25, 1
      %p190 = por %p188, %p189
      %p191 = scmp.ne.s32.totalorder %s182, %s183
      %p192 = scmp.eq.s32.totalorder %s25, 0
      %p193 = por %p191, %p192
      %p194 = scmp.ne.s32.totalorder %s182, %s183
      %p195 = scmp.eq.s32.totalorder %s26, 1
      %p196 = por %p194, %p195
      %p198 = scmp.ne.s32.totalorder %s183, %s197
      %p199 = scmp.eq.s32.totalorder %s26, 0
      %p200 = por %p198, %p199
      %s202 = sadd.s32 %s201, 1
      %p205 = scmp.eq.s32.totalorder %s20, 1
      %p206 = scmp.ne.s32.totalorder %s201, %s203
      %p207 = scmp.eq.s32.totalorder %s20, 0
      %p208 = por %p206, %p207
      %p209 = scmp.ne.s32.totalorder %s201, %s203
      %p210 = scmp.eq.s32.totalorder %s25, 1
      %p211 = por %p209, %p210
      %p212 = scmp.ne.s32.totalorder %s203, %s204
      %p213 = scmp.eq.s32.totalorder %s25, 0
      %p214 = por %p212, %p213
      %p215 = scmp.ne.s32.totalorder %s203, %s204
      %p216 = scmp.eq.s32.totalorder %s26, 1
      %p217 = por %p215, %p216
      %p219 = scmp.ne.s32.totalorder %s204, %s218
      %p220 = scmp.eq.s32.totalorder %s26, 0
      %p221 = por %p219, %p220
      %s223 = sadd.s32 %s222, 1
      %p226 = scmp.eq.s32.totalorder %s20, 1
      %p227 = scmp.ne.s32.totalorder %s222, %s224
      %p228 = scmp.eq.s32.totalorder %s20, 0
      %p229 = por %p227, %p228
      %p230 = scmp.ne.s32.totalorder %s222, %s224
      %p231 = scmp.eq.s32.totalorder %s25, 1
      %p232 = por %p230, %p231
      %p233 = scmp.ne.s32.totalorder %s224, %s225
      %p234 = scmp.eq.s32.totalorder %s25, 0
      %p235 = por %p233, %p234
      %p236 = scmp.ne.s32.totalorder %s224, %s225
      %p237 = scmp.eq.s32.totalorder %s26, 1
      %p238 = por %p236, %p237
      %p240 = scmp.ne.s32.totalorder %s225, %s239
      %p241 = scmp.eq.s32.totalorder %s26, 0
      %p242 = por %p240, %p241
      %s244 = sadd.s32 %s243, 1
      %p247 = scmp.eq.s32.totalorder %s20, 1
      %p248 = scmp.ne.s32.totalorder %s243, %s245
      %p249 = scmp.eq.s32.totalorder %s20, 0
      %p250 = por %p248, %p249
      %p251 = scmp.ne.s32.totalorder %s243, %s245
      %p252 = scmp.eq.s32.totalorder %s25, 1
      %p253 = por %p251, %p252
      %p254 = scmp.ne.s32.totalorder %s245, %s246
      %p255 = scmp.eq.s32.totalorder %s25, 0
      %p256 = por %p254, %p255
      %p257 = scmp.ne.s32.totalorder %s245, %s246
      %p258 = scmp.eq.s32.totalorder %s26, 1
      %p259 = por %p257, %p258
      %p261 = scmp.ne.s32.totalorder %s246, %s260
      %p262 = scmp.eq.s32.totalorder %s26, 0
      %p263 = por %p261, %p262
      %s264 = ssub.s32 %s20, %s27
      %p265 = scmp.eq.s32.totalorder %s264, 0
      %s267 = sadd.s32 %s266, 1
      %s268 = scalar_select %p265, %s266, %s267
      %p271 = pneg %p265
      %p272 = scmp.eq.s32.totalorder %s20, 1
      %p273 = por %p271, %p272
      %p274 = scmp.ne.s32.totalorder %s266, %s269
      %p275 = scmp.eq.s32.totalorder %s20, 0
      %p276 = por %p274, %p275
      %p277 = scmp.ne.s32.totalorder %s266, %s269
      %p278 = scmp.eq.s32.totalorder %s25, 1
      %p279 = por %p277, %p278
      %p280 = scmp.ne.s32.totalorder %s269, %s270
      %p281 = scmp.eq.s32.totalorder %s25, 0
      %p282 = por %p280, %p281
      %p283 = scmp.ne.s32.totalorder %s269, %s270
      %p284 = scmp.eq.s32.totalorder %s26, 1
      %p285 = por %p283, %p284
      %p287 = scmp.ne.s32.totalorder %s270, %s286
      %p288 = scmp.eq.s32.totalorder %s26, 0
      %p289 = por %p287, %p288
      %p290 = scmp.le.s32.totalorder 1, %s20
      %p291 = scmp.lt.s32.totalorder %s20, 3
      %p292 = pnand %p290, %p291
      %p293 = pneg %p292
      // Predicated region
      $region9: #{trend_block_forward.1} parent=5 // pred_check
        _
      $region10: #{trend_block_forward.1} parent=5 // pred_check_branch
        %295 = sbr.rel (%p292) target = $region12
      $region11: #{trend_block_forward.1} parent=5 // pred_region
        %s296 = ssub.s32 %s20, 1
        // Predicated region
        $region13: #{trend_block_forward.1} parent=11 // pred_check
          %p297 = pneg %p67
        $region14: #{trend_block_forward.1} parent=11 // pred_check_branch
          %299 = sbr.rel (%p297) target = $region16
        $region15: #{trend_block_forward.1} parent=11 // pred_region
          _
        $region16: #{trend_block_forward.1} parent=11 // pred_fallthru
          _
        // Predicated region
        $region17: #{trend_block_forward.1} parent=11 // pred_check
          %p300 = pneg %p88
        $region18: #{trend_block_forward.1} parent=11 // pred_check_branch
          %302 = sbr.rel (%p300) target = $region20
        $region19: #{trend_block_forward.1} parent=11 // pred_region
          _
        $region20: #{trend_block_forward.1} parent=11 // pred_fallthru
          _
        // Predicated region
        $region21: #{trend_block_forward.1} parent=11 // pred_check
          %p303 = pneg %p109
        $region22: #{trend_block_forward.1} parent=11 // pred_check_branch
          %305 = sbr.rel (%p303) target = $region24
        $region23: #{trend_block_forward.1} parent=11 // pred_region
          _
        $region24: #{trend_block_forward.1} parent=11 // pred_fallthru
          _
        // Predicated region
        $region25: #{trend_block_forward.1} parent=11 // pred_check
          %p306 = pneg %p130
        $region26: #{trend_block_forward.1} parent=11 // pred_check_branch
          %308 = sbr.rel (%p306) target = $region28
        $region27: #{trend_block_forward.1} parent=11 // pred_region
          _
        $region28: #{trend_block_forward.1} parent=11 // pred_fallthru
          _
        // Predicated region
        $region29: #{trend_block_forward.1} parent=11 // pred_check
          %p309 = pneg %p151
        $region30: #{trend_block_forward.1} parent=11 // pred_check_branch
          %311 = sbr.rel (%p309) target = $region32
        $region31: #{trend_block_forward.1} parent=11 // pred_region
          _
        $region32: #{trend_block_forward.1} parent=11 // pred_fallthru
          _
        // Predicated region
        $region33: #{trend_block_forward.1} parent=11 // pred_check
          %p312 = pneg %p172
        $region34: #{trend_block_forward.1} parent=11 // pred_check_branch
          %314 = sbr.rel (%p312) target = $region36
        $region35: #{trend_block_forward.1} parent=11 // pred_region
          _
        $region36: #{trend_block_forward.1} parent=11 // pred_fallthru
          _
        // Predicated region
        $region37: #{trend_block_forward.1} parent=11 // pred_check
          %p315 = pneg %p193
        $region38: #{trend_block_forward.1} parent=11 // pred_check_branch
          %317 = sbr.rel (%p315) target = $region40
        $region39: #{trend_block_forward.1} parent=11 // pred_region
          _
        $region40: #{trend_block_forward.1} parent=11 // pred_fallthru
          _
        // Predicated region
        $region41: #{trend_block_forward.1} parent=11 // pred_check
          %p318 = pneg %p214
        $region42: #{trend_block_forward.1} parent=11 // pred_check_branch
          %320 = sbr.rel (%p318) target = $region44
        $region43: #{trend_block_forward.1} parent=11 // pred_region
          _
        $region44: #{trend_block_forward.1} parent=11 // pred_fallthru
          _
        // Predicated region
        $region45: #{trend_block_forward.1} parent=11 // pred_check
          %p321 = pneg %p235
        $region46: #{trend_block_forward.1} parent=11 // pred_check_branch
          %323 = sbr.rel (%p321) target = $region48
        $region47: #{trend_block_forward.1} parent=11 // pred_region
          _
        $region48: #{trend_block_forward.1} parent=11 // pred_fallthru
          _
        // Predicated region
        $region49: #{trend_block_forward.1} parent=11 // pred_check
          %p324 = pneg %p256
        $region50: #{trend_block_forward.1} parent=11 // pred_check_branch
          %326 = sbr.rel (%p324) target = $region52
        $region51: #{trend_block_forward.1} parent=11 // pred_region
          _
        $region52: #{trend_block_forward.1} parent=11 // pred_fallthru
          _
      $region12: #{trend_block_forward.1} parent=5 // pred_fallthru
        _
      %p327 = scmp.lt.s32.totalorder %s20, 2
      // Predicated region
      $region53: #{trend_block_forward.1} parent=5 // pred_check
        %p328 = pneg %p327
      $region54: #{trend_block_forward.1} parent=5 // pred_check_branch
        %330 = sbr.rel (%p328) target = $region56
      $region55: #{trend_block_forward.1} parent=5 // pred_region
        // Predicated region
        $region57: #{trend_block_forward.1} parent=55 // pred_check
          %p331 = pneg %p40
        $region58: #{trend_block_forward.1} parent=55 // pred_check_branch
          %333 = sbr.rel (%p331) target = $region60
        $region59: #{trend_block_forward.1} parent=55 // pred_region
          %s334 = smul.u32 4, %s20
          %p335 = scmp.lt.s32.totalorder %s334, 7
          %s336 = scalar_select %p335, %s334, 7
          %s337 = smul.addr %s336, 4
          %s338 = smul.addr %s337, 8
          %s339 = scalar_lea.vmem %s0, %s338
          %s340 = smul.u32 4, %s20
        $region60: #{trend_block_forward.1} parent=55 // pred_fallthru
          _
      $region56: #{trend_block_forward.1} parent=5 // pred_fallthru
        _
      %p341 = scmp.le.s32.totalorder 1, %s20
      %p342 = scmp.lt.s32.totalorder %s20, 3
      %p343 = pnand %p341, %p342
      %p344 = pneg %p343
      // Predicated region
      $region61: #{trend_block_forward.1} parent=5 // pred_check
        _
      $region62: #{trend_block_forward.1} parent=5 // pred_check_branch
        %346 = sbr.rel (%p343) target = $region64
      $region63: #{trend_block_forward.1} parent=5 // pred_region
        %s347 = ssub.s32 %s20, 1
        %s348 = smul.u32 4, %s25
        %p349 = scmp.lt.s32.totalorder %s348, 7
        %s350 = scalar_select %p349, %s348, 7
        %s351 = smul.addr %s350, 4
        %s352 = smul.addr %s351, 8
        %s353 = scalar_lea.vmem %s0, %s352
        %p354 = pneg %p46
        %p355 = pneg %p43
        %p356 = pneg %p67
        %p357 = pneg %p64
        %p358 = pneg %p88
        %p359 = pneg %p85
        %p360 = pneg %p109
        %p361 = pneg %p106
        %p362 = pneg %p130
        %p363 = pneg %p127
        %p364 = pneg %p151
        %p365 = pneg %p148
        %p366 = pneg %p172
        %p367 = pneg %p169
        %p368 = pneg %p193
        %p369 = pneg %p190
        %p370 = pneg %p214
        %p371 = pneg %p211
        %p372 = pneg %p235
        %p373 = pneg %p232
        %p374 = pneg %p256
        %p375 = pneg %p253
        %p376 = pneg %p282
        %p377 = pneg %p279
        %s378 = sand.u32 %s269, 1
        %s379 = scalar_lea.sflag [#allocation3], %s378
        %s380 = sand.u32 %s269, 1
        %s381 = smul.addr %s380, 128
        %s382 = scalar_lea.vmem [#allocation2], %s381
        %s383 = smul.u32 4, %s25
        %p384 = scmp.lt.s32.totalorder %s383, 7
        %s385 = scalar_select %p384, %s383, 7
        %s386 = smul.addr %s385, 4
        %s387 = smul.addr %s386, 8
        %s388 = scalar_lea.vmem %s0, %s387
        %s389 = smul.u32 4, %s25
        %s390 = smul.u32 4, %s25
        %v391 = vld [vmem:[%s388] sm:$0xff]
        %v392 = vld [vmem:[%s388 + $0x8] sm:$0xff]
        %v393 = vld [vmem:[%s388 + $0x10] sm:$0xff]
        %v394 = vld [vmem:[%s388 + $0x18] sm:$0xff]
        %v395 = vld [vmem:[%s388 + $0x20] sm:$0xff]
        %v396 = vld [vmem:[%s388 + $0x28] sm:$0xff]
        %v397 = vld [vmem:[%s388 + $0x30] sm:$0xff]
        %v398 = vld [vmem:[%s388 + $0x38] sm:$0xff]
        %v399 = vld [vmem:[%s388 + $0x40] sm:$0xff]
        %v400 = vld [vmem:[%s388 + $0x48] sm:$0xff]
        %v401 = vld [vmem:[%s388 + $0x50] sm:$0xff]
        %v402 = vld [vmem:[%s388 + $0x58] sm:$0xff]
        %v403 = vld [vmem:[%s388 + $0x60] sm:$0xff]
        %v404 = vld [vmem:[%s388 + $0x68] sm:$0xff]
        %v405 = vld [vmem:[%s388 + $0x70] sm:$0xff]
        %v406 = vld [vmem:[%s388 + $0x78] sm:$0xff]
        %407 = vadd.xlane.f32.xlu0 %v391
        %v408 = vpop.xlane.xlu0 %407
        %409 = vadd.xlane.f32.xlu0 %v392
        %v410 = vpop.xlane.xlu0 %409
        %411 = vadd.xlane.f32.xlu0 %v393
        %v412 = vpop.xlane.xlu0 %411
        %413 = vadd.xlane.f32.xlu0 %v394
        %v414 = vpop.xlane.xlu0 %413
        %415 = vadd.xlane.f32.xlu0 %v395
        %v416 = vpop.xlane.xlu0 %415
        %417 = vadd.xlane.f32.xlu0 %v396
        %v418 = vpop.xlane.xlu0 %417
        %419 = vadd.xlane.f32.xlu0 %v397
        %v420 = vpop.xlane.xlu0 %419
        %421 = vadd.xlane.f32.xlu0 %v398
        %v422 = vpop.xlane.xlu0 %421
        %423 = vadd.xlane.f32.xlu0 %v399
        %v424 = vpop.xlane.xlu0 %423
        %425 = vadd.xlane.f32.xlu0 %v400
        %v426 = vpop.xlane.xlu0 %425
        %427 = vadd.xlane.f32.xlu0 %v401
        %v428 = vpop.xlane.xlu0 %427
        %429 = vadd.xlane.f32.xlu0 %v402
        %v430 = vpop.xlane.xlu0 %429
        %431 = vadd.xlane.f32.xlu0 %v403
        %v432 = vpop.xlane.xlu0 %431
        %433 = vadd.xlane.f32.xlu0 %v404
        %v434 = vpop.xlane.xlu0 %433
        %435 = vadd.xlane.f32.xlu0 %v405
        %v436 = vpop.xlane.xlu0 %435
        %437 = vadd.xlane.f32.xlu0 %v406
        %v438 = vpop.xlane.xlu0 %437
        %v439 = vrcp.pop 128.0
        %v440 = vmul.f32 %v408, %v439
        %v441 = vmul.f32 %v410, %v439
        %v442 = vmul.f32 %v412, %v439
        %v443 = vmul.f32 %v414, %v439
        %v444 = vmul.f32 %v416, %v439
        %v445 = vmul.f32 %v418, %v439
        %v446 = vmul.f32 %v420, %v439
        %v447 = vmul.f32 %v422, %v439
        %v448 = vmul.f32 %v424, %v439
        %v449 = vmul.f32 %v426, %v439
        %v450 = vmul.f32 %v428, %v439
        %v451 = vmul.f32 %v430, %v439
        %v452 = vmul.f32 %v432, %v439
        %v453 = vmul.f32 %v434, %v439
        %v454 = vmul.f32 %v436, %v439
        %v455 = vmul.f32 %v438, %v439
        %v456 = vsub.f32 %v391, %v440
        %v457 = vsub.f32 %v392, %v441
        %v458 = vsub.f32 %v393, %v442
        %v459 = vsub.f32 %v394, %v443
        %v460 = vsub.f32 %v395, %v444
        %v461 = vsub.f32 %v396, %v445
        %v462 = vsub.f32 %v397, %v446
        %v463 = vsub.f32 %v398, %v447
        %v464 = vsub.f32 %v399, %v448
        %v465 = vsub.f32 %v400, %v449
        %v466 = vsub.f32 %v401, %v450
        %v467 = vsub.f32 %v402, %v451
        %v468 = vsub.f32 %v403, %v452
        %v469 = vsub.f32 %v404, %v453
        %v470 = vsub.f32 %v405, %v454
        %v471 = vsub.f32 %v406, %v455
        %v472 = vmul.f32 %v456, %v456
        %v473 = vmul.f32 %v457, %v457
        %v474 = vmul.f32 %v458, %v458
        %v475 = vmul.f32 %v459, %v459
        %v476 = vmul.f32 %v460, %v460
        %v477 = vmul.f32 %v461, %v461
        %v478 = vmul.f32 %v462, %v462
        %v479 = vmul.f32 %v463, %v463
        %v480 = vmul.f32 %v464, %v464
        %v481 = vmul.f32 %v465, %v465
        %v482 = vmul.f32 %v466, %v466
        %v483 = vmul.f32 %v467, %v467
        %v484 = vmul.f32 %v468, %v468
        %v485 = vmul.f32 %v469, %v469
        %v486 = vmul.f32 %v470, %v470
        %v487 = vmul.f32 %v471, %v471
        %488 = vadd.xlane.f32.xlu0 %v472
        %v489 = vpop.xlane.xlu0 %488
        %490 = vadd.xlane.f32.xlu0 %v473
        %v491 = vpop.xlane.xlu0 %490
        %492 = vadd.xlane.f32.xlu0 %v474
        %v493 = vpop.xlane.xlu0 %492
        %494 = vadd.xlane.f32.xlu0 %v475
        %v495 = vpop.xlane.xlu0 %494
        %496 = vadd.xlane.f32.xlu0 %v476
        %v497 = vpop.xlane.xlu0 %496
        %498 = vadd.xlane.f32.xlu0 %v477
        %v499 = vpop.xlane.xlu0 %498
        %500 = vadd.xlane.f32.xlu0 %v478
        %v501 = vpop.xlane.xlu0 %500
        %502 = vadd.xlane.f32.xlu0 %v479
        %v503 = vpop.xlane.xlu0 %502
        %504 = vadd.xlane.f32.xlu0 %v480
        %v505 = vpop.xlane.xlu0 %504
        %506 = vadd.xlane.f32.xlu0 %v481
        %v507 = vpop.xlane.xlu0 %506
        %508 = vadd.xlane.f32.xlu0 %v482
        %v509 = vpop.xlane.xlu0 %508
        %510 = vadd.xlane.f32.xlu0 %v483
        %v511 = vpop.xlane.xlu0 %510
        %512 = vadd.xlane.f32.xlu0 %v484
        %v513 = vpop.xlane.xlu0 %512
        %514 = vadd.xlane.f32.xlu0 %v485
        %v515 = vpop.xlane.xlu0 %514
        %516 = vadd.xlane.f32.xlu0 %v486
        %v517 = vpop.xlane.xlu0 %516
        %518 = vadd.xlane.f32.xlu0 %v487
        %v519 = vpop.xlane.xlu0 %518
        %v520 = vmul.f32 %v489, %v439
        %v521 = vmul.f32 %v491, %v439
        %v522 = vmul.f32 %v493, %v439
        %v523 = vmul.f32 %v495, %v439
        %v524 = vmul.f32 %v497, %v439
        %v525 = vmul.f32 %v499, %v439
        %v526 = vmul.f32 %v501, %v439
        %v527 = vmul.f32 %v503, %v439
        %v528 = vmul.f32 %v505, %v439
        %v529 = vmul.f32 %v507, %v439
        %v530 = vmul.f32 %v509, %v439
        %v531 = vmul.f32 %v511, %v439
        %v532 = vmul.f32 %v513, %v439
        %v533 = vmul.f32 %v515, %v439
        %v534 = vmul.f32 %v517, %v439
        %v535 = vmul.f32 %v519, %v439
        %v536 = vadd.f32 %v520, 1e-05
        %v537 = vadd.f32 %v521, 1e-05
        %v538 = vadd.f32 %v522, 1e-05
        %v539 = vadd.f32 %v523, 1e-05
        %v540 = vadd.f32 %v524, 1e-05
        %v541 = vadd.f32 %v525, 1e-05
        %v542 = vadd.f32 %v526, 1e-05
        %v543 = vadd.f32 %v527, 1e-05
        %v544 = vadd.f32 %v528, 1e-05
        %v545 = vadd.f32 %v529, 1e-05
        %v546 = vadd.f32 %v530, 1e-05
        %v547 = vadd.f32 %v531, 1e-05
        %v548 = vadd.f32 %v532, 1e-05
        %v549 = vadd.f32 %v533, 1e-05
        %v550 = vadd.f32 %v534, 1e-05
        %v551 = vadd.f32 %v535, 1e-05
        %v552 = vrsqrt.pop %v536
        %v553 = vmul.f32 %v536, %v552
        %vm554 = vcmp.eq.f32.partialorder %v536, inf
        %v555 = vsel %vm554, %v536, %v553
        %vm556 = vcmp.eq.f32.partialorder %v536, 0.0
        %v557 = vand.u32 %v536, 2147483648
        %v558 = vsel %vm556, %v557, %v555
        %v559 = vrsqrt.pop %v537
        %v560 = vmul.f32 %v537, %v559
        %vm561 = vcmp.eq.f32.partialorder %v537, inf
        %v562 = vsel %vm561, %v537, %v560
        %vm563 = vcmp.eq.f32.partialorder %v537, 0.0
        %v564 = vand.u32 %v537, 2147483648
        %v565 = vsel %vm563, %v564, %v562
        %v566 = vrsqrt.pop %v538
        %v567 = vmul.f32 %v538, %v566
        %vm568 = vcmp.eq.f32.partialorder %v538, inf
        %v569 = vsel %vm568, %v538, %v567
        %vm570 = vcmp.eq.f32.partialorder %v538, 0.0
        %v571 = vand.u32 %v538, 2147483648
        %v572 = vsel %vm570, %v571, %v569
        %v573 = vrsqrt.pop %v539
        %v574 = vmul.f32 %v539, %v573
        %vm575 = vcmp.eq.f32.partialorder %v539, inf
        %v576 = vsel %vm575, %v539, %v574
        %vm577 = vcmp.eq.f32.partialorder %v539, 0.0
        %v578 = vand.u32 %v539, 2147483648
        %v579 = vsel %vm577, %v578, %v576
        %v580 = vrsqrt.pop %v540
        %v581 = vmul.f32 %v540, %v580
        %vm582 = vcmp.eq.f32.partialorder %v540, inf
        %v583 = vsel %vm582, %v540, %v581
        %vm584 = vcmp.eq.f32.partialorder %v540, 0.0
        %v585 = vand.u32 %v540, 2147483648
        %v586 = vsel %vm584, %v585, %v583
        %v587 = vrsqrt.pop %v541
        %v588 = vmul.f32 %v541, %v587
        %vm589 = vcmp.eq.f32.partialorder %v541, inf
        %v590 = vsel %vm589, %v541, %v588
        %vm591 = vcmp.eq.f32.partialorder %v541, 0.0
        %v592 = vand.u32 %v541, 2147483648
        %v593 = vsel %vm591, %v592, %v590
        %v594 = vrsqrt.pop %v542
        %v595 = vmul.f32 %v542, %v594
        %vm596 = vcmp.eq.f32.partialorder %v542, inf
        %v597 = vsel %vm596, %v542, %v595
        %vm598 = vcmp.eq.f32.partialorder %v542, 0.0
        %v599 = vand.u32 %v542, 2147483648
        %v600 = vsel %vm598, %v599, %v597
        %v601 = vrsqrt.pop %v543
        %v602 = vmul.f32 %v543, %v601
        %vm603 = vcmp.eq.f32.partialorder %v543, inf
        %v604 = vsel %vm603, %v543, %v602
        %vm605 = vcmp.eq.f32.partialorder %v543, 0.0
        %v606 = vand.u32 %v543, 2147483648
        %v607 = vsel %vm605, %v606, %v604
        %v608 = vrsqrt.pop %v544
        %v609 = vmul.f32 %v544, %v608
        %vm610 = vcmp.eq.f32.partialorder %v544, inf
        %v611 = vsel %vm610, %v544, %v609
        %vm612 = vcmp.eq.f32.partialorder %v544, 0.0
        %v613 = vand.u32 %v544, 2147483648
        %v614 = vsel %vm612, %v613, %v611
        %v615 = vrsqrt.pop %v545
        %v616 = vmul.f32 %v545, %v615
        %vm617 = vcmp.eq.f32.partialorder %v545, inf
        %v618 = vsel %vm617, %v545, %v616
        %vm619 = vcmp.eq.f32.partialorder %v545, 0.0
        %v620 = vand.u32 %v545, 2147483648
        %v621 = vsel %vm619, %v620, %v618
        %v622 = vrsqrt.pop %v546
        %v623 = vmul.f32 %v546, %v622
        %vm624 = vcmp.eq.f32.partialorder %v546, inf
        %v625 = vsel %vm624, %v546, %v623
        %vm626 = vcmp.eq.f32.partialorder %v546, 0.0
        %v627 = vand.u32 %v546, 2147483648
        %v628 = vsel %vm626, %v627, %v625
        %v629 = vrsqrt.pop %v547
        %v630 = vmul.f32 %v547, %v629
        %vm631 = vcmp.eq.f32.partialorder %v547, inf
        %v632 = vsel %vm631, %v547, %v630
        %vm633 = vcmp.eq.f32.partialorder %v547, 0.0
        %v634 = vand.u32 %v547, 2147483648
        %v635 = vsel %vm633, %v634, %v632
        %v636 = vrsqrt.pop %v548
        %v637 = vmul.f32 %v548, %v636
        %vm638 = vcmp.eq.f32.partialorder %v548, inf
        %v639 = vsel %vm638, %v548, %v637
        %vm640 = vcmp.eq.f32.partialorder %v548, 0.0
        %v641 = vand.u32 %v548, 2147483648
        %v642 = vsel %vm640, %v641, %v639
        %v643 = vrsqrt.pop %v549
        %v644 = vmul.f32 %v549, %v643
        %vm645 = vcmp.eq.f32.partialorder %v549, inf
        %v646 = vsel %vm645, %v549, %v644
        %vm647 = vcmp.eq.f32.partialorder %v549, 0.0
        %v648 = vand.u32 %v549, 2147483648
        %v649 = vsel %vm647, %v648, %v646
        %v650 = vrsqrt.pop %v550
        %v651 = vmul.f32 %v550, %v650
        %vm652 = vcmp.eq.f32.partialorder %v550, inf
        %v653 = vsel %vm652, %v550, %v651
        %vm654 = vcmp.eq.f32.partialorder %v550, 0.0
        %v655 = vand.u32 %v550, 2147483648
        %v656 = vsel %vm654, %v655, %v653
        %v657 = vrsqrt.pop %v551
        %v658 = vmul.f32 %v551, %v657
        %vm659 = vcmp.eq.f32.partialorder %v551, inf
        %v660 = vsel %vm659, %v551, %v658
        %vm661 = vcmp.eq.f32.partialorder %v551, 0.0
        %v662 = vand.u32 %v551, 2147483648
        %v663 = vsel %vm661, %v662, %v660
        %v664 = vrsqrt.pop %v536
        %v665 = vrsqrt.pop %v537
        %v666 = vrsqrt.pop %v538
        %v667 = vrsqrt.pop %v539
        %v668 = vrsqrt.pop %v540
        %v669 = vrsqrt.pop %v541
        %v670 = vrsqrt.pop %v542
        %v671 = vrsqrt.pop %v543
        %v672 = vrsqrt.pop %v544
        %v673 = vrsqrt.pop %v545
        %v674 = vrsqrt.pop %v546
        %v675 = vrsqrt.pop %v547
        %v676 = vrsqrt.pop %v548
        %v677 = vrsqrt.pop %v549
        %v678 = vrsqrt.pop %v550
        %v679 = vrsqrt.pop %v551
        %v680 = vmul.f32 %v456, %v664
        %v681 = vmul.f32 %v457, %v665
        %v682 = vmul.f32 %v458, %v666
        %v683 = vmul.f32 %v459, %v667
        %v684 = vmul.f32 %v460, %v668
        %v685 = vmul.f32 %v461, %v669
        %v686 = vmul.f32 %v462, %v670
        %v687 = vmul.f32 %v463, %v671
        %v688 = vmul.f32 %v464, %v672
        %v689 = vmul.f32 %v465, %v673
        %v690 = vmul.f32 %v466, %v674
        %v691 = vmul.f32 %v467, %v675
        %v692 = vmul.f32 %v468, %v676
        %v693 = vmul.f32 %v469, %v677
        %v694 = vmul.f32 %v470, %v678
        %v695 = vmul.f32 %v471, %v679
        %v696 = vld [vmem:[%s1] sm:$0xff]
        %v697 = vld [vmem:[%s1 + $0x8] sm:$0xff]
        %v698 = vld [vmem:[%s1 + $0x10] sm:$0xff]
        %v699 = vld [vmem:[%s1 + $0x18] sm:$0xff]
        %v700 = vld [vmem:[%s2] sm:$0xff]
        %v701 = vld [vmem:[%s2 + $0x8] sm:$0xff]
        %v702 = vld [vmem:[%s2 + $0x10] sm:$0xff]
        %v703 = vld [vmem:[%s2 + $0x18] sm:$0xff]
        %705 = vset.pattern.permute.xlu0 0
        %706 = vperm.xlu0 %705, %v696
        %v707 = vpop.permute.xlu0 %706
        %710 = vset.pattern.permute.xlu0 0
        %711 = vperm.xlu0 %710, %v697
        %v712 = vpop.permute.xlu0 %711
        %715 = vset.pattern.permute.xlu0 0
        %716 = vperm.xlu0 %715, %v698
        %v717 = vpop.permute.xlu0 %716
        %720 = vset.pattern.permute.xlu0 0
        %721 = vperm.xlu0 %720, %v699
        %v722 = vpop.permute.xlu0 %721
        %v724 = vmul.f32 %v680, %v707
        %v725 = vmul.f32 %v681, %v712
        %v726 = vmul.f32 %v682, %v717
        %v727 = vmul.f32 %v683, %v722
        %v728 = vmul.f32 %v684, %v707
        %v729 = vmul.f32 %v685, %v712
        %v730 = vmul.f32 %v686, %v717
        %v731 = vmul.f32 %v687, %v722
        %v732 = vmul.f32 %v688, %v707
        %v733 = vmul.f32 %v689, %v712
        %v734 = vmul.f32 %v690, %v717
        %v735 = vmul.f32 %v691, %v722
        %v736 = vmul.f32 %v692, %v707
        %v737 = vmul.f32 %v693, %v712
        %v738 = vmul.f32 %v694, %v717
        %v739 = vmul.f32 %v695, %v722
        %741 = vset.pattern.permute.xlu0 0
        %742 = vperm.xlu0 %741, %v700
        %v743 = vpop.permute.xlu0 %742
        %746 = vset.pattern.permute.xlu0 0
        %747 = vperm.xlu0 %746, %v701
        %v748 = vpop.permute.xlu0 %747
        %751 = vset.pattern.permute.xlu0 0
        %752 = vperm.xlu0 %751, %v702
        %v753 = vpop.permute.xlu0 %752
        %756 = vset.pattern.permute.xlu0 0
        %757 = vperm.xlu0 %756, %v703
        %v758 = vpop.permute.xlu0 %757
        %v760 = vadd.f32 %v724, %v743
        %v761 = vadd.f32 %v725, %v748
        %v762 = vadd.f32 %v726, %v753
        %v763 = vadd.f32 %v727, %v758
        %v764 = vadd.f32 %v728, %v743
        %v765 = vadd.f32 %v729, %v748
        %v766 = vadd.f32 %v730, %v753
        %v767 = vadd.f32 %v731, %v758
        %v768 = vadd.f32 %v732, %v743
        %v769 = vadd.f32 %v733, %v748
        %v770 = vadd.f32 %v734, %v753
        %v771 = vadd.f32 %v735, %v758
        %v772 = vadd.f32 %v736, %v743
        %v773 = vadd.f32 %v737, %v748
        %v774 = vadd.f32 %v738, %v753
        %v775 = vadd.f32 %v739, %v758
        %v776 = vld [vmem:[%s3] sm:$0xff]
        %v777 = vld [vmem:[%s3 + $0x8] sm:$0xff]
        %v778 = vld [vmem:[%s3 + $0x10] sm:$0xff]
        %v779 = vld [vmem:[%s3 + $0x18] sm:$0xff]
        %v780 = vld [vmem:[%s3 + $0x20] sm:$0xff]
        %v781 = vld [vmem:[%s3 + $0x28] sm:$0xff]
        %v782 = vld [vmem:[%s3 + $0x30] sm:$0xff]
        %v783 = vld [vmem:[%s3 + $0x38] sm:$0xff]
        %v784 = vld [vmem:[%s3 + $0x40] sm:$0xff]
        %v785 = vld [vmem:[%s3 + $0x48] sm:$0xff]
        %v786 = vld [vmem:[%s3 + $0x50] sm:$0xff]
        %v787 = vld [vmem:[%s3 + $0x58] sm:$0xff]
        %v788 = vld [vmem:[%s3 + $0x60] sm:$0xff]
        %v789 = vld [vmem:[%s3 + $0x68] sm:$0xff]
        %v790 = vld [vmem:[%s3 + $0x70] sm:$0xff]
        %v791 = vld [vmem:[%s3 + $0x78] sm:$0xff]
        %v792 = vld [vmem:[%s4] sm:$0x1]
        %v794 = vlaneseq
        %v795 = vshrl.u32 %v794, 7
        %v796 = vsub.s32 0, %v795
        %v797 = vrot.slane %v792, %v796
        %799 = vmatprep.subr.mxu0 0.0
        %800 = vmatpush1.msra.mxu0 %v776
        %801 = vmatprep.subr.mxu0 0.0
        %802 = vmatpush1.msra.mxu0 %v777
        %803 = vmatprep.subr.mxu0 0.0
        %804 = vmatpush1.msra.mxu0 %v778
        %805 = vmatprep.subr.mxu0 0.0
        %806 = vmatpush1.msra.mxu0 %v779
        %807 = vmatprep.subr.mxu0 0.0
        %808 = vmatpush1.msra.mxu0 %v780
        %809 = vmatprep.subr.mxu0 0.0
        %810 = vmatpush1.msra.mxu0 %v781
        %811 = vmatprep.subr.mxu0 0.0
        %812 = vmatpush1.msra.mxu0 %v782
        %813 = vmatprep.subr.mxu0 0.0
        %814 = vmatpush1.msra.mxu0 %v783
        %815 = vmatprep.subr.mxu0 0.0
        %816 = vmatpush1.msra.mxu0 %v784
        %817 = vmatprep.subr.mxu0 0.0
        %818 = vmatpush1.msra.mxu0 %v785
        %819 = vmatprep.subr.mxu0 0.0
        %820 = vmatpush1.msra.mxu0 %v786
        %821 = vmatprep.subr.mxu0 0.0
        %822 = vmatpush1.msra.mxu0 %v787
        %823 = vmatprep.subr.mxu0 0.0
        %824 = vmatpush1.msra.mxu0 %v788
        %825 = vmatprep.subr.mxu0 0.0
        %826 = vmatpush1.msra.mxu0 %v789
        %827 = vmatprep.subr.mxu0 0.0
        %828 = vmatpush1.msra.mxu0 %v790
        %829 = vmatprep.subr.mxu0 0.0
        %830 = vmatpush1.msra.mxu0 %v791
        %831 = vmatprep.subr.mxu0 0.0
        %832 = vmatpush1.msra.mxu0 0.0
        %833 = vmatprep.subr.mxu0 0.0
        %834 = vmatpush1.msra.mxu0 0.0
        %835 = vmatprep.subr.mxu0 0.0
        %836 = vmatpush1.msra.mxu0 0.0
        %837 = vmatprep.subr.mxu0 0.0
        %838 = vmatpush1.msra.mxu0 0.0
        %839 = vmatprep.subr.mxu0 0.0
        %840 = vmatpush1.msra.mxu0 0.0
        %841 = vmatprep.subr.mxu0 0.0
        %842 = vmatpush1.msra.mxu0 0.0
        %843 = vmatprep.subr.mxu0 0.0
        %844 = vmatpush1.msra.mxu0 0.0
        %845 = vmatprep.subr.mxu0 0.0
        %846 = vmatpush1.msra.mxu0 0.0
        %847 = vmatprep.subr.mxu0 0.0
        %848 = vmatpush1.msra.mxu0 0.0
        %849 = vmatprep.subr.mxu0 0.0
        %850 = vmatpush1.msra.mxu0 0.0
        %851 = vmatprep.subr.mxu0 0.0
        %852 = vmatpush1.msra.mxu0 0.0
        %853 = vmatprep.subr.mxu0 0.0
        %854 = vmatpush1.msra.mxu0 0.0
        %855 = vmatprep.subr.mxu0 0.0
        %856 = vmatpush1.msra.mxu0 0.0
        %857 = vmatprep.subr.mxu0 0.0
        %858 = vmatpush1.msra.mxu0 0.0
        %859 = vmatprep.subr.mxu0 0.0
        %860 = vmatpush1.msra.mxu0 0.0
        %861 = vmatprep.subr.mxu0 0.0
        %862 = vmatpush1.msra.mxu0 0.0
        %863 = vmatprep.mubr.f32.mxu0 0.0
        %864 = vmatmul.mubr.f32.gmra.mrb[0].mxu0 %v760
        %v865 = vpop.f32.mrb[0].mxu0
        %v866 = vadd.f32 %v797, %v865
        %v867 = vpop.f32.mrb[0].mxu0
        %868 = vmatprep.mubr.f32.mxu0 0.0
        %869 = vmatmul.mubr.f32.gmra.mrb[0].mxu0 %v761
        %v870 = vpop.f32.mrb[0].mxu0
        %v871 = vadd.f32 %v797, %v870
        %v872 = vpop.f32.mrb[0].mxu0
        %873 = vmatprep.mubr.f32.mxu0 0.0
        %874 = vmatmul.mubr.f32.gmra.mrb[0].mxu0 %v762
        %v875 = vpop.f32.mrb[0].mxu0
        %v876 = vadd.f32 %v797, %v875
        %v877 = vpop.f32.mrb[0].mxu0
        %878 = vmatprep.mubr.f32.mxu0 0.0
        %879 = vmatmul.mubr.f32.gmra.mrb[0].mxu0 %v763
        %v880 = vpop.f32.mrb[0].mxu0
        %v881 = vadd.f32 %v797, %v880
        %v882 = vpop.f32.mrb[0].mxu0
        %883 = vmatprep.mubr.f32.mxu0 0.0
        %884 = vmatmul.mubr.f32.gmra.mrb[0].mxu0 %v764
        %v885 = vpop.f32.mrb[0].mxu0
        %v886 = vadd.f32 %v797, %v885
        %v887 = vpop.f32.mrb[0].mxu0
        %888 = vmatprep.mubr.f32.mxu0 0.0
        %889 = vmatmul.mubr.f32.gmra.mrb[0].mxu0 %v765
        %v890 = vpop.f32.mrb[0].mxu0
        %v891 = vadd.f32 %v797, %v890
        %v892 = vpop.f32.mrb[0].mxu0
        %893 = vmatprep.mubr.f32.mxu0 0.0
        %894 = vmatmul.mubr.f32.gmra.mrb[0].mxu0 %v766
        %v895 = vpop.f32.mrb[0].mxu0
        %v896 = vadd.f32 %v797, %v895
        %v897 = vpop.f32.mrb[0].mxu0
        %898 = vmatprep.mubr.f32.mxu0 0.0
        %899 = vmatmul.mubr.f32.gmra.mrb[0].mxu0 %v767
        %v900 = vpop.f32.mrb[0].mxu0
        %v901 = vadd.f32 %v797, %v900
        %v902 = vpop.f32.mrb[0].mxu0
        %903 = vmatprep.mubr.f32.mxu0 0.0
        %904 = vmatmul.mubr.f32.gmra.mrb[0].mxu0 %v768
        %v905 = vpop.f32.mrb[0].mxu0
        %v906 = vadd.f32 %v797, %v905
        %v907 = vpop.f32.mrb[0].mxu0
        %908 = vmatprep.mubr.f32.mxu0 0.0
        %909 = vmatmul.mubr.f32.gmra.mrb[0].mxu0 %v769
        %v910 = vpop.f32.mrb[0].mxu0
        %v911 = vadd.f32 %v797, %v910
        %v912 = vpop.f32.mrb[0].mxu0
        %913 = vmatprep.mubr.f32.mxu0 0.0
        %914 = vmatmul.mubr.f32.gmra.mrb[0].mxu0 %v770
        %v915 = vpop.f32.mrb[0].mxu0
        %v916 = vadd.f32 %v797, %v915
        %v917 = vpop.f32.mrb[0].mxu0
        %918 = vmatprep.mubr.f32.mxu0 0.0
        %919 = vmatmul.mubr.f32.gmra.mrb[0].mxu0 %v771
        %v920 = vpop.f32.mrb[0].mxu0
        %v921 = vadd.f32 %v797, %v920
        %v922 = vpop.f32.mrb[0].mxu0
        %923 = vmatprep.mubr.f32.mxu0 0.0
        %924 = vmatmul.mubr.f32.gmra.mrb[0].mxu0 %v772
        %v925 = vpop.f32.mrb[0].mxu0
        %v926 = vadd.f32 %v797, %v925
        %v927 = vpop.f32.mrb[0].mxu0
        %928 = vmatprep.mubr.f32.mxu0 0.0
        %929 = vmatmul.mubr.f32.gmra.mrb[0].mxu0 %v773
        %v930 = vpop.f32.mrb[0].mxu0
        %v931 = vadd.f32 %v797, %v930
        %v932 = vpop.f32.mrb[0].mxu0
        %933 = vmatprep.mubr.f32.mxu0 0.0
        %934 = vmatmul.mubr.f32.gmra.mrb[0].mxu0 %v774
        %v935 = vpop.f32.mrb[0].mxu0
        %v936 = vadd.f32 %v797, %v935
        %v937 = vpop.f32.mrb[0].mxu0
        %938 = vmatprep.mubr.f32.mxu0 0.0
        %939 = vmatmul.mubr.f32.gmra.mrb[0].mxu0 %v775
        %v940 = vpop.f32.mrb[0].mxu0
        %v941 = vadd.f32 %v797, %v940
        %v942 = vpop.f32.mrb[0].mxu0
        %943 = vdwg.mxu0
        %v944 = vmul.f32 %v866, %v866
        %v945 = vmul.f32 %v871, %v871
        %v946 = vmul.f32 %v876, %v876
        %v947 = vmul.f32 %v881, %v881
        %v948 = vmul.f32 %v886, %v886
        %v949 = vmul.f32 %v891, %v891
        %v950 = vmul.f32 %v896, %v896
        %v951 = vmul.f32 %v901, %v901
        %v952 = vmul.f32 %v906, %v906
        %v953 = vmul.f32 %v911, %v911
        %v954 = vmul.f32 %v916, %v916
        %v955 = vmul.f32 %v921, %v921
        %v956 = vmul.f32 %v926, %v926
        %v957 = vmul.f32 %v931, %v931
        %v958 = vmul.f32 %v936, %v936
        %v959 = vmul.f32 %v941, %v941
        %v960 = vmul.f32 %v866, %v944
        %v961 = vmul.f32 %v871, %v945
        %v962 = vmul.f32 %v876, %v946
        %v963 = vmul.f32 %v881, %v947
        %v964 = vmul.f32 %v886, %v948
        %v965 = vmul.f32 %v891, %v949
        %v966 = vmul.f32 %v896, %v950
        %v967 = vmul.f32 %v901, %v951
        %v968 = vmul.f32 %v906, %v952
        %v969 = vmul.f32 %v911, %v953
        %v970 = vmul.f32 %v916, %v954
        %v971 = vmul.f32 %v921, %v955
        %v972 = vmul.f32 %v926, %v956
        %v973 = vmul.f32 %v931, %v957
        %v974 = vmul.f32 %v936, %v958
        %v975 = vmul.f32 %v941, %v959
        %v976 = vmul.f32 %v960, 0.044715
        %v977 = vmul.f32 %v961, 0.044715
        %v978 = vmul.f32 %v962, 0.044715
        %v979 = vmul.f32 %v963, 0.044715
        %v980 = vmul.f32 %v964, 0.044715
        %v981 = vmul.f32 %v965, 0.044715
        %v982 = vmul.f32 %v966, 0.044715
        %v983 = vmul.f32 %v967, 0.044715
        %v984 = vmul.f32 %v968, 0.044715
        %v985 = vmul.f32 %v969, 0.044715
        %v986 = vmul.f32 %v970, 0.044715
        %v987 = vmul.f32 %v971, 0.044715
        %v988 = vmul.f32 %v972, 0.044715
        %v989 = vmul.f32 %v973, 0.044715
        %v990 = vmul.f32 %v974, 0.044715
        %v991 = vmul.f32 %v975, 0.044715
        %v992 = vadd.f32 %v866, %v976
        %v993 = vadd.f32 %v871, %v977
        %v994 = vadd.f32 %v876, %v978
        %v995 = vadd.f32 %v881, %v979
        %v996 = vadd.f32 %v886, %v980
        %v997 = vadd.f32 %v891, %v981
        %v998 = vadd.f32 %v896, %v982
        %v999 = vadd.f32 %v901, %v983
        %v1000 = vadd.f32 %v906, %v984
        %v1001 = vadd.f32 %v911, %v985
        %v1002 = vadd.f32 %v916, %v986
        %v1003 = vadd.f32 %v921, %v987
        %v1004 = vadd.f32 %v926, %v988
        %v1005 = vadd.f32 %v931, %v989
        %v1006 = vadd.f32 %v936, %v990
        %v1007 = vadd.f32 %v941, %v991
        %v1008 = vmul.f32 %v992, 0.7978846
        %v1009 = vmul.f32 %v993, 0.7978846
        %v1010 = vmul.f32 %v994, 0.7978846
        %v1011 = vmul.f32 %v995, 0.7978846
        %v1012 = vmul.f32 %v996, 0.7978846
        %v1013 = vmul.f32 %v997, 0.7978846
        %v1014 = vmul.f32 %v998, 0.7978846
        %v1015 = vmul.f32 %v999, 0.7978846
        %v1016 = vmul.f32 %v1000, 0.7978846
        %v1017 = vmul.f32 %v1001, 0.7978846
        %v1018 = vmul.f32 %v1002, 0.7978846
        %v1019 = vmul.f32 %v1003, 0.7978846
        %v1020 = vmul.f32 %v1004, 0.7978846
        %v1021 = vmul.f32 %v1005, 0.7978846
        %v1022 = vmul.f32 %v1006, 0.7978846
        %v1023 = vmul.f32 %v1007, 0.7978846
        %v1024 = vtanh.pop %v1008
        %v1025 = vtanh.pop %v1009
        %v1026 = vtanh.pop %v1010
        %v1027 = vtanh.pop %v1011
        %v1028 = vtanh.pop %v1012
        %v1029 = vtanh.pop %v1013
        %v1030 = vtanh.pop %v1014
        %v1031 = vtanh.pop %v1015
        %v1032 = vtanh.pop %v1016
        %v1033 = vtanh.pop %v1017
        %v1034 = vtanh.pop %v1018
        %v1035 = vtanh.pop %v1019
        %v1036 = vtanh.pop %v1020
        %v1037 = vtanh.pop %v1021
        %v1038 = vtanh.pop %v1022
        %v1039 = vtanh.pop %v1023
        %v1040 = vadd.f32 %v1024, 1.0
        %v1041 = vadd.f32 %v1025, 1.0
        %v1042 = vadd.f32 %v1026, 1.0
        %v1043 = vadd.f32 %v1027, 1.0
        %v1044 = vadd.f32 %v1028, 1.0
        %v1045 = vadd.f32 %v1029, 1.0
        %v1046 = vadd.f32 %v1030, 1.0
        %v1047 = vadd.f32 %v1031, 1.0
        %v1048 = vadd.f32 %v1032, 1.0
        %v1049 = vadd.f32 %v1033, 1.0
        %v1050 = vadd.f32 %v1034, 1.0
        %v1051 = vadd.f32 %v1035, 1.0
        %v1052 = vadd.f32 %v1036, 1.0
        %v1053 = vadd.f32 %v1037, 1.0
        %v1054 = vadd.f32 %v1038, 1.0
        %v1055 = vadd.f32 %v1039, 1.0
        %v1056 = vmul.f32 %v1040, 0.5
        %v1057 = vmul.f32 %v1041, 0.5
        %v1058 = vmul.f32 %v1042, 0.5
        %v1059 = vmul.f32 %v1043, 0.5
        %v1060 = vmul.f32 %v1044, 0.5
        %v1061 = vmul.f32 %v1045, 0.5
        %v1062 = vmul.f32 %v1046, 0.5
        %v1063 = vmul.f32 %v1047, 0.5
        %v1064 = vmul.f32 %v1048, 0.5
        %v1065 = vmul.f32 %v1049, 0.5
        %v1066 = vmul.f32 %v1050, 0.5
        %v1067 = vmul.f32 %v1051, 0.5
        %v1068 = vmul.f32 %v1052, 0.5
        %v1069 = vmul.f32 %v1053, 0.5
        %v1070 = vmul.f32 %v1054, 0.5
        %v1071 = vmul.f32 %v1055, 0.5
        %v1072 = vmul.f32 %v866, %v1056
        %v1073 = vmul.f32 %v871, %v1057
        %v1074 = vmul.f32 %v876, %v1058
        %v1075 = vmul.f32 %v881, %v1059
        %v1076 = vmul.f32 %v886, %v1060
        %v1077 = vmul.f32 %v891, %v1061
        %v1078 = vmul.f32 %v896, %v1062
        %v1079 = vmul.f32 %v901, %v1063
        %v1080 = vmul.f32 %v906, %v1064
        %v1081 = vmul.f32 %v911, %v1065
        %v1082 = vmul.f32 %v916, %v1066
        %v1083 = vmul.f32 %v921, %v1067
        %v1084 = vmul.f32 %v926, %v1068
        %v1085 = vmul.f32 %v931, %v1069
        %v1086 = vmul.f32 %v936, %v1070
        %v1087 = vmul.f32 %v941, %v1071
        %v1088 = vld [vmem:[%s5] sm:$0xff]
        %v1089 = vld [vmem:[%s5 + $0x8] sm:$0xff]
        %v1090 = vld [vmem:[%s5 + $0x10] sm:$0xff]
        %v1091 = vld [vmem:[%s5 + $0x18] sm:$0xff]
        %v1092 = vld [vmem:[%s6] sm:$0x1]
        %v1094 = vlaneseq
        %v1095 = vshrl.u32 %v1094, 7
        %v1096 = vsub.s32 0, %v1095
        %v1097 = vrot.slane %v1092, %v1096
        %vm1099 = vcmask 261120
        %v1101 = vsel %vm1099, %v1072, 0
        %v1104 = vsel %vm1099, %v1073, 0
        %v1107 = vsel %vm1099, %v1074, 0
        %v1110 = vsel %vm1099, %v1075, 0
        %v1113 = vsel %vm1099, %v1076, 0
        %v1116 = vsel %vm1099, %v1077, 0
        %v1119 = vsel %vm1099, %v1078, 0
        %v1122 = vsel %vm1099, %v1079, 0
        %v1125 = vsel %vm1099, %v1080, 0
        %v1128 = vsel %vm1099, %v1081, 0
        %v1131 = vsel %vm1099, %v1082, 0
        %v1134 = vsel %vm1099, %v1083, 0
        %v1137 = vsel %vm1099, %v1084, 0
        %v1140 = vsel %vm1099, %v1085, 0
        %v1143 = vsel %vm1099, %v1086, 0
        %v1146 = vsel %vm1099, %v1087, 0
        %1148 = vmatprep.subr.mxu0 0.0
        %1149 = vmatpush1.msra.mxu0 %v1088
        %1150 = vmatprep.subr.mxu0 0.0
        %1151 = vmatpush1.msra.mxu0 %v1089
        %1152 = vmatprep.subr.mxu0 0.0
        %1153 = vmatpush1.msra.mxu0 %v1090
        %1154 = vmatprep.subr.mxu0 0.0
        %1155 = vmatpush1.msra.mxu0 %v1091
        %1156 = vmatprep.subr.mxu0 0.0
        %1157 = vmatpush1.msra.mxu0 0.0
        %1158 = vmatprep.subr.mxu0 0.0
        %1159 = vmatpush1.msra.mxu0 0.0
        %1160 = vmatprep.subr.mxu0 0.0
        %1161 = vmatpush1.msra.mxu0 0.0
        %1162 = vmatprep.subr.mxu0 0.0
        %1163 = vmatpush1.msra.mxu0 0.0
        %1164 = vmatprep.subr.mxu0 0.0
        %1165 = vmatpush1.msra.mxu0 0.0
        %1166 = vmatprep.subr.mxu0 0.0
        %1167 = vmatpush1.msra.mxu0 0.0
        %1168 = vmatprep.subr.mxu0 0.0
        %1169 = vmatpush1.msra.mxu0 0.0
        %1170 = vmatprep.subr.mxu0 0.0
        %1171 = vmatpush1.msra.mxu0 0.0
        %1172 = vmatprep.subr.mxu0 0.0
        %1173 = vmatpush1.msra.mxu0 0.0
        %1174 = vmatprep.subr.mxu0 0.0
        %1175 = vmatpush1.msra.mxu0 0.0
        %1176 = vmatprep.subr.mxu0 0.0
        %1177 = vmatpush1.msra.mxu0 0.0
        %1178 = vmatprep.subr.mxu0 0.0
        %1179 = vmatpush1.msra.mxu0 0.0
        %1180 = vmatprep.subr.mxu0 0.0
        %1181 = vmatpush1.msra.mxu0 0.0
        %1182 = vmatprep.subr.mxu0 0.0
        %1183 = vmatpush1.msra.mxu0 0.0
        %1184 = vmatprep.subr.mxu0 0.0
        %1185 = vmatpush1.msra.mxu0 0.0
        %1186 = vmatprep.subr.mxu0 0.0
        %1187 = vmatpush1.msra.mxu0 0.0
        %1188 = vmatprep.subr.mxu0 0.0
        %1189 = vmatpush1.msra.mxu0 0.0
        %1190 = vmatprep.subr.mxu0 0.0
        %1191 = vmatpush1.msra.mxu0 0.0
        %1192 = vmatprep.subr.mxu0 0.0
        %1193 = vmatpush1.msra.mxu0 0.0
        %1194 = vmatprep.subr.mxu0 0.0
        %1195 = vmatpush1.msra.mxu0 0.0
        %1196 = vmatprep.subr.mxu0 0.0
        %1197 = vmatpush1.msra.mxu0 0.0
        %1198 = vmatprep.subr.mxu0 0.0
        %1199 = vmatpush1.msra.mxu0 0.0
        %1200 = vmatprep.subr.mxu0 0.0
        %1201 = vmatpush1.msra.mxu0 0.0
        %1202 = vmatprep.subr.mxu0 0.0
        %1203 = vmatpush1.msra.mxu0 0.0
        %1204 = vmatprep.subr.mxu0 0.0
        %1205 = vmatpush1.msra.mxu0 0.0
        %1206 = vmatprep.subr.mxu0 0.0
        %1207 = vmatpush1.msra.mxu0 0.0
        %1208 = vmatprep.subr.mxu0 0.0
        %1209 = vmatpush1.msra.mxu0 0.0
        %1210 = vmatprep.subr.mxu0 0.0
        %1211 = vmatpush1.msra.mxu0 0.0
        %1212 = vmatprep.mubr.f32.mxu0 0.0
        %1213 = vmatmul.mubr.f32.gmra.mrb[0].mxu0 %v1101
        %v1214 = vpop.f32.mrb[0].mxu0
        %v1215 = vadd.f32 %v1097, %v1214
        %v1216 = vpop.f32.mrb[0].mxu0
        %1217 = vmatprep.mubr.f32.mxu0 0.0
        %1218 = vmatmul.mubr.f32.gmra.mrb[0].mxu0 %v1104
        %v1219 = vpop.f32.mrb[0].mxu0
        %v1220 = vadd.f32 %v1097, %v1219
        %v1221 = vpop.f32.mrb[0].mxu0
        %1222 = vmatprep.mubr.f32.mxu0 0.0
        %1223 = vmatmul.mubr.f32.gmra.mrb[0].mxu0 %v1107
        %v1224 = vpop.f32.mrb[0].mxu0
        %v1225 = vadd.f32 %v1097, %v1224
        %v1226 = vpop.f32.mrb[0].mxu0
        %1227 = vmatprep.mubr.f32.mxu0 0.0
        %1228 = vmatmul.mubr.f32.gmra.mrb[0].mxu0 %v1110
        %v1229 = vpop.f32.mrb[0].mxu0
        %v1230 = vadd.f32 %v1097, %v1229
        %v1231 = vpop.f32.mrb[0].mxu0
        %1232 = vmatprep.mubr.f32.mxu0 0.0
        %1233 = vmatmul.mubr.f32.gmra.mrb[0].mxu0 %v1113
        %v1234 = vpop.f32.mrb[0].mxu0
        %v1235 = vadd.f32 %v1097, %v1234
        %v1236 = vpop.f32.mrb[0].mxu0
        %1237 = vmatprep.mubr.f32.mxu0 0.0
        %1238 = vmatmul.mubr.f32.gmra.mrb[0].mxu0 %v1116
        %v1239 = vpop.f32.mrb[0].mxu0
        %v1240 = vadd.f32 %v1097, %v1239
        %v1241 = vpop.f32.mrb[0].mxu0
        %1242 = vmatprep.mubr.f32.mxu0 0.0
        %1243 = vmatmul.mubr.f32.gmra.mrb[0].mxu0 %v1119
        %v1244 = vpop.f32.mrb[0].mxu0
        %v1245 = vadd.f32 %v1097, %v1244
        %v1246 = vpop.f32.mrb[0].mxu0
        %1247 = vmatprep.mubr.f32.mxu0 0.0
        %1248 = vmatmul.mubr.f32.gmra.mrb[0].mxu0 %v1122
        %v1249 = vpop.f32.mrb[0].mxu0
        %v1250 = vadd.f32 %v1097, %v1249
        %v1251 = vpop.f32.mrb[0].mxu0
        %1252 = vmatprep.mubr.f32.mxu0 0.0
        %1253 = vmatmul.mubr.f32.gmra.mrb[0].mxu0 %v1125
        %v1254 = vpop.f32.mrb[0].mxu0
        %v1255 = vadd.f32 %v1097, %v1254
        %v1256 = vpop.f32.mrb[0].mxu0
        %1257 = vmatprep.mubr.f32.mxu0 0.0
        %1258 = vmatmul.mubr.f32.gmra.mrb[0].mxu0 %v1128
        %v1259 = vpop.f32.mrb[0].mxu0
        %v1260 = vadd.f32 %v1097, %v1259
        %v1261 = vpop.f32.mrb[0].mxu0
        %1262 = vmatprep.mubr.f32.mxu0 0.0
        %1263 = vmatmul.mubr.f32.gmra.mrb[0].mxu0 %v1131
        %v1264 = vpop.f32.mrb[0].mxu0
        %v1265 = vadd.f32 %v1097, %v1264
        %v1266 = vpop.f32.mrb[0].mxu0
        %1267 = vmatprep.mubr.f32.mxu0 0.0
        %1268 = vmatmul.mubr.f32.gmra.mrb[0].mxu0 %v1134
        %v1269 = vpop.f32.mrb[0].mxu0
        %v1270 = vadd.f32 %v1097, %v1269
        %v1271 = vpop.f32.mrb[0].mxu0
        %1272 = vmatprep.mubr.f32.mxu0 0.0
        %1273 = vmatmul.mubr.f32.gmra.mrb[0].mxu0 %v1137
        %v1274 = vpop.f32.mrb[0].mxu0
        %v1275 = vadd.f32 %v1097, %v1274
        %v1276 = vpop.f32.mrb[0].mxu0
        %1277 = vmatprep.mubr.f32.mxu0 0.0
        %1278 = vmatmul.mubr.f32.gmra.mrb[0].mxu0 %v1140
        %v1279 = vpop.f32.mrb[0].mxu0
        %v1280 = vadd.f32 %v1097, %v1279
        %v1281 = vpop.f32.mrb[0].mxu0
        %1282 = vmatprep.mubr.f32.mxu0 0.0
        %1283 = vmatmul.mubr.f32.gmra.mrb[0].mxu0 %v1143
        %v1284 = vpop.f32.mrb[0].mxu0
        %v1285 = vadd.f32 %v1097, %v1284
        %v1286 = vpop.f32.mrb[0].mxu0
        %1287 = vmatprep.mubr.f32.mxu0 0.0
        %1288 = vmatmul.mubr.f32.gmra.mrb[0].mxu0 %v1146
        %v1289 = vpop.f32.mrb[0].mxu0
        %v1290 = vadd.f32 %v1097, %v1289
        %v1291 = vpop.f32.mrb[0].mxu0
        %1292 = vdwg.mxu0
        %v1293 = vmul.f32 %v1215, %v1215
        %v1294 = vmul.f32 %v1220, %v1220
        %v1295 = vmul.f32 %v1225, %v1225
        %v1296 = vmul.f32 %v1230, %v1230
        %v1297 = vmul.f32 %v1235, %v1235
        %v1298 = vmul.f32 %v1240, %v1240
        %v1299 = vmul.f32 %v1245, %v1245
        %v1300 = vmul.f32 %v1250, %v1250
        %v1301 = vmul.f32 %v1255, %v1255
        %v1302 = vmul.f32 %v1260, %v1260
        %v1303 = vmul.f32 %v1265, %v1265
        %v1304 = vmul.f32 %v1270, %v1270
        %v1305 = vmul.f32 %v1275, %v1275
        %v1306 = vmul.f32 %v1280, %v1280
        %v1307 = vmul.f32 %v1285, %v1285
        %v1308 = vmul.f32 %v1290, %v1290
        %v1309 = vmul.f32 %v1215, %v1293
        %v1310 = vmul.f32 %v1220, %v1294
        %v1311 = vmul.f32 %v1225, %v1295
        %v1312 = vmul.f32 %v1230, %v1296
        %v1313 = vmul.f32 %v1235, %v1297
        %v1314 = vmul.f32 %v1240, %v1298
        %v1315 = vmul.f32 %v1245, %v1299
        %v1316 = vmul.f32 %v1250, %v1300
        %v1317 = vmul.f32 %v1255, %v1301
        %v1318 = vmul.f32 %v1260, %v1302
        %v1319 = vmul.f32 %v1265, %v1303
        %v1320 = vmul.f32 %v1270, %v1304
        %v1321 = vmul.f32 %v1275, %v1305
        %v1322 = vmul.f32 %v1280, %v1306
        %v1323 = vmul.f32 %v1285, %v1307
        %v1324 = vmul.f32 %v1290, %v1308
        %v1325 = vmul.f32 %v1309, 0.044715
        %v1326 = vmul.f32 %v1310, 0.044715
        %v1327 = vmul.f32 %v1311, 0.044715
        %v1328 = vmul.f32 %v1312, 0.044715
        %v1329 = vmul.f32 %v1313, 0.044715
        %v1330 = vmul.f32 %v1314, 0.044715
        %v1331 = vmul.f32 %v1315, 0.044715
        %v1332 = vmul.f32 %v1316, 0.044715
        %v1333 = vmul.f32 %v1317, 0.044715
        %v1334 = vmul.f32 %v1318, 0.044715
        %v1335 = vmul.f32 %v1319, 0.044715
        %v1336 = vmul.f32 %v1320, 0.044715
        %v1337 = vmul.f32 %v1321, 0.044715
        %v1338 = vmul.f32 %v1322, 0.044715
        %v1339 = vmul.f32 %v1323, 0.044715
        %v1340 = vmul.f32 %v1324, 0.044715
        %v1341 = vadd.f32 %v1215, %v1325
        %v1342 = vadd.f32 %v1220, %v1326
        %v1343 = vadd.f32 %v1225, %v1327
        %v1344 = vadd.f32 %v1230, %v1328
        %v1345 = vadd.f32 %v1235, %v1329
        %v1346 = vadd.f32 %v1240, %v1330
        %v1347 = vadd.f32 %v1245, %v1331
        %v1348 = vadd.f32 %v1250, %v1332
        %v1349 = vadd.f32 %v1255, %v1333
        %v1350 = vadd.f32 %v1260, %v1334
        %v1351 = vadd.f32 %v1265, %v1335
        %v1352 = vadd.f32 %v1270, %v1336
        %v1353 = vadd.f32 %v1275, %v1337
        %v1354 = vadd.f32 %v1280, %v1338
        %v1355 = vadd.f32 %v1285, %v1339
        %v1356 = vadd.f32 %v1290, %v1340
        %v1357 = vmul.f32 %v1341, 0.7978846
        %v1358 = vmul.f32 %v1342, 0.7978846
        %v1359 = vmul.f32 %v1343, 0.7978846
        %v1360 = vmul.f32 %v1344, 0.7978846
        %v1361 = vmul.f32 %v1345, 0.7978846
        %v1362 = vmul.f32 %v1346, 0.7978846
        %v1363 = vmul.f32 %v1347, 0.7978846
        %v1364 = vmul.f32 %v1348, 0.7978846
        %v1365 = vmul.f32 %v1349, 0.7978846
        %v1366 = vmul.f32 %v1350, 0.7978846
        %v1367 = vmul.f32 %v1351, 0.7978846
        %v1368 = vmul.f32 %v1352, 0.7978846
        %v1369 = vmul.f32 %v1353, 0.7978846
        %v1370 = vmul.f32 %v1354, 0.7978846
        %v1371 = vmul.f32 %v1355, 0.7978846
        %v1372 = vmul.f32 %v1356, 0.7978846
        %v1373 = vtanh.pop %v1357
        %v1374 = vtanh.pop %v1358
        %v1375 = vtanh.pop %v1359
        %v1376 = vtanh.pop %v1360
        %v1377 = vtanh.pop %v1361
        %v1378 = vtanh.pop %v1362
        %v1379 = vtanh.pop %v1363
        %v1380 = vtanh.pop %v1364
        %v1381 = vtanh.pop %v1365
        %v1382 = vtanh.pop %v1366
        %v1383 = vtanh.pop %v1367
        %v1384 = vtanh.pop %v1368
        %v1385 = vtanh.pop %v1369
        %v1386 = vtanh.pop %v1370
        %v1387 = vtanh.pop %v1371
        %v1388 = vtanh.pop %v1372
        %v1389 = vadd.f32 %v1373, 1.0
        %v1390 = vadd.f32 %v1374, 1.0
        %v1391 = vadd.f32 %v1375, 1.0
        %v1392 = vadd.f32 %v1376, 1.0
        %v1393 = vadd.f32 %v1377, 1.0
        %v1394 = vadd.f32 %v1378, 1.0
        %v1395 = vadd.f32 %v1379, 1.0
        %v1396 = vadd.f32 %v1380, 1.0
        %v1397 = vadd.f32 %v1381, 1.0
        %v1398 = vadd.f32 %v1382, 1.0
        %v1399 = vadd.f32 %v1383, 1.0
        %v1400 = vadd.f32 %v1384, 1.0
        %v1401 = vadd.f32 %v1385, 1.0
        %v1402 = vadd.f32 %v1386, 1.0
        %v1403 = vadd.f32 %v1387, 1.0
        %v1404 = vadd.f32 %v1388, 1.0
        %v1405 = vmul.f32 %v1389, 0.5
        %v1406 = vmul.f32 %v1390, 0.5
        %v1407 = vmul.f32 %v1391, 0.5
        %v1408 = vmul.f32 %v1392, 0.5
        %v1409 = vmul.f32 %v1393, 0.5
        %v1410 = vmul.f32 %v1394, 0.5
        %v1411 = vmul.f32 %v1395, 0.5
        %v1412 = vmul.f32 %v1396, 0.5
        %v1413 = vmul.f32 %v1397, 0.5
        %v1414 = vmul.f32 %v1398, 0.5
        %v1415 = vmul.f32 %v1399, 0.5
        %v1416 = vmul.f32 %v1400, 0.5
        %v1417 = vmul.f32 %v1401, 0.5
        %v1418 = vmul.f32 %v1402, 0.5
        %v1419 = vmul.f32 %v1403, 0.5
        %v1420 = vmul.f32 %v1404, 0.5
        %v1421 = vmul.f32 %v1215, %v1405
        %v1422 = vmul.f32 %v1220, %v1406
        %v1423 = vmul.f32 %v1225, %v1407
        %v1424 = vmul.f32 %v1230, %v1408
        %v1425 = vmul.f32 %v1235, %v1409
        %v1426 = vmul.f32 %v1240, %v1410
        %v1427 = vmul.f32 %v1245, %v1411
        %v1428 = vmul.f32 %v1250, %v1412
        %v1429 = vmul.f32 %v1255, %v1413
        %v1430 = vmul.f32 %v1260, %v1414
        %v1431 = vmul.f32 %v1265, %v1415
        %v1432 = vmul.f32 %v1270, %v1416
        %v1433 = vmul.f32 %v1275, %v1417
        %v1434 = vmul.f32 %v1280, %v1418
        %v1435 = vmul.f32 %v1285, %v1419
        %v1436 = vmul.f32 %v1290, %v1420
        %v1437 = vld [vmem:[%s7] sm:$0xff]
        %v1438 = vld [vmem:[%s7 + $0x8] sm:$0xff]
        %v1439 = vld [vmem:[%s7 + $0x10] sm:$0xff]
        %v1440 = vld [vmem:[%s7 + $0x18] sm:$0xff]
        %v1441 = vld [vmem:[%s7 + $0x20] sm:$0xff]
        %v1442 = vld [vmem:[%s7 + $0x28] sm:$0xff]
        %v1443 = vld [vmem:[%s7 + $0x30] sm:$0xff]
        %v1444 = vld [vmem:[%s7 + $0x38] sm:$0xff]
        %v1445 = vld [vmem:[%s7 + $0x40] sm:$0xff]
        %v1446 = vld [vmem:[%s7 + $0x48] sm:$0xff]
        %v1447 = vld [vmem:[%s7 + $0x50] sm:$0xff]
        %v1448 = vld [vmem:[%s7 + $0x58] sm:$0xff]
        %v1449 = vld [vmem:[%s7 + $0x60] sm:$0xff]
        %v1450 = vld [vmem:[%s7 + $0x68] sm:$0xff]
        %v1451 = vld [vmem:[%s7 + $0x70] sm:$0xff]
        %v1452 = vld [vmem:[%s7 + $0x78] sm:$0xff]
        %v1453 = vld [vmem:[%s8] sm:$0x1]
        %v1455 = vlaneseq
        %v1456 = vshrl.u32 %v1455, 7
        %v1457 = vsub.s32 0, %v1456
        %v1458 = vrot.slane %v1453, %v1457
        %1460 = vmatprep.subr.mxu0 0.0
        %1461 = vmatpush1.msra.mxu0 %v1437
        %1462 = vmatprep.subr.mxu0 0.0
        %1463 = vmatpush1.msra.mxu0 %v1438
        %1464 = vmatprep.subr.mxu0 0.0
        %1465 = vmatpush1.msra.mxu0 %v1439
        %1466 = vmatprep.subr.mxu0 0.0
        %1467 = vmatpush1.msra.mxu0 %v1440
        %1468 = vmatprep.subr.mxu0 0.0
        %1469 = vmatpush1.msra.mxu0 %v1441
        %1470 = vmatprep.subr.mxu0 0.0
        %1471 = vmatpush1.msra.mxu0 %v1442
        %1472 = vmatprep.subr.mxu0 0.0
        %1473 = vmatpush1.msra.mxu0 %v1443
        %1474 = vmatprep.subr.mxu0 0.0
        %1475 = vmatpush1.msra.mxu0 %v1444
        %1476 = vmatprep.subr.mxu0 0.0
        %1477 = vmatpush1.msra.mxu0 %v1445
        %1478 = vmatprep.subr.mxu0 0.0
        %1479 = vmatpush1.msra.mxu0 %v1446
        %1480 = vmatprep.subr.mxu0 0.0
        %1481 = vmatpush1.msra.mxu0 %v1447
        %1482 = vmatprep.subr.mxu0 0.0
        %1483 = vmatpush1.msra.mxu0 %v1448
        %1484 = vmatprep.subr.mxu0 0.0
        %1485 = vmatpush1.msra.mxu0 %v1449
        %1486 = vmatprep.subr.mxu0 0.0
        %1487 = vmatpush1.msra.mxu0 %v1450
        %1488 = vmatprep.subr.mxu0 0.0
        %1489 = vmatpush1.msra.mxu0 %v1451
        %1490 = vmatprep.subr.mxu0 0.0
        %1491 = vmatpush1.msra.mxu0 %v1452
        %1492 = vmatprep.subr.mxu0 0.0
        %1493 = vmatpush1.msra.mxu0 0.0
        %1494 = vmatprep.subr.mxu0 0.0
        %1495 = vmatpush1.msra.mxu0 0.0
        %1496 = vmatprep.subr.mxu0 0.0
        %1497 = vmatpush1.msra.mxu0 0.0
        %1498 = vmatprep.subr.mxu0 0.0
        %1499 = vmatpush1.msra.mxu0 0.0
        %1500 = vmatprep.subr.mxu0 0.0
        %1501 = vmatpush1.msra.mxu0 0.0
        %1502 = vmatprep.subr.mxu0 0.0
        %1503 = vmatpush1.msra.mxu0 0.0
        %1504 = vmatprep.subr.mxu0 0.0
        %1505 = vmatpush1.msra.mxu0 0.0
        %1506 = vmatprep.subr.mxu0 0.0
        %1507 = vmatpush1.msra.mxu0 0.0
        %1508 = vmatprep.subr.mxu0 0.0
        %1509 = vmatpush1.msra.mxu0 0.0
        %1510 = vmatprep.subr.mxu0 0.0
        %1511 = vmatpush1.msra.mxu0 0.0
        %1512 = vmatprep.subr.mxu0 0.0
        %1513 = vmatpush1.msra.mxu0 0.0
        %1514 = vmatprep.subr.mxu0 0.0
        %1515 = vmatpush1.msra.mxu0 0.0
        %1516 = vmatprep.subr.mxu0 0.0
        %1517 = vmatpush1.msra.mxu0 0.0
        %1518 = vmatprep.subr.mxu0 0.0
        %1519 = vmatpush1.msra.mxu0 0.0
        %1520 = vmatprep.subr.mxu0 0.0
        %1521 = vmatpush1.msra.mxu0 0.0
        %1522 = vmatprep.subr.mxu0 0.0
        %1523 = vmatpush1.msra.mxu0 0.0
        %1524 = vmatprep.mubr.f32.mxu0 0.0
        %1525 = vmatmul.mubr.f32.gmra.mrb[0].mxu0 %v1421
        %v1526 = vpop.f32.mrb[0].mxu0
        %v1527 = vadd.f32 %v1458, %v1526
        %v1528 = vpop.f32.mrb[0].mxu0
        %1529 = vmatprep.mubr.f32.mxu0 0.0
        %1530 = vmatmul.mubr.f32.gmra.mrb[0].mxu0 %v1422
        %v1531 = vpop.f32.mrb[0].mxu0
        %v1532 = vadd.f32 %v1458, %v1531
        %v1533 = vpop.f32.mrb[0].mxu0
        %1534 = vmatprep.mubr.f32.mxu0 0.0
        %1535 = vmatmul.mubr.f32.gmra.mrb[0].mxu0 %v1423
        %v1536 = vpop.f32.mrb[0].mxu0
        %v1537 = vadd.f32 %v1458, %v1536
        %v1538 = vpop.f32.mrb[0].mxu0
        %1539 = vmatprep.mubr.f32.mxu0 0.0
        %1540 = vmatmul.mubr.f32.gmra.mrb[0].mxu0 %v1424
        %v1541 = vpop.f32.mrb[0].mxu0
        %v1542 = vadd.f32 %v1458, %v1541
        %v1543 = vpop.f32.mrb[0].mxu0
        %1544 = vmatprep.mubr.f32.mxu0 0.0
        %1545 = vmatmul.mubr.f32.gmra.mrb[0].mxu0 %v1425
        %v1546 = vpop.f32.mrb[0].mxu0
        %v1547 = vadd.f32 %v1458, %v1546
        %v1548 = vpop.f32.mrb[0].mxu0
        %1549 = vmatprep.mubr.f32.mxu0 0.0
        %1550 = vmatmul.mubr.f32.gmra.mrb[0].mxu0 %v1426
        %v1551 = vpop.f32.mrb[0].mxu0
        %v1552 = vadd.f32 %v1458, %v1551
        %v1553 = vpop.f32.mrb[0].mxu0
        %1554 = vmatprep.mubr.f32.mxu0 0.0
        %1555 = vmatmul.mubr.f32.gmra.mrb[0].mxu0 %v1427
        %v1556 = vpop.f32.mrb[0].mxu0
        %v1557 = vadd.f32 %v1458, %v1556
        %v1558 = vpop.f32.mrb[0].mxu0
        %1559 = vmatprep.mubr.f32.mxu0 0.0
        %1560 = vmatmul.mubr.f32.gmra.mrb[0].mxu0 %v1428
        %v1561 = vpop.f32.mrb[0].mxu0
        %v1562 = vadd.f32 %v1458, %v1561
        %v1563 = vpop.f32.mrb[0].mxu0
        %1564 = vmatprep.mubr.f32.mxu0 0.0
        %1565 = vmatmul.mubr.f32.gmra.mrb[0].mxu0 %v1429
        %v1566 = vpop.f32.mrb[0].mxu0
        %v1567 = vadd.f32 %v1458, %v1566
        %v1568 = vpop.f32.mrb[0].mxu0
        %1569 = vmatprep.mubr.f32.mxu0 0.0
        %1570 = vmatmul.mubr.f32.gmra.mrb[0].mxu0 %v1430
        %v1571 = vpop.f32.mrb[0].mxu0
        %v1572 = vadd.f32 %v1458, %v1571
        %v1573 = vpop.f32.mrb[0].mxu0
        %1574 = vmatprep.mubr.f32.mxu0 0.0
        %1575 = vmatmul.mubr.f32.gmra.mrb[0].mxu0 %v1431
        %v1576 = vpop.f32.mrb[0].mxu0
        %v1577 = vadd.f32 %v1458, %v1576
        %v1578 = vpop.f32.mrb[0].mxu0
        %1579 = vmatprep.mubr.f32.mxu0 0.0
        %1580 = vmatmul.mubr.f32.gmra.mrb[0].mxu0 %v1432
        %v1581 = vpop.f32.mrb[0].mxu0
        %v1582 = vadd.f32 %v1458, %v1581
        %v1583 = vpop.f32.mrb[0].mxu0
        %1584 = vmatprep.mubr.f32.mxu0 0.0
        %1585 = vmatmul.mubr.f32.gmra.mrb[0].mxu0 %v1433
        %v1586 = vpop.f32.mrb[0].mxu0
        %v1587 = vadd.f32 %v1458, %v1586
        %v1588 = vpop.f32.mrb[0].mxu0
        %1589 = vmatprep.mubr.f32.mxu0 0.0
        %1590 = vmatmul.mubr.f32.gmra.mrb[0].mxu0 %v1434
        %v1591 = vpop.f32.mrb[0].mxu0
        %v1592 = vadd.f32 %v1458, %v1591
        %v1593 = vpop.f32.mrb[0].mxu0
        %1594 = vmatprep.mubr.f32.mxu0 0.0
        %1595 = vmatmul.mubr.f32.gmra.mrb[0].mxu0 %v1435
        %v1596 = vpop.f32.mrb[0].mxu0
        %v1597 = vadd.f32 %v1458, %v1596
        %v1598 = vpop.f32.mrb[0].mxu0
        %1599 = vmatprep.mubr.f32.mxu0 0.0
        %1600 = vmatmul.mubr.f32.gmra.mrb[0].mxu0 %v1436
        %v1601 = vpop.f32.mrb[0].mxu0
        %v1602 = vadd.f32 %v1458, %v1601
        %v1603 = vpop.f32.mrb[0].mxu0
        %1604 = vdwg.mxu0
        %v1605 = vmul.f32 %v1527, %v1527
        %v1606 = vmul.f32 %v1532, %v1532
        %v1607 = vmul.f32 %v1537, %v1537
        %v1608 = vmul.f32 %v1542, %v1542
        %v1609 = vmul.f32 %v1547, %v1547
        %v1610 = vmul.f32 %v1552, %v1552
        %v1611 = vmul.f32 %v1557, %v1557
        %v1612 = vmul.f32 %v1562, %v1562
        %v1613 = vmul.f32 %v1567, %v1567
        %v1614 = vmul.f32 %v1572, %v1572
        %v1615 = vmul.f32 %v1577, %v1577
        %v1616 = vmul.f32 %v1582, %v1582
        %v1617 = vmul.f32 %v1587, %v1587
        %v1618 = vmul.f32 %v1592, %v1592
        %v1619 = vmul.f32 %v1597, %v1597
        %v1620 = vmul.f32 %v1602, %v1602
        %v1621 = vmul.f32 %v1527, %v1605
        %v1622 = vmul.f32 %v1532, %v1606
        %v1623 = vmul.f32 %v1537, %v1607
        %v1624 = vmul.f32 %v1542, %v1608
        %v1625 = vmul.f32 %v1547, %v1609
        %v1626 = vmul.f32 %v1552, %v1610
        %v1627 = vmul.f32 %v1557, %v1611
        %v1628 = vmul.f32 %v1562, %v1612
        %v1629 = vmul.f32 %v1567, %v1613
        %v1630 = vmul.f32 %v1572, %v1614
        %v1631 = vmul.f32 %v1577, %v1615
        %v1632 = vmul.f32 %v1582, %v1616
        %v1633 = vmul.f32 %v1587, %v1617
        %v1634 = vmul.f32 %v1592, %v1618
        %v1635 = vmul.f32 %v1597, %v1619
        %v1636 = vmul.f32 %v1602, %v1620
        %v1637 = vmul.f32 %v1621, 0.044715
        %v1638 = vmul.f32 %v1622, 0.044715
        %v1639 = vmul.f32 %v1623, 0.044715
        %v1640 = vmul.f32 %v1624, 0.044715
        %v1641 = vmul.f32 %v1625, 0.044715
        %v1642 = vmul.f32 %v1626, 0.044715
        %v1643 = vmul.f32 %v1627, 0.044715
        %v1644 = vmul.f32 %v1628, 0.044715
        %v1645 = vmul.f32 %v1629, 0.044715
        %v1646 = vmul.f32 %v1630, 0.044715
        %v1647 = vmul.f32 %v1631, 0.044715
        %v1648 = vmul.f32 %v1632, 0.044715
        %v1649 = vmul.f32 %v1633, 0.044715
        %v1650 = vmul.f32 %v1634, 0.044715
        %v1651 = vmul.f32 %v1635, 0.044715
        %v1652 = vmul.f32 %v1636, 0.044715
        %v1653 = vadd.f32 %v1527, %v1637
        %v1654 = vadd.f32 %v1532, %v1638
        %v1655 = vadd.f32 %v1537, %v1639
        %v1656 = vadd.f32 %v1542, %v1640
        %v1657 = vadd.f32 %v1547, %v1641
        %v1658 = vadd.f32 %v1552, %v1642
        %v1659 = vadd.f32 %v1557, %v1643
        %v1660 = vadd.f32 %v1562, %v1644
        %v1661 = vadd.f32 %v1567, %v1645
        %v1662 = vadd.f32 %v1572, %v1646
        %v1663 = vadd.f32 %v1577, %v1647
        %v1664 = vadd.f32 %v1582, %v1648
        %v1665 = vadd.f32 %v1587, %v1649
        %v1666 = vadd.f32 %v1592, %v1650
        %v1667 = vadd.f32 %v1597, %v1651
        %v1668 = vadd.f32 %v1602, %v1652
        %v1669 = vmul.f32 %v1653, 0.7978846
        %v1670 = vmul.f32 %v1654, 0.7978846
        %v1671 = vmul.f32 %v1655, 0.7978846
        %v1672 = vmul.f32 %v1656, 0.7978846
        %v1673 = vmul.f32 %v1657, 0.7978846
        %v1674 = vmul.f32 %v1658, 0.7978846
        %v1675 = vmul.f32 %v1659, 0.7978846
        %v1676 = vmul.f32 %v1660, 0.7978846
        %v1677 = vmul.f32 %v1661, 0.7978846
        %v1678 = vmul.f32 %v1662, 0.7978846
        %v1679 = vmul.f32 %v1663, 0.7978846
        %v1680 = vmul.f32 %v1664, 0.7978846
        %v1681 = vmul.f32 %v1665, 0.7978846
        %v1682 = vmul.f32 %v1666, 0.7978846
        %v1683 = vmul.f32 %v1667, 0.7978846
        %v1684 = vmul.f32 %v1668, 0.7978846
        %v1685 = vtanh.pop %v1669
        %v1686 = vtanh.pop %v1670
        %v1687 = vtanh.pop %v1671
        %v1688 = vtanh.pop %v1672
        %v1689 = vtanh.pop %v1673
        %v1690 = vtanh.pop %v1674
        %v1691 = vtanh.pop %v1675
        %v1692 = vtanh.pop %v1676
        %v1693 = vtanh.pop %v1677
        %v1694 = vtanh.pop %v1678
        %v1695 = vtanh.pop %v1679
        %v1696 = vtanh.pop %v1680
        %v1697 = vtanh.pop %v1681
        %v1698 = vtanh.pop %v1682
        %v1699 = vtanh.pop %v1683
        %v1700 = vtanh.pop %v1684
        %v1701 = vadd.f32 %v1685, 1.0
        %v1702 = vadd.f32 %v1686, 1.0
        %v1703 = vadd.f32 %v1687, 1.0
        %v1704 = vadd.f32 %v1688, 1.0
        %v1705 = vadd.f32 %v1689, 1.0
        %v1706 = vadd.f32 %v1690, 1.0
        %v1707 = vadd.f32 %v1691, 1.0
        %v1708 = vadd.f32 %v1692, 1.0
        %v1709 = vadd.f32 %v1693, 1.0
        %v1710 = vadd.f32 %v1694, 1.0
        %v1711 = vadd.f32 %v1695, 1.0
        %v1712 = vadd.f32 %v1696, 1.0
        %v1713 = vadd.f32 %v1697, 1.0
        %v1714 = vadd.f32 %v1698, 1.0
        %v1715 = vadd.f32 %v1699, 1.0
        %v1716 = vadd.f32 %v1700, 1.0
        %v1717 = vmul.f32 %v1701, 0.5
        %v1718 = vmul.f32 %v1702, 0.5
        %v1719 = vmul.f32 %v1703, 0.5
        %v1720 = vmul.f32 %v1704, 0.5
        %v1721 = vmul.f32 %v1705, 0.5
        %v1722 = vmul.f32 %v1706, 0.5
        %v1723 = vmul.f32 %v1707, 0.5
        %v1724 = vmul.f32 %v1708, 0.5
        %v1725 = vmul.f32 %v1709, 0.5
        %v1726 = vmul.f32 %v1710, 0.5
        %v1727 = vmul.f32 %v1711, 0.5
        %v1728 = vmul.f32 %v1712, 0.5
        %v1729 = vmul.f32 %v1713, 0.5
        %v1730 = vmul.f32 %v1714, 0.5
        %v1731 = vmul.f32 %v1715, 0.5
        %v1732 = vmul.f32 %v1716, 0.5
        %v1733 = vmul.f32 %v1527, %v1717
        %v1734 = vmul.f32 %v1532, %v1718
        %v1735 = vmul.f32 %v1537, %v1719
        %v1736 = vmul.f32 %v1542, %v1720
        %v1737 = vmul.f32 %v1547, %v1721
        %v1738 = vmul.f32 %v1552, %v1722
        %v1739 = vmul.f32 %v1557, %v1723
        %v1740 = vmul.f32 %v1562, %v1724
        %v1741 = vmul.f32 %v1567, %v1725
        %v1742 = vmul.f32 %v1572, %v1726
        %v1743 = vmul.f32 %v1577, %v1727
        %v1744 = vmul.f32 %v1582, %v1728
        %v1745 = vmul.f32 %v1587, %v1729
        %v1746 = vmul.f32 %v1592, %v1730
        %v1747 = vmul.f32 %v1597, %v1731
        %v1748 = vmul.f32 %v1602, %v1732
        %v1749 = vld [vmem:[%s9] sm:$0xff]
        %v1750 = vld [vmem:[%s9 + $0x8] sm:$0xff]
        %v1751 = vld [vmem:[%s9 + $0x10] sm:$0xff]
        %v1752 = vld [vmem:[%s9 + $0x18] sm:$0xff]
        %v1753 = vld [vmem:[%s10] sm:$0x1]
        %v1755 = vlaneseq
        %v1756 = vshrl.u32 %v1755, 7
        %v1757 = vsub.s32 0, %v1756
        %v1758 = vrot.slane %v1753, %v1757
        %v1761 = vsel %vm1099, %v1733, 0
        %v1764 = vsel %vm1099, %v1734, 0
        %v1767 = vsel %vm1099, %v1735, 0
        %v1770 = vsel %vm1099, %v1736, 0
        %v1773 = vsel %vm1099, %v1737, 0
        %v1776 = vsel %vm1099, %v1738, 0
        %v1779 = vsel %vm1099, %v1739, 0
        %v1782 = vsel %vm1099, %v1740, 0
        %v1785 = vsel %vm1099, %v1741, 0
        %v1788 = vsel %vm1099, %v1742, 0
        %v1791 = vsel %vm1099, %v1743, 0
        %v1794 = vsel %vm1099, %v1744, 0
        %v1797 = vsel %vm1099, %v1745, 0
        %v1800 = vsel %vm1099, %v1746, 0
        %v1803 = vsel %vm1099, %v1747, 0
        %v1806 = vsel %vm1099, %v1748, 0
        %1808 = vmatprep.subr.mxu0 0.0
        %1809 = vmatpush1.msra.mxu0 %v1749
        %1810 = vmatprep.subr.mxu0 0.0
        %1811 = vmatpush1.msra.mxu0 %v1750
        %1812 = vmatprep.subr.mxu0 0.0
        %1813 = vmatpush1.msra.mxu0 %v1751
        %1814 = vmatprep.subr.mxu0 0.0
        %1815 = vmatpush1.msra.mxu0 %v1752
        %1816 = vmatprep.subr.mxu0 0.0
        %1817 = vmatpush1.msra.mxu0 0.0
        %1818 = vmatprep.subr.mxu0 0.0
        %1819 = vmatpush1.msra.mxu0 0.0
        %1820 = vmatprep.subr.mxu0 0.0
        %1821 = vmatpush1.msra.mxu0 0.0
        %1822 = vmatprep.subr.mxu0 0.0
        %1823 = vmatpush1.msra.mxu0 0.0
        %1824 = vmatprep.subr.mxu0 0.0
        %1825 = vmatpush1.msra.mxu0 0.0
        %1826 = vmatprep.subr.mxu0 0.0
        %1827 = vmatpush1.msra.mxu0 0.0
        %1828 = vmatprep.subr.mxu0 0.0
        %1829 = vmatpush1.msra.mxu0 0.0
        %1830 = vmatprep.subr.mxu0 0.0
        %1831 = vmatpush1.msra.mxu0 0.0
        %1832 = vmatprep.subr.mxu0 0.0
        %1833 = vmatpush1.msra.mxu0 0.0
        %1834 = vmatprep.subr.mxu0 0.0
        %1835 = vmatpush1.msra.mxu0 0.0
        %1836 = vmatprep.subr.mxu0 0.0
        %1837 = vmatpush1.msra.mxu0 0.0
        %1838 = vmatprep.subr.mxu0 0.0
        %1839 = vmatpush1.msra.mxu0 0.0
        %1840 = vmatprep.subr.mxu0 0.0
        %1841 = vmatpush1.msra.mxu0 0.0
        %1842 = vmatprep.subr.mxu0 0.0
        %1843 = vmatpush1.msra.mxu0 0.0
        %1844 = vmatprep.subr.mxu0 0.0
        %1845 = vmatpush1.msra.mxu0 0.0
        %1846 = vmatprep.subr.mxu0 0.0
        %1847 = vmatpush1.msra.mxu0 0.0
        %1848 = vmatprep.subr.mxu0 0.0
        %1849 = vmatpush1.msra.mxu0 0.0
        %1850 = vmatprep.subr.mxu0 0.0
        %1851 = vmatpush1.msra.mxu0 0.0
        %1852 = vmatprep.subr.mxu0 0.0
        %1853 = vmatpush1.msra.mxu0 0.0
        %1854 = vmatprep.subr.mxu0 0.0
        %1855 = vmatpush1.msra.mxu0 0.0
        %1856 = vmatprep.subr.mxu0 0.0
        %1857 = vmatpush1.msra.mxu0 0.0
        %1858 = vmatprep.subr.mxu0 0.0
        %1859 = vmatpush1.msra.mxu0 0.0
        %1860 = vmatprep.subr.mxu0 0.0
        %1861 = vmatpush1.msra.mxu0 0.0
        %1862 = vmatprep.subr.mxu0 0.0
        %1863 = vmatpush1.msra.mxu0 0.0
        %1864 = vmatprep.subr.mxu0 0.0
        %1865 = vmatpush1.msra.mxu0 0.0
        %1866 = vmatprep.subr.mxu0 0.0
        %1867 = vmatpush1.msra.mxu0 0.0
        %1868 = vmatprep.subr.mxu0 0.0
        %1869 = vmatpush1.msra.mxu0 0.0
        %1870 = vmatprep.subr.mxu0 0.0
        %1871 = vmatpush1.msra.mxu0 0.0
        %1872 = vmatprep.mubr.f32.mxu0 0.0
        %1873 = vmatmul.mubr.f32.gmra.mrb[0].mxu0 %v1761
        %v1874 = vpop.f32.mrb[0].mxu0
        %v1875 = vadd.f32 %v1758, %v1874
        %v1876 = vpop.f32.mrb[0].mxu0
        %1877 = vmatprep.mubr.f32.mxu0 0.0
        %1878 = vmatmul.mubr.f32.gmra.mrb[0].mxu0 %v1764
        %v1879 = vpop.f32.mrb[0].mxu0
        %v1880 = vadd.f32 %v1758, %v1879
        %v1881 = vpop.f32.mrb[0].mxu0
        %1882 = vmatprep.mubr.f32.mxu0 0.0
        %1883 = vmatmul.mubr.f32.gmra.mrb[0].mxu0 %v1767
        %v1884 = vpop.f32.mrb[0].mxu0
        %v1885 = vadd.f32 %v1758, %v1884
        %v1886 = vpop.f32.mrb[0].mxu0
        %1887 = vmatprep.mubr.f32.mxu0 0.0
        %1888 = vmatmul.mubr.f32.gmra.mrb[0].mxu0 %v1770
        %v1889 = vpop.f32.mrb[0].mxu0
        %v1890 = vadd.f32 %v1758, %v1889
        %v1891 = vpop.f32.mrb[0].mxu0
        %1892 = vmatprep.mubr.f32.mxu0 0.0
        %1893 = vmatmul.mubr.f32.gmra.mrb[0].mxu0 %v1773
        %v1894 = vpop.f32.mrb[0].mxu0
        %v1895 = vadd.f32 %v1758, %v1894
        %v1896 = vpop.f32.mrb[0].mxu0
        %1897 = vmatprep.mubr.f32.mxu0 0.0
        %1898 = vmatmul.mubr.f32.gmra.mrb[0].mxu0 %v1776
        %v1899 = vpop.f32.mrb[0].mxu0
        %v1900 = vadd.f32 %v1758, %v1899
        %v1901 = vpop.f32.mrb[0].mxu0
        %1902 = vmatprep.mubr.f32.mxu0 0.0
        %1903 = vmatmul.mubr.f32.gmra.mrb[0].mxu0 %v1779
        %v1904 = vpop.f32.mrb[0].mxu0
        %v1905 = vadd.f32 %v1758, %v1904
        %v1906 = vpop.f32.mrb[0].mxu0
        %1907 = vmatprep.mubr.f32.mxu0 0.0
        %1908 = vmatmul.mubr.f32.gmra.mrb[0].mxu0 %v1782
        %v1909 = vpop.f32.mrb[0].mxu0
        %v1910 = vadd.f32 %v1758, %v1909
        %v1911 = vpop.f32.mrb[0].mxu0
        %1912 = vmatprep.mubr.f32.mxu0 0.0
        %1913 = vmatmul.mubr.f32.gmra.mrb[0].mxu0 %v1785
        %v1914 = vpop.f32.mrb[0].mxu0
        %v1915 = vadd.f32 %v1758, %v1914
        %v1916 = vpop.f32.mrb[0].mxu0
        %1917 = vmatprep.mubr.f32.mxu0 0.0
        %1918 = vmatmul.mubr.f32.gmra.mrb[0].mxu0 %v1788
        %v1919 = vpop.f32.mrb[0].mxu0
        %v1920 = vadd.f32 %v1758, %v1919
        %v1921 = vpop.f32.mrb[0].mxu0
        %1922 = vmatprep.mubr.f32.mxu0 0.0
        %1923 = vmatmul.mubr.f32.gmra.mrb[0].mxu0 %v1791
        %v1924 = vpop.f32.mrb[0].mxu0
        %v1925 = vadd.f32 %v1758, %v1924
        %v1926 = vpop.f32.mrb[0].mxu0
        %1927 = vmatprep.mubr.f32.mxu0 0.0
        %1928 = vmatmul.mubr.f32.gmra.mrb[0].mxu0 %v1794
        %v1929 = vpop.f32.mrb[0].mxu0
        %v1930 = vadd.f32 %v1758, %v1929
        %v1931 = vpop.f32.mrb[0].mxu0
        %1932 = vmatprep.mubr.f32.mxu0 0.0
        %1933 = vmatmul.mubr.f32.gmra.mrb[0].mxu0 %v1797
        %v1934 = vpop.f32.mrb[0].mxu0
        %v1935 = vadd.f32 %v1758, %v1934
        %v1936 = vpop.f32.mrb[0].mxu0
        %1937 = vmatprep.mubr.f32.mxu0 0.0
        %1938 = vmatmul.mubr.f32.gmra.mrb[0].mxu0 %v1800
        %v1939 = vpop.f32.mrb[0].mxu0
        %v1940 = vadd.f32 %v1758, %v1939
        %v1941 = vpop.f32.mrb[0].mxu0
        %1942 = vmatprep.mubr.f32.mxu0 0.0
        %1943 = vmatmul.mubr.f32.gmra.mrb[0].mxu0 %v1803
        %v1944 = vpop.f32.mrb[0].mxu0
        %v1945 = vadd.f32 %v1758, %v1944
        %v1946 = vpop.f32.mrb[0].mxu0
        %1947 = vmatprep.mubr.f32.mxu0 0.0
        %1948 = vmatmul.mubr.f32.gmra.mrb[0].mxu0 %v1806
        %v1949 = vpop.f32.mrb[0].mxu0
        %v1950 = vadd.f32 %v1758, %v1949
        %v1951 = vpop.f32.mrb[0].mxu0
        %1952 = vdwg.mxu0
        %v1953 = vadd.f32 %v760, %v1875
        %v1954 = vadd.f32 %v761, %v1880
        %v1955 = vadd.f32 %v762, %v1885
        %v1956 = vadd.f32 %v763, %v1890
        %v1957 = vadd.f32 %v764, %v1895
        %v1958 = vadd.f32 %v765, %v1900
        %v1959 = vadd.f32 %v766, %v1905
        %v1960 = vadd.f32 %v767, %v1910
        %v1961 = vadd.f32 %v768, %v1915
        %v1962 = vadd.f32 %v769, %v1920
        %v1963 = vadd.f32 %v770, %v1925
        %v1964 = vadd.f32 %v771, %v1930
        %v1965 = vadd.f32 %v772, %v1935
        %v1966 = vadd.f32 %v773, %v1940
        %v1967 = vadd.f32 %v774, %v1945
        %v1968 = vadd.f32 %v775, %v1950
        %s1969 = scalar_lea.vmem %s3, 128
        %v1970 = vld [vmem:[%s1969] sm:$0xff]
        %v1971 = vld [vmem:[%s1969 + $0x8] sm:$0xff]
        %v1972 = vld [vmem:[%s1969 + $0x10] sm:$0xff]
        %v1973 = vld [vmem:[%s1969 + $0x18] sm:$0xff]
        %v1974 = vld [vmem:[%s1969 + $0x20] sm:$0xff]
        %v1975 = vld [vmem:[%s1969 + $0x28] sm:$0xff]
        %v1976 = vld [vmem:[%s1969 + $0x30] sm:$0xff]
        %v1977 = vld [vmem:[%s1969 + $0x38] sm:$0xff]
        %v1978 = vld [vmem:[%s1969 + $0x40] sm:$0xff]
        %v1979 = vld [vmem:[%s1969 + $0x48] sm:$0xff]
        %v1980 = vld [vmem:[%s1969 + $0x50] sm:$0xff]
        %v1981 = vld [vmem:[%s1969 + $0x58] sm:$0xff]
        %v1982 = vld [vmem:[%s1969 + $0x60] sm:$0xff]
        %v1983 = vld [vmem:[%s1969 + $0x68] sm:$0xff]
        %v1984 = vld [vmem:[%s1969 + $0x70] sm:$0xff]
        %v1985 = vld [vmem:[%s1969 + $0x78] sm:$0xff]
        %s1986 = scalar_lea.vmem %s4, 1
        %v1987 = vld [vmem:[%s1986] sm:$0x1]
        %v1989 = vlaneseq
        %v1990 = vshrl.u32 %v1989, 7
        %v1991 = vsub.s32 0, %v1990
        %v1992 = vrot.slane %v1987, %v1991
        %1994 = vmatprep.subr.mxu0 0.0
        %1995 = vmatpush1.msra.mxu0 %v1970
        %1996 = vmatprep.subr.mxu0 0.0
        %1997 = vmatpush1.msra.mxu0 %v1971
        %1998 = vmatprep.subr.mxu0 0.0
        %1999 = vmatpush1.msra.mxu0 %v1972
        %2000 = vmatprep.subr.mxu0 0.0
        %2001 = vmatpush1.msra.mxu0 %v1973
        %2002 = vmatprep.subr.mxu0 0.0
        %2003 = vmatpush1.msra.mxu0 %v1974
        %2004 = vmatprep.subr.mxu0 0.0
        %2005 = vmatpush1.msra.mxu0 %v1975
        %2006 = vmatprep.subr.mxu0 0.0
        %2007 = vmatpush1.msra.mxu0 %v1976
        %2008 = vmatprep.subr.mxu0 0.0
        %2009 = vmatpush1.msra.mxu0 %v1977
        %2010 = vmatprep.subr.mxu0 0.0
        %2011 = vmatpush1.msra.mxu0 %v1978
        %2012 = vmatprep.subr.mxu0 0.0
        %2013 = vmatpush1.msra.mxu0 %v1979
        %2014 = vmatprep.subr.mxu0 0.0
        %2015 = vmatpush1.msra.mxu0 %v1980
        %2016 = vmatprep.subr.mxu0 0.0
        %2017 = vmatpush1.msra.mxu0 %v1981
        %2018 = vmatprep.subr.mxu0 0.0
        %2019 = vmatpush1.msra.mxu0 %v1982
        %2020 = vmatprep.subr.mxu0 0.0
        %2021 = vmatpush1.msra.mxu0 %v1983
        %2022 = vmatprep.subr.mxu0 0.0
        %2023 = vmatpush1.msra.mxu0 %v1984
        %2024 = vmatprep.subr.mxu0 0.0
        %2025 = vmatpush1.msra.mxu0 %v1985
        %2026 = vmatprep.subr.mxu0 0.0
        %2027 = vmatpush1.msra.mxu0 0.0
        %2028 = vmatprep.subr.mxu0 0.0
        %2029 = vmatpush1.msra.mxu0 0.0
        %2030 = vmatprep.subr.mxu0 0.0
        %2031 = vmatpush1.msra.mxu0 0.0
        %2032 = vmatprep.subr.mxu0 0.0
        %2033 = vmatpush1.msra.mxu0 0.0
        %2034 = vmatprep.subr.mxu0 0.0
        %2035 = vmatpush1.msra.mxu0 0.0
        %2036 = vmatprep.subr.mxu0 0.0
        %2037 = vmatpush1.msra.mxu0 0.0
        %2038 = vmatprep.subr.mxu0 0.0
        %2039 = vmatpush1.msra.mxu0 0.0
        %2040 = vmatprep.subr.mxu0 0.0
        %2041 = vmatpush1.msra.mxu0 0.0
        %2042 = vmatprep.subr.mxu0 0.0
        %2043 = vmatpush1.msra.mxu0 0.0
        %2044 = vmatprep.subr.mxu0 0.0
        %2045 = vmatpush1.msra.mxu0 0.0
        %2046 = vmatprep.subr.mxu0 0.0
        %2047 = vmatpush1.msra.mxu0 0.0
        %2048 = vmatprep.subr.mxu0 0.0
        %2049 = vmatpush1.msra.mxu0 0.0
        %2050 = vmatprep.subr.mxu0 0.0
        %2051 = vmatpush1.msra.mxu0 0.0
        %2052 = vmatprep.subr.mxu0 0.0
        %2053 = vmatpush1.msra.mxu0 0.0
        %2054 = vmatprep.subr.mxu0 0.0
        %2055 = vmatpush1.msra.mxu0 0.0
        %2056 = vmatprep.subr.mxu0 0.0
        %2057 = vmatpush1.msra.mxu0 0.0
        %2058 = vmatprep.mubr.f32.mxu0 0.0
        %2059 = vmatmul.mubr.f32.gmra.mrb[0].mxu0 %v1953
        %v2060 = vpop.f32.mrb[0].mxu0
        %v2061 = vadd.f32 %v1992, %v2060
        %v2062 = vpop.f32.mrb[0].mxu0
        %2063 = vmatprep.mubr.f32.mxu0 0.0
        %2064 = vmatmul.mubr.f32.gmra.mrb[0].mxu0 %v1954
        %v2065 = vpop.f32.mrb[0].mxu0
        %v2066 = vadd.f32 %v1992, %v2065
        %v2067 = vpop.f32.mrb[0].mxu0
        %2068 = vmatprep.mubr.f32.mxu0 0.0
        %2069 = vmatmul.mubr.f32.gmra.mrb[0].mxu0 %v1955
        %v2070 = vpop.f32.mrb[0].mxu0
        %v2071 = vadd.f32 %v1992, %v2070
        %v2072 = vpop.f32.mrb[0].mxu0
        %2073 = vmatprep.mubr.f32.mxu0 0.0
        %2074 = vmatmul.mubr.f32.gmra.mrb[0].mxu0 %v1956
        %v2075 = vpop.f32.mrb[0].mxu0
        %v2076 = vadd.f32 %v1992, %v2075
        %v2077 = vpop.f32.mrb[0].mxu0
        %2078 = vmatprep.mubr.f32.mxu0 0.0
        %2079 = vmatmul.mubr.f32.gmra.mrb[0].mxu0 %v1957
        %v2080 = vpop.f32.mrb[0].mxu0
        %v2081 = vadd.f32 %v1992, %v2080
        %v2082 = vpop.f32.mrb[0].mxu0
        %2083 = vmatprep.mubr.f32.mxu0 0.0
        %2084 = vmatmul.mubr.f32.gmra.mrb[0].mxu0 %v1958
        %v2085 = vpop.f32.mrb[0].mxu0
        %v2086 = vadd.f32 %v1992, %v2085
        %v2087 = vpop.f32.mrb[0].mxu0
        %2088 = vmatprep.mubr.f32.mxu0 0.0
        %2089 = vmatmul.mubr.f32.gmra.mrb[0].mxu0 %v1959
        %v2090 = vpop.f32.mrb[0].mxu0
        %v2091 = vadd.f32 %v1992, %v2090
        %v2092 = vpop.f32.mrb[0].mxu0
        %2093 = vmatprep.mubr.f32.mxu0 0.0
        %2094 = vmatmul.mubr.f32.gmra.mrb[0].mxu0 %v1960
        %v2095 = vpop.f32.mrb[0].mxu0
        %v2096 = vadd.f32 %v1992, %v2095
        %v2097 = vpop.f32.mrb[0].mxu0
        %2098 = vmatprep.mubr.f32.mxu0 0.0
        %2099 = vmatmul.mubr.f32.gmra.mrb[0].mxu0 %v1961
        %v2100 = vpop.f32.mrb[0].mxu0
        %v2101 = vadd.f32 %v1992, %v2100
        %v2102 = vpop.f32.mrb[0].mxu0
        %2103 = vmatprep.mubr.f32.mxu0 0.0
        %2104 = vmatmul.mubr.f32.gmra.mrb[0].mxu0 %v1962
        %v2105 = vpop.f32.mrb[0].mxu0
        %v2106 = vadd.f32 %v1992, %v2105
        %v2107 = vpop.f32.mrb[0].mxu0
        %2108 = vmatprep.mubr.f32.mxu0 0.0
        %2109 = vmatmul.mubr.f32.gmra.mrb[0].mxu0 %v1963
        %v2110 = vpop.f32.mrb[0].mxu0
        %v2111 = vadd.f32 %v1992, %v2110
        %v2112 = vpop.f32.mrb[0].mxu0
        %2113 = vmatprep.mubr.f32.mxu0 0.0
        %2114 = vmatmul.mubr.f32.gmra.mrb[0].mxu0 %v1964
        %v2115 = vpop.f32.mrb[0].mxu0
        %v2116 = vadd.f32 %v1992, %v2115
        %v2117 = vpop.f32.mrb[0].mxu0
        %2118 = vmatprep.mubr.f32.mxu0 0.0
        %2119 = vmatmul.mubr.f32.gmra.mrb[0].mxu0 %v1965
        %v2120 = vpop.f32.mrb[0].mxu0
        %v2121 = vadd.f32 %v1992, %v2120
        %v2122 = vpop.f32.mrb[0].mxu0
        %2123 = vmatprep.mubr.f32.mxu0 0.0
        %2124 = vmatmul.mubr.f32.gmra.mrb[0].mxu0 %v1966
        %v2125 = vpop.f32.mrb[0].mxu0
        %v2126 = vadd.f32 %v1992, %v2125
        %v2127 = vpop.f32.mrb[0].mxu0
        %2128 = vmatprep.mubr.f32.mxu0 0.0
        %2129 = vmatmul.mubr.f32.gmra.mrb[0].mxu0 %v1967
        %v2130 = vpop.f32.mrb[0].mxu0
        %v2131 = vadd.f32 %v1992, %v2130
        %v2132 = vpop.f32.mrb[0].mxu0
        %2133 = vmatprep.mubr.f32.mxu0 0.0
        %2134 = vmatmul.mubr.f32.gmra.mrb[0].mxu0 %v1968
        %v2135 = vpop.f32.mrb[0].mxu0
        %v2136 = vadd.f32 %v1992, %v2135
        %v2137 = vpop.f32.mrb[0].mxu0
        %2138 = vdwg.mxu0
        %v2139 = vmul.f32 %v2061, %v2061
        %v2140 = vmul.f32 %v2066, %v2066
        %v2141 = vmul.f32 %v2071, %v2071
        %v2142 = vmul.f32 %v2076, %v2076
        %v2143 = vmul.f32 %v2081, %v2081
        %v2144 = vmul.f32 %v2086, %v2086
        %v2145 = vmul.f32 %v2091, %v2091
        %v2146 = vmul.f32 %v2096, %v2096
        %v2147 = vmul.f32 %v2101, %v2101
        %v2148 = vmul.f32 %v2106, %v2106
        %v2149 = vmul.f32 %v2111, %v2111
        %v2150 = vmul.f32 %v2116, %v2116
        %v2151 = vmul.f32 %v2121, %v2121
        %v2152 = vmul.f32 %v2126, %v2126
        %v2153 = vmul.f32 %v2131, %v2131
        %v2154 = vmul.f32 %v2136, %v2136
        %v2155 = vmul.f32 %v2061, %v2139
        %v2156 = vmul.f32 %v2066, %v2140
        %v2157 = vmul.f32 %v2071, %v2141
        %v2158 = vmul.f32 %v2076, %v2142
        %v2159 = vmul.f32 %v2081, %v2143
        %v2160 = vmul.f32 %v2086, %v2144
        %v2161 = vmul.f32 %v2091, %v2145
        %v2162 = vmul.f32 %v2096, %v2146
        %v2163 = vmul.f32 %v2101, %v2147
        %v2164 = vmul.f32 %v2106, %v2148
        %v2165 = vmul.f32 %v2111, %v2149
        %v2166 = vmul.f32 %v2116, %v2150
        %v2167 = vmul.f32 %v2121, %v2151
        %v2168 = vmul.f32 %v2126, %v2152
        %v2169 = vmul.f32 %v2131, %v2153
        %v2170 = vmul.f32 %v2136, %v2154
        %v2171 = vmul.f32 %v2155, 0.044715
        %v2172 = vmul.f32 %v2156, 0.044715
        %v2173 = vmul.f32 %v2157, 0.044715
        %v2174 = vmul.f32 %v2158, 0.044715
        %v2175 = vmul.f32 %v2159, 0.044715
        %v2176 = vmul.f32 %v2160, 0.044715
        %v2177 = vmul.f32 %v2161, 0.044715
        %v2178 = vmul.f32 %v2162, 0.044715
        %v2179 = vmul.f32 %v2163, 0.044715
        %v2180 = vmul.f32 %v2164, 0.044715
        %v2181 = vmul.f32 %v2165, 0.044715
        %v2182 = vmul.f32 %v2166, 0.044715
        %v2183 = vmul.f32 %v2167, 0.044715
        %v2184 = vmul.f32 %v2168, 0.044715
        %v2185 = vmul.f32 %v2169, 0.044715
        %v2186 = vmul.f32 %v2170, 0.044715
        %v2187 = vadd.f32 %v2061, %v2171
        %v2188 = vadd.f32 %v2066, %v2172
        %v2189 = vadd.f32 %v2071, %v2173
        %v2190 = vadd.f32 %v2076, %v2174
        %v2191 = vadd.f32 %v2081, %v2175
        %v2192 = vadd.f32 %v2086, %v2176
        %v2193 = vadd.f32 %v2091, %v2177
        %v2194 = vadd.f32 %v2096, %v2178
        %v2195 = vadd.f32 %v2101, %v2179
        %v2196 = vadd.f32 %v2106, %v2180
        %v2197 = vadd.f32 %v2111, %v2181
        %v2198 = vadd.f32 %v2116, %v2182
        %v2199 = vadd.f32 %v2121, %v2183
        %v2200 = vadd.f32 %v2126, %v2184
        %v2201 = vadd.f32 %v2131, %v2185
        %v2202 = vadd.f32 %v2136, %v2186
        %v2203 = vmul.f32 %v2187, 0.7978846
        %v2204 = vmul.f32 %v2188, 0.7978846
        %v2205 = vmul.f32 %v2189, 0.7978846
        %v2206 = vmul.f32 %v2190, 0.7978846
        %v2207 = vmul.f32 %v2191, 0.7978846
        %v2208 = vmul.f32 %v2192, 0.7978846
        %v2209 = vmul.f32 %v2193, 0.7978846
        %v2210 = vmul.f32 %v2194, 0.7978846
        %v2211 = vmul.f32 %v2195, 0.7978846
        %v2212 = vmul.f32 %v2196, 0.7978846
        %v2213 = vmul.f32 %v2197, 0.7978846
        %v2214 = vmul.f32 %v2198, 0.7978846
        %v2215 = vmul.f32 %v2199, 0.7978846
        %v2216 = vmul.f32 %v2200, 0.7978846
        %v2217 = vmul.f32 %v2201, 0.7978846
        %v2218 = vmul.f32 %v2202, 0.7978846
        %v2219 = vtanh.pop %v2203
        %v2220 = vtanh.pop %v2204
        %v2221 = vtanh.pop %v2205
        %v2222 = vtanh.pop %v2206
        %v2223 = vtanh.pop %v2207
        %v2224 = vtanh.pop %v2208
        %v2225 = vtanh.pop %v2209
        %v2226 = vtanh.pop %v2210
        %v2227 = vtanh.pop %v2211
        %v2228 = vtanh.pop %v2212
        %v2229 = vtanh.pop %v2213
        %v2230 = vtanh.pop %v2214
        %v2231 = vtanh.pop %v2215
        %v2232 = vtanh.pop %v2216
        %v2233 = vtanh.pop %v2217
        %v2234 = vtanh.pop %v2218
        %v2235 = vadd.f32 %v2219, 1.0
        %v2236 = vadd.f32 %v2220, 1.0
        %v2237 = vadd.f32 %v2221, 1.0
        %v2238 = vadd.f32 %v2222, 1.0
        %v2239 = vadd.f32 %v2223, 1.0
        %v2240 = vadd.f32 %v2224, 1.0
        %v2241 = vadd.f32 %v2225, 1.0
        %v2242 = vadd.f32 %v2226, 1.0
        %v2243 = vadd.f32 %v2227, 1.0
        %v2244 = vadd.f32 %v2228, 1.0
        %v2245 = vadd.f32 %v2229, 1.0
        %v2246 = vadd.f32 %v2230, 1.0
        %v2247 = vadd.f32 %v2231, 1.0
        %v2248 = vadd.f32 %v2232, 1.0
        %v2249 = vadd.f32 %v2233, 1.0
        %v2250 = vadd.f32 %v2234, 1.0
        %v2251 = vmul.f32 %v2235, 0.5
        %v2252 = vmul.f32 %v2236, 0.5
        %v2253 = vmul.f32 %v2237, 0.5
        %v2254 = vmul.f32 %v2238, 0.5
        %v2255 = vmul.f32 %v2239, 0.5
        %v2256 = vmul.f32 %v2240, 0.5
        %v2257 = vmul.f32 %v2241, 0.5
        %v2258 = vmul.f32 %v2242, 0.5
        %v2259 = vmul.f32 %v2243, 0.5
        %v2260 = vmul.f32 %v2244, 0.5
        %v2261 = vmul.f32 %v2245, 0.5
        %v2262 = vmul.f32 %v2246, 0.5
        %v2263 = vmul.f32 %v2247, 0.5
        %v2264 = vmul.f32 %v2248, 0.5
        %v2265 = vmul.f32 %v2249, 0.5
        %v2266 = vmul.f32 %v2250, 0.5
        %v2267 = vmul.f32 %v2061, %v2251
        %v2268 = vmul.f32 %v2066, %v2252
        %v2269 = vmul.f32 %v2071, %v2253
        %v2270 = vmul.f32 %v2076, %v2254
        %v2271 = vmul.f32 %v2081, %v2255
        %v2272 = vmul.f32 %v2086, %v2256
        %v2273 = vmul.f32 %v2091, %v2257
        %v2274 = vmul.f32 %v2096, %v2258
        %v2275 = vmul.f32 %v2101, %v2259
        %v2276 = vmul.f32 %v2106, %v2260
        %v2277 = vmul.f32 %v2111, %v2261
        %v2278 = vmul.f32 %v2116, %v2262
        %v2279 = vmul.f32 %v2121, %v2263
        %v2280 = vmul.f32 %v2126, %v2264
        %v2281 = vmul.f32 %v2131, %v2265
        %v2282 = vmul.f32 %v2136, %v2266
        %s2283 = scalar_lea.vmem %s5, 32
        %v2284 = vld [vmem:[%s2283] sm:$0xff]
        %v2285 = vld [vmem:[%s2283 + $0x8] sm:$0xff]
        %v2286 = vld [vmem:[%s2283 + $0x10] sm:$0xff]
        %v2287 = vld [vmem:[%s2283 + $0x18] sm:$0xff]
        %s2288 = scalar_lea.vmem %s6, 1
        %v2289 = vld [vmem:[%s2288] sm:$0x1]
        %v2291 = vlaneseq
        %v2292 = vshrl.u32 %v2291, 7
        %v2293 = vsub.s32 0, %v2292
        %v2294 = vrot.slane %v2289, %v2293
        %v2297 = vsel %vm1099, %v2267, 0
        %v2300 = vsel %vm1099, %v2268, 0
        %v2303 = vsel %vm1099, %v2269, 0
        %v2306 = vsel %vm1099, %v2270, 0
        %v2309 = vsel %vm1099, %v2271, 0
        %v2312 = vsel %vm1099, %v2272, 0
        %v2315 = vsel %vm1099, %v2273, 0
        %v2318 = vsel %vm1099, %v2274, 0
        %v2321 = vsel %vm1099, %v2275, 0
        %v2324 = vsel %vm1099, %v2276, 0
        %v2327 = vsel %vm1099, %v2277, 0
        %v2330 = vsel %vm1099, %v2278, 0
        %v2333 = vsel %vm1099, %v2279, 0
        %v2336 = vsel %vm1099, %v2280, 0
        %v2339 = vsel %vm1099, %v2281, 0
        %v2342 = vsel %vm1099, %v2282, 0
        %2344 = vmatprep.subr.mxu0 0.0
        %2345 = vmatpush1.msra.mxu0 %v2284
        %2346 = vmatprep.subr.mxu0 0.0
        %2347 = vmatpush1.msra.mxu0 %v2285
        %2348 = vmatprep.subr.mxu0 0.0
        %2349 = vmatpush1.msra.mxu0 %v2286
        %2350 = vmatprep.subr.mxu0 0.0
        %2351 = vmatpush1.msra.mxu0 %v2287
        %2352 = vmatprep.subr.mxu0 0.0
        %2353 = vmatpush1.msra.mxu0 0.0
        %2354 = vmatprep.subr.mxu0 0.0
        %2355 = vmatpush1.msra.mxu0 0.0
        %2356 = vmatprep.subr.mxu0 0.0
        %2357 = vmatpush1.msra.mxu0 0.0
        %2358 = vmatprep.subr.mxu0 0.0
        %2359 = vmatpush1.msra.mxu0 0.0
        %2360 = vmatprep.subr.mxu0 0.0
        %2361 = vmatpush1.msra.mxu0 0.0
        %2362 = vmatprep.subr.mxu0 0.0
        %2363 = vmatpush1.msra.mxu0 0.0
        %2364 = vmatprep.subr.mxu0 0.0
        %2365 = vmatpush1.msra.mxu0 0.0
        %2366 = vmatprep.subr.mxu0 0.0
        %2367 = vmatpush1.msra.mxu0 0.0
        %2368 = vmatprep.subr.mxu0 0.0
        %2369 = vmatpush1.msra.mxu0 0.0
        %2370 = vmatprep.subr.mxu0 0.0
        %2371 = vmatpush1.msra.mxu0 0.0
        %2372 = vmatprep.subr.mxu0 0.0
        %2373 = vmatpush1.msra.mxu0 0.0
        %2374 = vmatprep.subr.mxu0 0.0
        %2375 = vmatpush1.msra.mxu0 0.0
        %2376 = vmatprep.subr.mxu0 0.0
        %2377 = vmatpush1.msra.mxu0 0.0
        %2378 = vmatprep.subr.mxu0 0.0
        %2379 = vmatpush1.msra.mxu0 0.0
        %2380 = vmatprep.subr.mxu0 0.0
        %2381 = vmatpush1.msra.mxu0 0.0
        %2382 = vmatprep.subr.mxu0 0.0
        %2383 = vmatpush1.msra.mxu0 0.0
        %2384 = vmatprep.subr.mxu0 0.0
        %2385 = vmatpush1.msra.mxu0 0.0
        %2386 = vmatprep.subr.mxu0 0.0
        %2387 = vmatpush1.msra.mxu0 0.0
        %2388 = vmatprep.subr.mxu0 0.0
        %2389 = vmatpush1.msra.mxu0 0.0
        %2390 = vmatprep.subr.mxu0 0.0
        %2391 = vmatpush1.msra.mxu0 0.0
        %2392 = vmatprep.subr.mxu0 0.0
        %2393 = vmatpush1.msra.mxu0 0.0
        %2394 = vmatprep.subr.mxu0 0.0
        %2395 = vmatpush1.msra.mxu0 0.0
        %2396 = vmatprep.subr.mxu0 0.0
        %2397 = vmatpush1.msra.mxu0 0.0
        %2398 = vmatprep.subr.mxu0 0.0
        %2399 = vmatpush1.msra.mxu0 0.0
        %2400 = vmatprep.subr.mxu0 0.0
        %2401 = vmatpush1.msra.mxu0 0.0
        %2402 = vmatprep.subr.mxu0 0.0
        %2403 = vmatpush1.msra.mxu0 0.0
        %2404 = vmatprep.subr.mxu0 0.0
        %2405 = vmatpush1.msra.mxu0 0.0
        %2406 = vmatprep.subr.mxu0 0.0
        %2407 = vmatpush1.msra.mxu0 0.0
        %2408 = vmatprep.mubr.f32.mxu0 0.0
        %2409 = vmatmul.mubr.f32.gmra.mrb[0].mxu0 %v2297
        %v2410 = vpop.f32.mrb[0].mxu0
        %v2411 = vadd.f32 %v2294, %v2410
        %v2412 = vpop.f32.mrb[0].mxu0
        %2413 = vmatprep.mubr.f32.mxu0 0.0
        %2414 = vmatmul.mubr.f32.gmra.mrb[0].mxu0 %v2300
        %v2415 = vpop.f32.mrb[0].mxu0
        %v2416 = vadd.f32 %v2294, %v2415
        %v2417 = vpop.f32.mrb[0].mxu0
        %2418 = vmatprep.mubr.f32.mxu0 0.0
        %2419 = vmatmul.mubr.f32.gmra.mrb[0].mxu0 %v2303
        %v2420 = vpop.f32.mrb[0].mxu0
        %v2421 = vadd.f32 %v2294, %v2420
        %v2422 = vpop.f32.mrb[0].mxu0
        %2423 = vmatprep.mubr.f32.mxu0 0.0
        %2424 = vmatmul.mubr.f32.gmra.mrb[0].mxu0 %v2306
        %v2425 = vpop.f32.mrb[0].mxu0
        %v2426 = vadd.f32 %v2294, %v2425
        %v2427 = vpop.f32.mrb[0].mxu0
        %2428 = vmatprep.mubr.f32.mxu0 0.0
        %2429 = vmatmul.mubr.f32.gmra.mrb[0].mxu0 %v2309
        %v2430 = vpop.f32.mrb[0].mxu0
        %v2431 = vadd.f32 %v2294, %v2430
        %v2432 = vpop.f32.mrb[0].mxu0
        %2433 = vmatprep.mubr.f32.mxu0 0.0
        %2434 = vmatmul.mubr.f32.gmra.mrb[0].mxu0 %v2312
        %v2435 = vpop.f32.mrb[0].mxu0
        %v2436 = vadd.f32 %v2294, %v2435
        %v2437 = vpop.f32.mrb[0].mxu0
        %2438 = vmatprep.mubr.f32.mxu0 0.0
        %2439 = vmatmul.mubr.f32.gmra.mrb[0].mxu0 %v2315
        %v2440 = vpop.f32.mrb[0].mxu0
        %v2441 = vadd.f32 %v2294, %v2440
        %v2442 = vpop.f32.mrb[0].mxu0
        %2443 = vmatprep.mubr.f32.mxu0 0.0
        %2444 = vmatmul.mubr.f32.gmra.mrb[0].mxu0 %v2318
        %v2445 = vpop.f32.mrb[0].mxu0
        %v2446 = vadd.f32 %v2294, %v2445
        %v2447 = vpop.f32.mrb[0].mxu0
        %2448 = vmatprep.mubr.f32.mxu0 0.0
        %2449 = vmatmul.mubr.f32.gmra.mrb[0].mxu0 %v2321
        %v2450 = vpop.f32.mrb[0].mxu0
        %v2451 = vadd.f32 %v2294, %v2450
        %v2452 = vpop.f32.mrb[0].mxu0
        %2453 = vmatprep.mubr.f32.mxu0 0.0
        %2454 = vmatmul.mubr.f32.gmra.mrb[0].mxu0 %v2324
        %v2455 = vpop.f32.mrb[0].mxu0
        %v2456 = vadd.f32 %v2294, %v2455
        %v2457 = vpop.f32.mrb[0].mxu0
        %2458 = vmatprep.mubr.f32.mxu0 0.0
        %2459 = vmatmul.mubr.f32.gmra.mrb[0].mxu0 %v2327
        %v2460 = vpop.f32.mrb[0].mxu0
        %v2461 = vadd.f32 %v2294, %v2460
        %v2462 = vpop.f32.mrb[0].mxu0
        %2463 = vmatprep.mubr.f32.mxu0 0.0
        %2464 = vmatmul.mubr.f32.gmra.mrb[0].mxu0 %v2330
        %v2465 = vpop.f32.mrb[0].mxu0
        %v2466 = vadd.f32 %v2294, %v2465
        %v2467 = vpop.f32.mrb[0].mxu0
        %2468 = vmatprep.mubr.f32.mxu0 0.0
        %2469 = vmatmul.mubr.f32.gmra.mrb[0].mxu0 %v2333
        %v2470 = vpop.f32.mrb[0].mxu0
        %v2471 = vadd.f32 %v2294, %v2470
        %v2472 = vpop.f32.mrb[0].mxu0
        %2473 = vmatprep.mubr.f32.mxu0 0.0
        %2474 = vmatmul.mubr.f32.gmra.mrb[0].mxu0 %v2336
        %v2475 = vpop.f32.mrb[0].mxu0
        %v2476 = vadd.f32 %v2294, %v2475
        %v2477 = vpop.f32.mrb[0].mxu0
        %2478 = vmatprep.mubr.f32.mxu0 0.0
        %2479 = vmatmul.mubr.f32.gmra.mrb[0].mxu0 %v2339
        %v2480 = vpop.f32.mrb[0].mxu0
        %v2481 = vadd.f32 %v2294, %v2480
        %v2482 = vpop.f32.mrb[0].mxu0
        %2483 = vmatprep.mubr.f32.mxu0 0.0
        %2484 = vmatmul.mubr.f32.gmra.mrb[0].mxu0 %v2342
        %v2485 = vpop.f32.mrb[0].mxu0
        %v2486 = vadd.f32 %v2294, %v2485
        %v2487 = vpop.f32.mrb[0].mxu0
        %2488 = vdwg.mxu0
        %v2489 = vmul.f32 %v2411, %v2411
        %v2490 = vmul.f32 %v2416, %v2416
        %v2491 = vmul.f32 %v2421, %v2421
        %v2492 = vmul.f32 %v2426, %v2426
        %v2493 = vmul.f32 %v2431, %v2431
        %v2494 = vmul.f32 %v2436, %v2436
        %v2495 = vmul.f32 %v2441, %v2441
        %v2496 = vmul.f32 %v2446, %v2446
        %v2497 = vmul.f32 %v2451, %v2451
        %v2498 = vmul.f32 %v2456, %v2456
        %v2499 = vmul.f32 %v2461, %v2461
        %v2500 = vmul.f32 %v2466, %v2466
        %v2501 = vmul.f32 %v2471, %v2471
        %v2502 = vmul.f32 %v2476, %v2476
        %v2503 = vmul.f32 %v2481, %v2481
        %v2504 = vmul.f32 %v2486, %v2486
        %v2505 = vmul.f32 %v2411, %v2489
        %v2506 = vmul.f32 %v2416, %v2490
        %v2507 = vmul.f32 %v2421, %v2491
        %v2508 = vmul.f32 %v2426, %v2492
        %v2509 = vmul.f32 %v2431, %v2493
        %v2510 = vmul.f32 %v2436, %v2494
        %v2511 = vmul.f32 %v2441, %v2495
        %v2512 = vmul.f32 %v2446, %v2496
        %v2513 = vmul.f32 %v2451, %v2497
        %v2514 = vmul.f32 %v2456, %v2498
        %v2515 = vmul.f32 %v2461, %v2499
        %v2516 = vmul.f32 %v2466, %v2500
        %v2517 = vmul.f32 %v2471, %v2501
        %v2518 = vmul.f32 %v2476, %v2502
        %v2519 = vmul.f32 %v2481, %v2503
        %v2520 = vmul.f32 %v2486, %v2504
        %v2521 = vmul.f32 %v2505, 0.044715
        %v2522 = vmul.f32 %v2506, 0.044715
        %v2523 = vmul.f32 %v2507, 0.044715
        %v2524 = vmul.f32 %v2508, 0.044715
        %v2525 = vmul.f32 %v2509, 0.044715
        %v2526 = vmul.f32 %v2510, 0.044715
        %v2527 = vmul.f32 %v2511, 0.044715
        %v2528 = vmul.f32 %v2512, 0.044715
        %v2529 = vmul.f32 %v2513, 0.044715
        %v2530 = vmul.f32 %v2514, 0.044715
        %v2531 = vmul.f32 %v2515, 0.044715
        %v2532 = vmul.f32 %v2516, 0.044715
        %v2533 = vmul.f32 %v2517, 0.044715
        %v2534 = vmul.f32 %v2518, 0.044715
        %v2535 = vmul.f32 %v2519, 0.044715
        %v2536 = vmul.f32 %v2520, 0.044715
        %v2537 = vadd.f32 %v2411, %v2521
        %v2538 = vadd.f32 %v2416, %v2522
        %v2539 = vadd.f32 %v2421, %v2523
        %v2540 = vadd.f32 %v2426, %v2524
        %v2541 = vadd.f32 %v2431, %v2525
        %v2542 = vadd.f32 %v2436, %v2526
        %v2543 = vadd.f32 %v2441, %v2527
        %v2544 = vadd.f32 %v2446, %v2528
        %v2545 = vadd.f32 %v2451, %v2529
        %v2546 = vadd.f32 %v2456, %v2530
        %v2547 = vadd.f32 %v2461, %v2531
        %v2548 = vadd.f32 %v2466, %v2532
        %v2549 = vadd.f32 %v2471, %v2533
        %v2550 = vadd.f32 %v2476, %v2534
        %v2551 = vadd.f32 %v2481, %v2535
        %v2552 = vadd.f32 %v2486, %v2536
        %v2553 = vmul.f32 %v2537, 0.7978846
        %v2554 = vmul.f32 %v2538, 0.7978846
        %v2555 = vmul.f32 %v2539, 0.7978846
        %v2556 = vmul.f32 %v2540, 0.7978846
        %v2557 = vmul.f32 %v2541, 0.7978846
        %v2558 = vmul.f32 %v2542, 0.7978846
        %v2559 = vmul.f32 %v2543, 0.7978846
        %v2560 = vmul.f32 %v2544, 0.7978846
        %v2561 = vmul.f32 %v2545, 0.7978846
        %v2562 = vmul.f32 %v2546, 0.7978846
        %v2563 = vmul.f32 %v2547, 0.7978846
        %v2564 = vmul.f32 %v2548, 0.7978846
        %v2565 = vmul.f32 %v2549, 0.7978846
        %v2566 = vmul.f32 %v2550, 0.7978846
        %v2567 = vmul.f32 %v2551, 0.7978846
        %v2568 = vmul.f32 %v2552, 0.7978846
        %v2569 = vtanh.pop %v2553
        %v2570 = vtanh.pop %v2554
        %v2571 = vtanh.pop %v2555
        %v2572 = vtanh.pop %v2556
        %v2573 = vtanh.pop %v2557
        %v2574 = vtanh.pop %v2558
        %v2575 = vtanh.pop %v2559
        %v2576 = vtanh.pop %v2560
        %v2577 = vtanh.pop %v2561
        %v2578 = vtanh.pop %v2562
        %v2579 = vtanh.pop %v2563
        %v2580 = vtanh.pop %v2564
        %v2581 = vtanh.pop %v2565
        %v2582 = vtanh.pop %v2566
        %v2583 = vtanh.pop %v2567
        %v2584 = vtanh.pop %v2568
        %v2585 = vadd.f32 %v2569, 1.0
        %v2586 = vadd.f32 %v2570, 1.0
        %v2587 = vadd.f32 %v2571, 1.0
        %v2588 = vadd.f32 %v2572, 1.0
        %v2589 = vadd.f32 %v2573, 1.0
        %v2590 = vadd.f32 %v2574, 1.0
        %v2591 = vadd.f32 %v2575, 1.0
        %v2592 = vadd.f32 %v2576, 1.0
        %v2593 = vadd.f32 %v2577, 1.0
        %v2594 = vadd.f32 %v2578, 1.0
        %v2595 = vadd.f32 %v2579, 1.0
        %v2596 = vadd.f32 %v2580, 1.0
        %v2597 = vadd.f32 %v2581, 1.0
        %v2598 = vadd.f32 %v2582, 1.0
        %v2599 = vadd.f32 %v2583, 1.0
        %v2600 = vadd.f32 %v2584, 1.0
        %v2601 = vmul.f32 %v2585, 0.5
        %v2602 = vmul.f32 %v2586, 0.5
        %v2603 = vmul.f32 %v2587, 0.5
        %v2604 = vmul.f32 %v2588, 0.5
        %v2605 = vmul.f32 %v2589, 0.5
        %v2606 = vmul.f32 %v2590, 0.5
        %v2607 = vmul.f32 %v2591, 0.5
        %v2608 = vmul.f32 %v2592, 0.5
        %v2609 = vmul.f32 %v2593, 0.5
        %v2610 = vmul.f32 %v2594, 0.5
        %v2611 = vmul.f32 %v2595, 0.5
        %v2612 = vmul.f32 %v2596, 0.5
        %v2613 = vmul.f32 %v2597, 0.5
        %v2614 = vmul.f32 %v2598, 0.5
        %v2615 = vmul.f32 %v2599, 0.5
        %v2616 = vmul.f32 %v2600, 0.5
        %v2617 = vmul.f32 %v2411, %v2601
        %v2618 = vmul.f32 %v2416, %v2602
        %v2619 = vmul.f32 %v2421, %v2603
        %v2620 = vmul.f32 %v2426, %v2604
        %v2621 = vmul.f32 %v2431, %v2605
        %v2622 = vmul.f32 %v2436, %v2606
        %v2623 = vmul.f32 %v2441, %v2607
        %v2624 = vmul.f32 %v2446, %v2608
        %v2625 = vmul.f32 %v2451, %v2609
        %v2626 = vmul.f32 %v2456, %v2610
        %v2627 = vmul.f32 %v2461, %v2611
        %v2628 = vmul.f32 %v2466, %v2612
        %v2629 = vmul.f32 %v2471, %v2613
        %v2630 = vmul.f32 %v2476, %v2614
        %v2631 = vmul.f32 %v2481, %v2615
        %v2632 = vmul.f32 %v2486, %v2616
        %s2633 = scalar_lea.vmem %s7, 128
        %v2634 = vld [vmem:[%s2633] sm:$0xff]
        %v2635 = vld [vmem:[%s2633 + $0x8] sm:$0xff]
        %v2636 = vld [vmem:[%s2633 + $0x10] sm:$0xff]
        %v2637 = vld [vmem:[%s2633 + $0x18] sm:$0xff]
        %v2638 = vld [vmem:[%s2633 + $0x20] sm:$0xff]
        %v2639 = vld [vmem:[%s2633 + $0x28] sm:$0xff]
        %v2640 = vld [vmem:[%s2633 + $0x30] sm:$0xff]
        %v2641 = vld [vmem:[%s2633 + $0x38] sm:$0xff]
        %v2642 = vld [vmem:[%s2633 + $0x40] sm:$0xff]
        %v2643 = vld [vmem:[%s2633 + $0x48] sm:$0xff]
        %v2644 = vld [vmem:[%s2633 + $0x50] sm:$0xff]
        %v2645 = vld [vmem:[%s2633 + $0x58] sm:$0xff]
        %v2646 = vld [vmem:[%s2633 + $0x60] sm:$0xff]
        %v2647 = vld [vmem:[%s2633 + $0x68] sm:$0xff]
        %v2648 = vld [vmem:[%s2633 + $0x70] sm:$0xff]
        %v2649 = vld [vmem:[%s2633 + $0x78] sm:$0xff]
        %s2650 = scalar_lea.vmem %s8, 1
        %v2651 = vld [vmem:[%s2650] sm:$0x1]
        %v2653 = vlaneseq
        %v2654 = vshrl.u32 %v2653, 7
        %v2655 = vsub.s32 0, %v2654
        %v2656 = vrot.slane %v2651, %v2655
        %2658 = vmatprep.subr.mxu0 0.0
        %2659 = vmatpush1.msra.mxu0 %v2634
        %2660 = vmatprep.subr.mxu0 0.0
        %2661 = vmatpush1.msra.mxu0 %v2635
        %2662 = vmatprep.subr.mxu0 0.0
        %2663 = vmatpush1.msra.mxu0 %v2636
        %2664 = vmatprep.subr.mxu0 0.0
        %2665 = vmatpush1.msra.mxu0 %v2637
        %2666 = vmatprep.subr.mxu0 0.0
        %2667 = vmatpush1.msra.mxu0 %v2638
        %2668 = vmatprep.subr.mxu0 0.0
        %2669 = vmatpush1.msra.mxu0 %v2639
        %2670 = vmatprep.subr.mxu0 0.0
        %2671 = vmatpush1.msra.mxu0 %v2640
        %2672 = vmatprep.subr.mxu0 0.0
        %2673 = vmatpush1.msra.mxu0 %v2641
        %2674 = vmatprep.subr.mxu0 0.0
        %2675 = vmatpush1.msra.mxu0 %v2642
        %2676 = vmatprep.subr.mxu0 0.0
        %2677 = vmatpush1.msra.mxu0 %v2643
        %2678 = vmatprep.subr.mxu0 0.0
        %2679 = vmatpush1.msra.mxu0 %v2644
        %2680 = vmatprep.subr.mxu0 0.0
        %2681 = vmatpush1.msra.mxu0 %v2645
        %2682 = vmatprep.subr.mxu0 0.0
        %2683 = vmatpush1.msra.mxu0 %v2646
        %2684 = vmatprep.subr.mxu0 0.0
        %2685 = vmatpush1.msra.mxu0 %v2647
        %2686 = vmatprep.subr.mxu0 0.0
        %2687 = vmatpush1.msra.mxu0 %v2648
        %2688 = vmatprep.subr.mxu0 0.0
        %2689 = vmatpush1.msra.mxu0 %v2649
        %2690 = vmatprep.subr.mxu0 0.0
        %2691 = vmatpush1.msra.mxu0 0.0
        %2692 = vmatprep.subr.mxu0 0.0
        %2693 = vmatpush1.msra.mxu0 0.0
        %2694 = vmatprep.subr.mxu0 0.0
        %2695 = vmatpush1.msra.mxu0 0.0
        %2696 = vmatprep.subr.mxu0 0.0
        %2697 = vmatpush1.msra.mxu0 0.0
        %2698 = vmatprep.subr.mxu0 0.0
        %2699 = vmatpush1.msra.mxu0 0.0
        %2700 = vmatprep.subr.mxu0 0.0
        %2701 = vmatpush1.msra.mxu0 0.0
        %2702 = vmatprep.subr.mxu0 0.0
        %2703 = vmatpush1.msra.mxu0 0.0
        %2704 = vmatprep.subr.mxu0 0.0
        %2705 = vmatpush1.msra.mxu0 0.0
        %2706 = vmatprep.subr.mxu0 0.0
        %2707 = vmatpush1.msra.mxu0 0.0
        %2708 = vmatprep.subr.mxu0 0.0
        %2709 = vmatpush1.msra.mxu0 0.0
        %2710 = vmatprep.subr.mxu0 0.0
        %2711 = vmatpush1.msra.mxu0 0.0
        %2712 = vmatprep.subr.mxu0 0.0
        %2713 = vmatpush1.msra.mxu0 0.0
        %2714 = vmatprep.subr.mxu0 0.0
        %2715 = vmatpush1.msra.mxu0 0.0
        %2716 = vmatprep.subr.mxu0 0.0
        %2717 = vmatpush1.msra.mxu0 0.0
        %2718 = vmatprep.subr.mxu0 0.0
        %2719 = vmatpush1.msra.mxu0 0.0
        %2720 = vmatprep.subr.mxu0 0.0
        %2721 = vmatpush1.msra.mxu0 0.0
        %2722 = vmatprep.mubr.f32.mxu0 0.0
        %2723 = vmatmul.mubr.f32.gmra.mrb[0].mxu0 %v2617
        %v2724 = vpop.f32.mrb[0].mxu0
        %v2725 = vadd.f32 %v2656, %v2724
        %v2726 = vpop.f32.mrb[0].mxu0
        %2727 = vmatprep.mubr.f32.mxu0 0.0
        %2728 = vmatmul.mubr.f32.gmra.mrb[0].mxu0 %v2618
        %v2729 = vpop.f32.mrb[0].mxu0
        %v2730 = vadd.f32 %v2656, %v2729
        %v2731 = vpop.f32.mrb[0].mxu0
        %2732 = vmatprep.mubr.f32.mxu0 0.0
        %2733 = vmatmul.mubr.f32.gmra.mrb[0].mxu0 %v2619
        %v2734 = vpop.f32.mrb[0].mxu0
        %v2735 = vadd.f32 %v2656, %v2734
        %v2736 = vpop.f32.mrb[0].mxu0
        %2737 = vmatprep.mubr.f32.mxu0 0.0
        %2738 = vmatmul.mubr.f32.gmra.mrb[0].mxu0 %v2620
        %v2739 = vpop.f32.mrb[0].mxu0
        %v2740 = vadd.f32 %v2656, %v2739
        %v2741 = vpop.f32.mrb[0].mxu0
        %2742 = vmatprep.mubr.f32.mxu0 0.0
        %2743 = vmatmul.mubr.f32.gmra.mrb[0].mxu0 %v2621
        %v2744 = vpop.f32.mrb[0].mxu0
        %v2745 = vadd.f32 %v2656, %v2744
        %v2746 = vpop.f32.mrb[0].mxu0
        %2747 = vmatprep.mubr.f32.mxu0 0.0
        %2748 = vmatmul.mubr.f32.gmra.mrb[0].mxu0 %v2622
        %v2749 = vpop.f32.mrb[0].mxu0
        %v2750 = vadd.f32 %v2656, %v2749
        %v2751 = vpop.f32.mrb[0].mxu0
        %2752 = vmatprep.mubr.f32.mxu0 0.0
        %2753 = vmatmul.mubr.f32.gmra.mrb[0].mxu0 %v2623
        %v2754 = vpop.f32.mrb[0].mxu0
        %v2755 = vadd.f32 %v2656, %v2754
        %v2756 = vpop.f32.mrb[0].mxu0
        %2757 = vmatprep.mubr.f32.mxu0 0.0
        %2758 = vmatmul.mubr.f32.gmra.mrb[0].mxu0 %v2624
        %v2759 = vpop.f32.mrb[0].mxu0
        %v2760 = vadd.f32 %v2656, %v2759
        %v2761 = vpop.f32.mrb[0].mxu0
        %2762 = vmatprep.mubr.f32.mxu0 0.0
        %2763 = vmatmul.mubr.f32.gmra.mrb[0].mxu0 %v2625
        %v2764 = vpop.f32.mrb[0].mxu0
        %v2765 = vadd.f32 %v2656, %v2764
        %v2766 = vpop.f32.mrb[0].mxu0
        %2767 = vmatprep.mubr.f32.mxu0 0.0
        %2768 = vmatmul.mubr.f32.gmra.mrb[0].mxu0 %v2626
        %v2769 = vpop.f32.mrb[0].mxu0
        %v2770 = vadd.f32 %v2656, %v2769
        %v2771 = vpop.f32.mrb[0].mxu0
        %2772 = vmatprep.mubr.f32.mxu0 0.0
        %2773 = vmatmul.mubr.f32.gmra.mrb[0].mxu0 %v2627
        %v2774 = vpop.f32.mrb[0].mxu0
        %v2775 = vadd.f32 %v2656, %v2774
        %v2776 = vpop.f32.mrb[0].mxu0
        %2777 = vmatprep.mubr.f32.mxu0 0.0
        %2778 = vmatmul.mubr.f32.gmra.mrb[0].mxu0 %v2628
        %v2779 = vpop.f32.mrb[0].mxu0
        %v2780 = vadd.f32 %v2656, %v2779
        %v2781 = vpop.f32.mrb[0].mxu0
        %2782 = vmatprep.mubr.f32.mxu0 0.0
        %2783 = vmatmul.mubr.f32.gmra.mrb[0].mxu0 %v2629
        %v2784 = vpop.f32.mrb[0].mxu0
        %v2785 = vadd.f32 %v2656, %v2784
        %v2786 = vpop.f32.mrb[0].mxu0
        %2787 = vmatprep.mubr.f32.mxu0 0.0
        %2788 = vmatmul.mubr.f32.gmra.mrb[0].mxu0 %v2630
        %v2789 = vpop.f32.mrb[0].mxu0
        %v2790 = vadd.f32 %v2656, %v2789
        %v2791 = vpop.f32.mrb[0].mxu0
        %2792 = vmatprep.mubr.f32.mxu0 0.0
        %2793 = vmatmul.mubr.f32.gmra.mrb[0].mxu0 %v2631
        %v2794 = vpop.f32.mrb[0].mxu0
        %v2795 = vadd.f32 %v2656, %v2794
        %v2796 = vpop.f32.mrb[0].mxu0
        %2797 = vmatprep.mubr.f32.mxu0 0.0
        %2798 = vmatmul.mubr.f32.gmra.mrb[0].mxu0 %v2632
        %v2799 = vpop.f32.mrb[0].mxu0
        %v2800 = vadd.f32 %v2656, %v2799
        %v2801 = vpop.f32.mrb[0].mxu0
        %2802 = vdwg.mxu0
        %v2803 = vmul.f32 %v2725, %v2725
        %v2804 = vmul.f32 %v2730, %v2730
        %v2805 = vmul.f32 %v2735, %v2735
        %v2806 = vmul.f32 %v2740, %v2740
        %v2807 = vmul.f32 %v2745, %v2745
        %v2808 = vmul.f32 %v2750, %v2750
        %v2809 = vmul.f32 %v2755, %v2755
        %v2810 = vmul.f32 %v2760, %v2760
        %v2811 = vmul.f32 %v2765, %v2765
        %v2812 = vmul.f32 %v2770, %v2770
        %v2813 = vmul.f32 %v2775, %v2775
        %v2814 = vmul.f32 %v2780, %v2780
        %v2815 = vmul.f32 %v2785, %v2785
        %v2816 = vmul.f32 %v2790, %v2790
        %v2817 = vmul.f32 %v2795, %v2795
        %v2818 = vmul.f32 %v2800, %v2800
        %v2819 = vmul.f32 %v2725, %v2803
        %v2820 = vmul.f32 %v2730, %v2804
        %v2821 = vmul.f32 %v2735, %v2805
        %v2822 = vmul.f32 %v2740, %v2806
        %v2823 = vmul.f32 %v2745, %v2807
        %v2824 = vmul.f32 %v2750, %v2808
        %v2825 = vmul.f32 %v2755, %v2809
        %v2826 = vmul.f32 %v2760, %v2810
        %v2827 = vmul.f32 %v2765, %v2811
        %v2828 = vmul.f32 %v2770, %v2812
        %v2829 = vmul.f32 %v2775, %v2813
        %v2830 = vmul.f32 %v2780, %v2814
        %v2831 = vmul.f32 %v2785, %v2815
        %v2832 = vmul.f32 %v2790, %v2816
        %v2833 = vmul.f32 %v2795, %v2817
        %v2834 = vmul.f32 %v2800, %v2818
        %v2835 = vmul.f32 %v2819, 0.044715
        %v2836 = vmul.f32 %v2820, 0.044715
        %v2837 = vmul.f32 %v2821, 0.044715
        %v2838 = vmul.f32 %v2822, 0.044715
        %v2839 = vmul.f32 %v2823, 0.044715
        %v2840 = vmul.f32 %v2824, 0.044715
        %v2841 = vmul.f32 %v2825, 0.044715
        %v2842 = vmul.f32 %v2826, 0.044715
        %v2843 = vmul.f32 %v2827, 0.044715
        %v2844 = vmul.f32 %v2828, 0.044715
        %v2845 = vmul.f32 %v2829, 0.044715
        %v2846 = vmul.f32 %v2830, 0.044715
        %v2847 = vmul.f32 %v2831, 0.044715
        %v2848 = vmul.f32 %v2832, 0.044715
        %v2849 = vmul.f32 %v2833, 0.044715
        %v2850 = vmul.f32 %v2834, 0.044715
        %v2851 = vadd.f32 %v2725, %v2835
        %v2852 = vadd.f32 %v2730, %v2836
        %v2853 = vadd.f32 %v2735, %v2837
        %v2854 = vadd.f32 %v2740, %v2838
        %v2855 = vadd.f32 %v2745, %v2839
        %v2856 = vadd.f32 %v2750, %v2840
        %v2857 = vadd.f32 %v2755, %v2841
        %v2858 = vadd.f32 %v2760, %v2842
        %v2859 = vadd.f32 %v2765, %v2843
        %v2860 = vadd.f32 %v2770, %v2844
        %v2861 = vadd.f32 %v2775, %v2845
        %v2862 = vadd.f32 %v2780, %v2846
        %v2863 = vadd.f32 %v2785, %v2847
        %v2864 = vadd.f32 %v2790, %v2848
        %v2865 = vadd.f32 %v2795, %v2849
        %v2866 = vadd.f32 %v2800, %v2850
        %v2867 = vmul.f32 %v2851, 0.7978846
        %v2868 = vmul.f32 %v2852, 0.7978846
        %v2869 = vmul.f32 %v2853, 0.7978846
        %v2870 = vmul.f32 %v2854, 0.7978846
        %v2871 = vmul.f32 %v2855, 0.7978846
        %v2872 = vmul.f32 %v2856, 0.7978846
        %v2873 = vmul.f32 %v2857, 0.7978846
        %v2874 = vmul.f32 %v2858, 0.7978846
        %v2875 = vmul.f32 %v2859, 0.7978846
        %v2876 = vmul.f32 %v2860, 0.7978846
        %v2877 = vmul.f32 %v2861, 0.7978846
        %v2878 = vmul.f32 %v2862, 0.7978846
        %v2879 = vmul.f32 %v2863, 0.7978846
        %v2880 = vmul.f32 %v2864, 0.7978846
        %v2881 = vmul.f32 %v2865, 0.7978846
        %v2882 = vmul.f32 %v2866, 0.7978846
        %v2883 = vtanh.pop %v2867
        %v2884 = vtanh.pop %v2868
        %v2885 = vtanh.pop %v2869
        %v2886 = vtanh.pop %v2870
        %v2887 = vtanh.pop %v2871
        %v2888 = vtanh.pop %v2872
        %v2889 = vtanh.pop %v2873
        %v2890 = vtanh.pop %v2874
        %v2891 = vtanh.pop %v2875
        %v2892 = vtanh.pop %v2876
        %v2893 = vtanh.pop %v2877
        %v2894 = vtanh.pop %v2878
        %v2895 = vtanh.pop %v2879
        %v2896 = vtanh.pop %v2880
        %v2897 = vtanh.pop %v2881
        %v2898 = vtanh.pop %v2882
        %v2899 = vadd.f32 %v2883, 1.0
        %v2900 = vadd.f32 %v2884, 1.0
        %v2901 = vadd.f32 %v2885, 1.0
        %v2902 = vadd.f32 %v2886, 1.0
        %v2903 = vadd.f32 %v2887, 1.0
        %v2904 = vadd.f32 %v2888, 1.0
        %v2905 = vadd.f32 %v2889, 1.0
        %v2906 = vadd.f32 %v2890, 1.0
        %v2907 = vadd.f32 %v2891, 1.0
        %v2908 = vadd.f32 %v2892, 1.0
        %v2909 = vadd.f32 %v2893, 1.0
        %v2910 = vadd.f32 %v2894, 1.0
        %v2911 = vadd.f32 %v2895, 1.0
        %v2912 = vadd.f32 %v2896, 1.0
        %v2913 = vadd.f32 %v2897, 1.0
        %v2914 = vadd.f32 %v2898, 1.0
        %v2915 = vmul.f32 %v2899, 0.5
        %v2916 = vmul.f32 %v2900, 0.5
        %v2917 = vmul.f32 %v2901, 0.5
        %v2918 = vmul.f32 %v2902, 0.5
        %v2919 = vmul.f32 %v2903, 0.5
        %v2920 = vmul.f32 %v2904, 0.5
        %v2921 = vmul.f32 %v2905, 0.5
        %v2922 = vmul.f32 %v2906, 0.5
        %v2923 = vmul.f32 %v2907, 0.5
        %v2924 = vmul.f32 %v2908, 0.5
        %v2925 = vmul.f32 %v2909, 0.5
        %v2926 = vmul.f32 %v2910, 0.5
        %v2927 = vmul.f32 %v2911, 0.5
        %v2928 = vmul.f32 %v2912, 0.5
        %v2929 = vmul.f32 %v2913, 0.5
        %v2930 = vmul.f32 %v2914, 0.5
        %v2931 = vmul.f32 %v2725, %v2915
        %v2932 = vmul.f32 %v2730, %v2916
        %v2933 = vmul.f32 %v2735, %v2917
        %v2934 = vmul.f32 %v2740, %v2918
        %v2935 = vmul.f32 %v2745, %v2919
        %v2936 = vmul.f32 %v2750, %v2920
        %v2937 = vmul.f32 %v2755, %v2921
        %v2938 = vmul.f32 %v2760, %v2922
        %v2939 = vmul.f32 %v2765, %v2923
        %v2940 = vmul.f32 %v2770, %v2924
        %v2941 = vmul.f32 %v2775, %v2925
        %v2942 = vmul.f32 %v2780, %v2926
        %v2943 = vmul.f32 %v2785, %v2927
        %v2944 = vmul.f32 %v2790, %v2928
        %v2945 = vmul.f32 %v2795, %v2929
        %v2946 = vmul.f32 %v2800, %v2930
        %s2947 = scalar_lea.vmem %s9, 32
        %v2948 = vld [vmem:[%s2947] sm:$0xff]
        %v2949 = vld [vmem:[%s2947 + $0x8] sm:$0xff]
        %v2950 = vld [vmem:[%s2947 + $0x10] sm:$0xff]
        %v2951 = vld [vmem:[%s2947 + $0x18] sm:$0xff]
        %s2952 = scalar_lea.vmem %s10, 1
        %v2953 = vld [vmem:[%s2952] sm:$0x1]
        %v2955 = vlaneseq
        %v2956 = vshrl.u32 %v2955, 7
        %v2957 = vsub.s32 0, %v2956
        %v2958 = vrot.slane %v2953, %v2957
        %v2961 = vsel %vm1099, %v2931, 0
        %v2964 = vsel %vm1099, %v2932, 0
        %v2967 = vsel %vm1099, %v2933, 0
        %v2970 = vsel %vm1099, %v2934, 0
        %v2973 = vsel %vm1099, %v2935, 0
        %v2976 = vsel %vm1099, %v2936, 0
        %v2979 = vsel %vm1099, %v2937, 0
        %v2982 = vsel %vm1099, %v2938, 0
        %v2985 = vsel %vm1099, %v2939, 0
        %v2988 = vsel %vm1099, %v2940, 0
        %v2991 = vsel %vm1099, %v2941, 0
        %v2994 = vsel %vm1099, %v2942, 0
        %v2997 = vsel %vm1099, %v2943, 0
        %v3000 = vsel %vm1099, %v2944, 0
        %v3003 = vsel %vm1099, %v2945, 0
        %v3006 = vsel %vm1099, %v2946, 0
        %3008 = vmatprep.subr.mxu0 0.0
        %3009 = vmatpush1.msra.mxu0 %v2948
        %3010 = vmatprep.subr.mxu0 0.0
        %3011 = vmatpush1.msra.mxu0 %v2949
        %3012 = vmatprep.subr.mxu0 0.0
        %3013 = vmatpush1.msra.mxu0 %v2950
        %3014 = vmatprep.subr.mxu0 0.0
        %3015 = vmatpush1.msra.mxu0 %v2951
        %3016 = vmatprep.subr.mxu0 0.0
        %3017 = vmatpush1.msra.mxu0 0.0
        %3018 = vmatprep.subr.mxu0 0.0
        %3019 = vmatpush1.msra.mxu0 0.0
        %3020 = vmatprep.subr.mxu0 0.0
        %3021 = vmatpush1.msra.mxu0 0.0
        %3022 = vmatprep.subr.mxu0 0.0
        %3023 = vmatpush1.msra.mxu0 0.0
        %3024 = vmatprep.subr.mxu0 0.0
        %3025 = vmatpush1.msra.mxu0 0.0
        %3026 = vmatprep.subr.mxu0 0.0
        %3027 = vmatpush1.msra.mxu0 0.0
        %3028 = vmatprep.subr.mxu0 0.0
        %3029 = vmatpush1.msra.mxu0 0.0
        %3030 = vmatprep.subr.mxu0 0.0
        %3031 = vmatpush1.msra.mxu0 0.0
        %3032 = vmatprep.subr.mxu0 0.0
        %3033 = vmatpush1.msra.mxu0 0.0
        %3034 = vmatprep.subr.mxu0 0.0
        %3035 = vmatpush1.msra.mxu0 0.0
        %3036 = vmatprep.subr.mxu0 0.0
        %3037 = vmatpush1.msra.mxu0 0.0
        %3038 = vmatprep.subr.mxu0 0.0
        %3039 = vmatpush1.msra.mxu0 0.0
        %3040 = vmatprep.subr.mxu0 0.0
        %3041 = vmatpush1.msra.mxu0 0.0
        %3042 = vmatprep.subr.mxu0 0.0
        %3043 = vmatpush1.msra.mxu0 0.0
        %3044 = vmatprep.subr.mxu0 0.0
        %3045 = vmatpush1.msra.mxu0 0.0
        %3046 = vmatprep.subr.mxu0 0.0
        %3047 = vmatpush1.msra.mxu0 0.0
        %3048 = vmatprep.subr.mxu0 0.0
        %3049 = vmatpush1.msra.mxu0 0.0
        %3050 = vmatprep.subr.mxu0 0.0
        %3051 = vmatpush1.msra.mxu0 0.0
        %3052 = vmatprep.subr.mxu0 0.0
        %3053 = vmatpush1.msra.mxu0 0.0
        %3054 = vmatprep.subr.mxu0 0.0
        %3055 = vmatpush1.msra.mxu0 0.0
        %3056 = vmatprep.subr.mxu0 0.0
        %3057 = vmatpush1.msra.mxu0 0.0
        %3058 = vmatprep.subr.mxu0 0.0
        %3059 = vmatpush1.msra.mxu0 0.0
        %3060 = vmatprep.subr.mxu0 0.0
        %3061 = vmatpush1.msra.mxu0 0.0
        %3062 = vmatprep.subr.mxu0 0.0
        %3063 = vmatpush1.msra.mxu0 0.0
        %3064 = vmatprep.subr.mxu0 0.0
        %3065 = vmatpush1.msra.mxu0 0.0
        %3066 = vmatprep.subr.mxu0 0.0
        %3067 = vmatpush1.msra.mxu0 0.0
        %3068 = vmatprep.subr.mxu0 0.0
        %3069 = vmatpush1.msra.mxu0 0.0
        %3070 = vmatprep.subr.mxu0 0.0
        %3071 = vmatpush1.msra.mxu0 0.0
        %3072 = vmatprep.mubr.f32.mxu0 0.0
        %3073 = vmatmul.mubr.f32.gmra.mrb[0].mxu0 %v2961
        %v3074 = vpop.f32.mrb[0].mxu0
        %v3075 = vadd.f32 %v2958, %v3074
        %v3076 = vpop.f32.mrb[0].mxu0
        %3077 = vmatprep.mubr.f32.mxu0 0.0
        %3078 = vmatmul.mubr.f32.gmra.mrb[0].mxu0 %v2964
        %v3079 = vpop.f32.mrb[0].mxu0
        %v3080 = vadd.f32 %v2958, %v3079
        %v3081 = vpop.f32.mrb[0].mxu0
        %3082 = vmatprep.mubr.f32.mxu0 0.0
        %3083 = vmatmul.mubr.f32.gmra.mrb[0].mxu0 %v2967
        %v3084 = vpop.f32.mrb[0].mxu0
        %v3085 = vadd.f32 %v2958, %v3084
        %v3086 = vpop.f32.mrb[0].mxu0
        %3087 = vmatprep.mubr.f32.mxu0 0.0
        %3088 = vmatmul.mubr.f32.gmra.mrb[0].mxu0 %v2970
        %v3089 = vpop.f32.mrb[0].mxu0
        %v3090 = vadd.f32 %v2958, %v3089
        %v3091 = vpop.f32.mrb[0].mxu0
        %3092 = vmatprep.mubr.f32.mxu0 0.0
        %3093 = vmatmul.mubr.f32.gmra.mrb[0].mxu0 %v2973
        %v3094 = vpop.f32.mrb[0].mxu0
        %v3095 = vadd.f32 %v2958, %v3094
        %v3096 = vpop.f32.mrb[0].mxu0
        %3097 = vmatprep.mubr.f32.mxu0 0.0
        %3098 = vmatmul.mubr.f32.gmra.mrb[0].mxu0 %v2976
        %v3099 = vpop.f32.mrb[0].mxu0
        %v3100 = vadd.f32 %v2958, %v3099
        %v3101 = vpop.f32.mrb[0].mxu0
        %3102 = vmatprep.mubr.f32.mxu0 0.0
        %3103 = vmatmul.mubr.f32.gmra.mrb[0].mxu0 %v2979
        %v3104 = vpop.f32.mrb[0].mxu0
        %v3105 = vadd.f32 %v2958, %v3104
        %v3106 = vpop.f32.mrb[0].mxu0
        %3107 = vmatprep.mubr.f32.mxu0 0.0
        %3108 = vmatmul.mubr.f32.gmra.mrb[0].mxu0 %v2982
        %v3109 = vpop.f32.mrb[0].mxu0
        %v3110 = vadd.f32 %v2958, %v3109
        %v3111 = vpop.f32.mrb[0].mxu0
        %3112 = vmatprep.mubr.f32.mxu0 0.0
        %3113 = vmatmul.mubr.f32.gmra.mrb[0].mxu0 %v2985
        %v3114 = vpop.f32.mrb[0].mxu0
        %v3115 = vadd.f32 %v2958, %v3114
        %v3116 = vpop.f32.mrb[0].mxu0
        %3117 = vmatprep.mubr.f32.mxu0 0.0
        %3118 = vmatmul.mubr.f32.gmra.mrb[0].mxu0 %v2988
        %v3119 = vpop.f32.mrb[0].mxu0
        %v3120 = vadd.f32 %v2958, %v3119
        %v3121 = vpop.f32.mrb[0].mxu0
        %3122 = vmatprep.mubr.f32.mxu0 0.0
        %3123 = vmatmul.mubr.f32.gmra.mrb[0].mxu0 %v2991
        %v3124 = vpop.f32.mrb[0].mxu0
        %v3125 = vadd.f32 %v2958, %v3124
        %v3126 = vpop.f32.mrb[0].mxu0
        %3127 = vmatprep.mubr.f32.mxu0 0.0
        %3128 = vmatmul.mubr.f32.gmra.mrb[0].mxu0 %v2994
        %v3129 = vpop.f32.mrb[0].mxu0
        %v3130 = vadd.f32 %v2958, %v3129
        %v3131 = vpop.f32.mrb[0].mxu0
        %3132 = vmatprep.mubr.f32.mxu0 0.0
        %3133 = vmatmul.mubr.f32.gmra.mrb[0].mxu0 %v2997
        %v3134 = vpop.f32.mrb[0].mxu0
        %v3135 = vadd.f32 %v2958, %v3134
        %v3136 = vpop.f32.mrb[0].mxu0
        %3137 = vmatprep.mubr.f32.mxu0 0.0
        %3138 = vmatmul.mubr.f32.gmra.mrb[0].mxu0 %v3000
        %v3139 = vpop.f32.mrb[0].mxu0
        %v3140 = vadd.f32 %v2958, %v3139
        %v3141 = vpop.f32.mrb[0].mxu0
        %3142 = vmatprep.mubr.f32.mxu0 0.0
        %3143 = vmatmul.mubr.f32.gmra.mrb[0].mxu0 %v3003
        %v3144 = vpop.f32.mrb[0].mxu0
        %v3145 = vadd.f32 %v2958, %v3144
        %v3146 = vpop.f32.mrb[0].mxu0
        %3147 = vmatprep.mubr.f32.mxu0 0.0
        %3148 = vmatmul.mubr.f32.gmra.mrb[0].mxu0 %v3006
        %v3149 = vpop.f32.mrb[0].mxu0
        %v3150 = vadd.f32 %v2958, %v3149
        %v3151 = vpop.f32.mrb[0].mxu0
        %3152 = vdwg.mxu0
        %v3153 = vadd.f32 %v1953, %v3075
        %v3154 = vadd.f32 %v1954, %v3080
        %v3155 = vadd.f32 %v1955, %v3085
        %v3156 = vadd.f32 %v1956, %v3090
        %v3157 = vadd.f32 %v1957, %v3095
        %v3158 = vadd.f32 %v1958, %v3100
        %v3159 = vadd.f32 %v1959, %v3105
        %v3160 = vadd.f32 %v1960, %v3110
        %v3161 = vadd.f32 %v1961, %v3115
        %v3162 = vadd.f32 %v1962, %v3120
        %v3163 = vadd.f32 %v1963, %v3125
        %v3164 = vadd.f32 %v1964, %v3130
        %v3165 = vadd.f32 %v1965, %v3135
        %v3166 = vadd.f32 %v1966, %v3140
        %v3167 = vadd.f32 %v1967, %v3145
        %v3168 = vadd.f32 %v1968, %v3150
        %v3169 = vsub.f32 %v3153, %v743
        %v3170 = vsub.f32 %v3154, %v748
        %v3171 = vsub.f32 %v3155, %v753
        %v3172 = vsub.f32 %v3156, %v758
        %v3173 = vsub.f32 %v3157, %v743
        %v3174 = vsub.f32 %v3158, %v748
        %v3175 = vsub.f32 %v3159, %v753
        %v3176 = vsub.f32 %v3160, %v758
        %v3177 = vsub.f32 %v3161, %v743
        %v3178 = vsub.f32 %v3162, %v748
        %v3179 = vsub.f32 %v3163, %v753
        %v3180 = vsub.f32 %v3164, %v758
        %v3181 = vsub.f32 %v3165, %v743
        %v3182 = vsub.f32 %v3166, %v748
        %v3183 = vsub.f32 %v3167, %v753
        %v3184 = vsub.f32 %v3168, %v758
        %v3185 = vadd.f32 %v696, 1e-10
        %v3186 = vadd.f32 %v697, 1e-10
        %v3187 = vadd.f32 %v698, 1e-10
        %v3188 = vadd.f32 %v699, 1e-10
        %v3189 = vrcp.pop %v3185
        %v3190 = vmul.f32 1.0, %v3189
        %v3191 = vrcp.pop %v3186
        %v3192 = vmul.f32 1.0, %v3191
        %v3193 = vrcp.pop %v3187
        %v3194 = vmul.f32 1.0, %v3193
        %v3195 = vrcp.pop %v3188
        %v3196 = vmul.f32 1.0, %v3195
        %3198 = vset.pattern.permute.xlu0 0
        %3199 = vperm.xlu0 %3198, %v3190
        %v3200 = vpop.permute.xlu0 %3199
        %3203 = vset.pattern.permute.xlu0 0
        %3204 = vperm.xlu0 %3203, %v3192
        %v3205 = vpop.permute.xlu0 %3204
        %3208 = vset.pattern.permute.xlu0 0
        %3209 = vperm.xlu0 %3208, %v3194
        %v3210 = vpop.permute.xlu0 %3209
        %3213 = vset.pattern.permute.xlu0 0
        %3214 = vperm.xlu0 %3213, %v3196
        %v3215 = vpop.permute.xlu0 %3214
        %v3217 = vmul.f32 %v3169, %v3200
        %v3218 = vmul.f32 %v3170, %v3205
        %v3219 = vmul.f32 %v3171, %v3210
        %v3220 = vmul.f32 %v3172, %v3215
        %v3221 = vmul.f32 %v3173, %v3200
        %v3222 = vmul.f32 %v3174, %v3205
        %v3223 = vmul.f32 %v3175, %v3210
        %v3224 = vmul.f32 %v3176, %v3215
        %v3225 = vmul.f32 %v3177, %v3200
        %v3226 = vmul.f32 %v3178, %v3205
        %v3227 = vmul.f32 %v3179, %v3210
        %v3228 = vmul.f32 %v3180, %v3215
        %v3229 = vmul.f32 %v3181, %v3200
        %v3230 = vmul.f32 %v3182, %v3205
        %v3231 = vmul.f32 %v3183, %v3210
        %v3232 = vmul.f32 %v3184, %v3215
        %v3233 = vmul.f32 %v3217, %v558
        %v3234 = vmul.f32 %v3218, %v565
        %v3235 = vmul.f32 %v3219, %v572
        %v3236 = vmul.f32 %v3220, %v579
        %v3237 = vmul.f32 %v3221, %v586
        %v3238 = vmul.f32 %v3222, %v593
        %v3239 = vmul.f32 %v3223, %v600
        %v3240 = vmul.f32 %v3224, %v607
        %v3241 = vmul.f32 %v3225, %v614
        %v3242 = vmul.f32 %v3226, %v621
        %v3243 = vmul.f32 %v3227, %v628
        %v3244 = vmul.f32 %v3228, %v635
        %v3245 = vmul.f32 %v3229, %v642
        %v3246 = vmul.f32 %v3230, %v649
        %v3247 = vmul.f32 %v3231, %v656
        %v3248 = vmul.f32 %v3232, %v663
        %v3249 = vadd.f32 %v3233, %v440
        %v3250 = vadd.f32 %v3234, %v441
        %v3251 = vadd.f32 %v3235, %v442
        %v3252 = vadd.f32 %v3236, %v443
        %v3253 = vadd.f32 %v3237, %v444
        %v3254 = vadd.f32 %v3238, %v445
        %v3255 = vadd.f32 %v3239, %v446
        %v3256 = vadd.f32 %v3240, %v447
        %v3257 = vadd.f32 %v3241, %v448
        %v3258 = vadd.f32 %v3242, %v449
        %v3259 = vadd.f32 %v3243, %v450
        %v3260 = vadd.f32 %v3244, %v451
        %v3261 = vadd.f32 %v3245, %v452
        %v3262 = vadd.f32 %v3246, %v453
        %v3263 = vadd.f32 %v3247, %v454
        %v3264 = vadd.f32 %v3248, %v455
        %3265 = vst [vmem:[%s382] sm:$0xff] %v3249
        %3266 = vst [vmem:[%s382 + $0x8] sm:$0xff] %v3250
        %3267 = vst [vmem:[%s382 + $0x10] sm:$0xff] %v3251
        %3268 = vst [vmem:[%s382 + $0x18] sm:$0xff] %v3252
        %3269 = vst [vmem:[%s382 + $0x20] sm:$0xff] %v3253
        %3270 = vst [vmem:[%s382 + $0x28] sm:$0xff] %v3254
        %3271 = vst [vmem:[%s382 + $0x30] sm:$0xff] %v3255
        %3272 = vst [vmem:[%s382 + $0x38] sm:$0xff] %v3256
        %3273 = vst [vmem:[%s382 + $0x40] sm:$0xff] %v3257
        %3274 = vst [vmem:[%s382 + $0x48] sm:$0xff] %v3258
        %3275 = vst [vmem:[%s382 + $0x50] sm:$0xff] %v3259
        %3276 = vst [vmem:[%s382 + $0x58] sm:$0xff] %v3260
        %3277 = vst [vmem:[%s382 + $0x60] sm:$0xff] %v3261
        %3278 = vst [vmem:[%s382 + $0x68] sm:$0xff] %v3262
        %3279 = vst [vmem:[%s382 + $0x70] sm:$0xff] %v3263
        %3280 = vst [vmem:[%s382 + $0x78] sm:$0xff] %v3264
        %s3281 = sand.u32 %s269, 1
        %s3282 = scalar_lea.sflag [#allocation3], %s3281
        %s3283 = sand.u32 %s269, 1
        %s3284 = smul.addr %s3283, 128
        %s3285 = scalar_lea.vmem [#allocation2], %s3284
        // Predicated region
        $region65: #{trend_block_forward.1} parent=63 // pred_check
          %p3286 = pneg %p279
        $region66: #{trend_block_forward.1} parent=63 // pred_check_branch
          %3288 = sbr.rel (%p3286) target = $region68
        $region67: #{trend_block_forward.1} parent=63 // pred_region
          %s3289 = smul.u32 4, %s25
          %s3291 = ssub.s32 2048, 2048
          %3292 = vsyncadd %s3282, %s3291
          %s3293 = smul.addr %s3289, 4
          %s3294 = smul.addr %s3293, 128
          %s3295 = scalar_lea.hbm %s11, %s3294
          %s3296 = sshll.u32 %s3285, 4
          %s3297 = int_to_ptr.vmem [resolvable:$true] %s3296
          %3302 = dma.vmem_to_hbm [thread:$0]  %s3297, 2048, %s3295, %s3282, 128, 128, 8
        $region68: #{trend_block_forward.1} parent=63 // pred_fallthru
          _
      $region64: #{trend_block_forward.1} parent=5 // pred_fallthru
        _
      %p3303 = scmp.le.s32.totalorder 2, %s20
      // Predicated region
      $region69: #{trend_block_forward.1} parent=5 // pred_check
        %p3304 = pneg %p3303
      $region70: #{trend_block_forward.1} parent=5 // pred_check_branch
        %3306 = sbr.rel (%p3304) target = $region72
      $region71: #{trend_block_forward.1} parent=5 // pred_region
        %s3307 = ssub.s32 %s20, 2
        // Predicated region
        $region73: #{trend_block_forward.1} parent=71 // pred_check
          %p3308 = pneg %p285
        $region74: #{trend_block_forward.1} parent=71 // pred_check_branch
          %3310 = sbr.rel (%p3308) target = $region76
        $region75: #{trend_block_forward.1} parent=71 // pred_region
          %s3311 = sand.u32 %s270, 1
          %s3312 = scalar_lea.sflag [#allocation3], %s3311
          %s3313 = sand.u32 %s270, 1
          %s3314 = smul.addr %s3313, 128
          %s3315 = scalar_lea.vmem [#allocation2], %s3314
          %3316 = dma.done %s3312, 2048
        $region76: #{trend_block_forward.1} parent=71 // pred_fallthru
          _
      $region72: #{trend_block_forward.1} parent=5 // pred_fallthru
        _
    $region6: #{trend_block_forward.1} parent=1 // loop_footer
      %s24 = sadd.s32 1, %s20
    $region7: #{trend_block_forward.1} parent=1 // loop_footer_branch
      %19 = sbr.rel target = $region3
    $region8: #{trend_block_forward.1} parent=1 // loop_exit
      _
    %3317 = vsyncpa [#allocation3], 1
    %s3318 = scalar_lea.sflag [#allocation3], 1
    %3319 = vsyncpa %s3318, 1

</llo_original>
